<compile_context>
chip_gen: v6e
topology: v6e:2x2x1
jax: 0.10.0
libtpu: 0.0.40
codegen_flags: <defaults>
</compile_context>

<pallas_src>
import jax
import jax.numpy as jnp
from jax.experimental import pallas as pl
from jax.experimental.pallas import tpu as pltpu

N, C_IN, H, W = 1, 2304, 7, 7
C_OUT = 384
EPS = 1e-3


def conv_bn_kernel(x_ref, w_ref, gamma_ref, beta_ref, o_ref):
    # x_ref:     (Cin, M)    bf16 -- NCHW input (N=1) viewed as a matrix (no transpose)
    # w_ref:     (Cout, Cin) bf16 -- native conv-weight layout (no transpose)
    # gamma_ref: (Cout, 1)   f32  -- BN affine scale
    # beta_ref:  (Cout, 1)   f32  -- BN affine shift
    # o_ref:     (Cout, M)   f32  -- directly the NCHW output (N=1)

    # 1x1 conv == matmul on the MXU: Y = W @ X, f32 accumulation.
    y = jnp.dot(w_ref[...], x_ref[...], preferred_element_type=jnp.float32)  # (Cout, M)

    # BatchNorm (training mode): biased batch statistics per output channel (row).
    m = jnp.float32(y.shape[1])
    mean = jnp.sum(y, axis=1, keepdims=True) / m            # (Cout, 1)
    diff = y - mean
    var = jnp.sum(diff * diff, axis=1, keepdims=True) / m   # biased variance
    inv_std = jax.lax.rsqrt(var + jnp.float32(EPS))

    o_ref[...] = (diff * inv_std) * gamma_ref[...] + beta_ref[...]


def conv_bn_forward(x_nchw, w_oihw, gamma, beta):
    n, cin, h, w = x_nchw.shape
    cout = w_oihw.shape[0]
    m = n * h * w

    # NCHW -> (Cin, M).  For N == 1 this is a pure reshape (zero-cost view);
    # only the (unused here) N > 1 path needs a transpose.
    if n == 1:
        x2d = x_nchw.reshape(cin, m)
    else:
        x2d = jnp.transpose(x_nchw, (1, 0, 2, 3)).reshape(cin, m)
    x2d = x2d.astype(jnp.bfloat16)

    # (Cout, Cin, 1, 1) -> (Cout, Cin): native layout, no transpose.  Cast to bf16 to
    # halve the dominant HBM transfer.
    w2d = w_oihw.reshape(cout, cin).astype(jnp.bfloat16)
    gamma2d = gamma.reshape(cout, 1).astype(jnp.float32)
    beta2d = beta.reshape(cout, 1).astype(jnp.float32)

    cost = pl.CostEstimate(
        flops=2 * m * cin * cout,          # ~86.7 MFLOP
        transcendentals=cout,              # per-channel rsqrt
        bytes_accessed=(x2d.size * 2 + w2d.size * 2
                        + gamma2d.size * 4 + beta2d.size * 4
                        + cout * m * 4),   # ~2.1 MB
    )

    out2d = pl.pallas_call(
        conv_bn_kernel,
        out_shape=jax.ShapeDtypeStruct((cout, m), jnp.float32),
        in_specs=[
            pl.BlockSpec(memory_space=pltpu.MemorySpace.VMEM),
            pl.BlockSpec(memory_space=pltpu.MemorySpace.VMEM),
            pl.BlockSpec(memory_space=pltpu.MemorySpace.VMEM),
            pl.BlockSpec(memory_space=pltpu.MemorySpace.VMEM),
        ],
        out_specs=pl.BlockSpec(memory_space=pltpu.MemorySpace.VMEM),
        cost_estimate=cost,
    )(x2d, w2d, gamma2d, beta2d)

    # (Cout, M) -> NCHW.  For N == 1 this is a pure reshape.
    if n == 1:
        return out2d.reshape(1, cout, h, w)
    return jnp.transpose(out2d.reshape(cout, n, h, w), (1, 0, 2, 3))


def reference_forward(x_nchw, w_oihw, gamma, beta, cast_bf16):
    # Pure-JAX reference.  cast_bf16=True mirrors the kernel's operand precision
    # (bf16 operands, f32 accumulate); cast_bf16=False is the full-f32 semantics check.
    n, cin, h, w = x_nchw.shape
    cout = w_oihw.shape[0]
    x2d = jnp.transpose(x_nchw, (0, 2, 3, 1)).reshape(-1, cin)
    w2d = jnp.transpose(w_oihw.reshape(cout, cin))
    if cast_bf16:
        x2d = x2d.astype(jnp.bfloat16)
        w2d = w2d.astype(jnp.bfloat16)
    y = jnp.dot(x2d, w2d, preferred_element_type=jnp.float32)
    mean = jnp.mean(y, axis=0, keepdims=True)
    var = jnp.mean((y - mean) ** 2, axis=0, keepdims=True)
    out = (y - mean) / jnp.sqrt(var + EPS) * gamma.reshape(1, -1) + beta.reshape(1, -1)
    return jnp.transpose(out.reshape(n, h, w, cout), (0, 3, 1, 2))


if __name__ == "__main__":
    key = jax.random.PRNGKey(0)
    kx, kw = jax.random.split(key)

    # Deterministic inputs / parameters (PyTorch BN default init: gamma=1, beta=0).
    x = jax.random.normal(kx, (N, C_IN, H, W), dtype=jnp.float32)
    conv_w = jax.random.normal(kw, (C_OUT, C_IN, 1, 1), dtype=jnp.float32) * 0.02
    gamma = jnp.ones((C_OUT,), dtype=jnp.float32)
    beta = jnp.zeros((C_OUT,), dtype=jnp.float32)

    out = conv_bn_forward(x, conv_w, gamma, beta)
    out = jax.block_until_ready(out)
    assert out.shape == (N, C_OUT, H, W)

    # Tight check against a reference with the same operand precision (bf16 -> f32 acc).
    ref_bf16 = reference_forward(x, conv_w, gamma, beta, cast_bf16=True)
    assert jnp.allclose(out, ref_bf16, atol=1e-3, rtol=1e-3)

    # Loose check against the full-f32 reference (bf16 operand rounding only).
    ref_f32 = reference_forward(x, conv_w, gamma, beta, cast_bf16=False)
    assert jnp.allclose(out, ref_f32, atol=5e-2, rtol=5e-2)

    # TODO(synk): PyTorch BN training mode also updates running_mean/running_var
    # (unbiased variance); only the normalized forward output is produced here.

    print("KERNEL_OK")
</pallas_src>

<mosaic_0001>
module attributes {stable_mosaic.version = 11 : i64} {
  func.func @conv_bn_kernel(%arg0: memref<2304x49xbf16, #tpu.memory_space<vmem>>, %arg1: memref<384x2304xbf16, #tpu.memory_space<vmem>>, %arg2: memref<384x1xf32, #tpu.memory_space<vmem>>, %arg3: memref<384x1xf32, #tpu.memory_space<vmem>>, %arg4: memref<384x49xf32, #tpu.memory_space<vmem>>) attributes {dimension_semantics = [], scalar_prefetch = 0 : i64, scratch_operands = 0 : i64, tpu.core_type = #tpu.core_type<tc>} {
    %c0 = arith.constant 0 : index
    %c0_0 = arith.constant 0 : index
    %0 = vector.load %arg1[%c0, %c0_0] : memref<384x2304xbf16, #tpu.memory_space<vmem>>, vector<384x2304xbf16>
    %c0_1 = arith.constant 0 : index
    %c0_2 = arith.constant 0 : index
    %1 = vector.load %arg0[%c0_1, %c0_2] : memref<2304x49xbf16, #tpu.memory_space<vmem>>, vector<2304x49xbf16>
    %cst = arith.constant dense<0.000000e+00> : vector<384x49xf32>
    %2 = tpu.matmul %0, %1, %cst {dimension_numbers = #tpu.dot_dimension_numbers<[1], [0], [0], [1], [0, 0, 1, 1], [], []>} : vector<384x2304xbf16>, vector<2304x49xbf16>, vector<384x49xf32> -> vector<384x49xf32>
    %cst_3 = arith.constant dense<0.000000e+00> : vector<384xf32>
    %3 = vector.multi_reduction <add>, %2, %cst_3 [1] : vector<384x49xf32> to vector<384xf32>
    %4 = vector.shape_cast %3 : vector<384xf32> to vector<384x1xf32>
    %cst_4 = arith.constant 4.900000e+01 : f32
    %5 = vector.broadcast %cst_4 : f32 to vector<384x1xf32>
    %6 = arith.divf %4, %5 : vector<384x1xf32>
    %7 = vector.broadcast %6 : vector<384x1xf32> to vector<384x49xf32>
    %8 = arith.subf %2, %7 : vector<384x49xf32>
    %9 = arith.mulf %8, %8 : vector<384x49xf32>
    %cst_5 = arith.constant dense<0.000000e+00> : vector<384xf32>
    %10 = vector.multi_reduction <add>, %9, %cst_5 [1] : vector<384x49xf32> to vector<384xf32>
    %11 = vector.shape_cast %10 : vector<384xf32> to vector<384x1xf32>
    %cst_6 = arith.constant 4.900000e+01 : f32
    %12 = vector.broadcast %cst_6 : f32 to vector<384x1xf32>
    %13 = arith.divf %11, %12 : vector<384x1xf32>
    %cst_7 = arith.constant 1.000000e-03 : f32
    %14 = vector.broadcast %cst_7 : f32 to vector<384x1xf32>
    %15 = arith.addf %13, %14 : vector<384x1xf32>
    %16 = math.rsqrt %15 : vector<384x1xf32>
    %17 = vector.broadcast %16 : vector<384x1xf32> to vector<384x49xf32>
    %18 = arith.mulf %8, %17 : vector<384x49xf32>
    %c0_8 = arith.constant 0 : index
    %c0_9 = arith.constant 0 : index
    %19 = vector.load %arg2[%c0_8, %c0_9] : memref<384x1xf32, #tpu.memory_space<vmem>>, vector<384x1xf32>
    %20 = vector.broadcast %19 : vector<384x1xf32> to vector<384x49xf32>
    %21 = arith.mulf %18, %20 : vector<384x49xf32>
    %c0_10 = arith.constant 0 : index
    %c0_11 = arith.constant 0 : index
    %22 = vector.load %arg3[%c0_10, %c0_11] : memref<384x1xf32, #tpu.memory_space<vmem>>, vector<384x1xf32>
    %23 = vector.broadcast %22 : vector<384x1xf32> to vector<384x49xf32>
    %24 = arith.addf %21, %23 : vector<384x49xf32>
    %c0_12 = arith.constant 0 : index
    %c0_13 = arith.constant 0 : index
    %25 = vector.load %arg4[%c0_12, %c0_13] : memref<384x49xf32, #tpu.memory_space<vmem>>, vector<384x49xf32>
    tpu.vector_store %arg4[%c0_12, %c0_13], %24 {strides = array<i32>} : memref<384x49xf32, #tpu.memory_space<vmem>>, vector<384x49xf32>,
    return
  }
}

</mosaic_0001>

<llo_original>
// kernel: tpu_custom_call.1
$region0: #{tpu_custom_call.1}
  #allocation0 [shape = 'u32[]', space=smem, size = 0x4, offset = 0x4, fixed_abs, tag = 'smem constant byte address 0x4 - core index']
  #allocation1 [shape = 'u32[144,128]{1,0:T(1,128)}', space=vmem, size = 0x12000, scoped, tag = 'internal scratch']
  %s0 = inlined_call_operand.vmem [shape: bf16[2304,49], index: 0, kind: input, shape index: {}]
  %s1 = inlined_call_operand.hbm [shape: bf16[384,2304], index: 1, kind: input, shape index: {}]
  %s2 = inlined_call_operand.vmem [shape: f32[384,1], index: 2, kind: input, shape index: {}]
  %s3 = inlined_call_operand.vmem [shape: f32[384,1], index: 3, kind: input, shape index: {}]
  %s4 = inlined_call_operand.vmem [shape: f32[384,49], index: 4, kind: output, shape index: {}]
  %s5 = sld [smem:[#allocation0]]
  $region30: #{tpu_custom_call.1} parent=0
    _
  %s7 = ssub.s32 1, %s5
  %s8 = scalar_select 0, %s7, %s5
  $region1: #{tpu_custom_call.1} parent=0
    #allocation2 [shape = 'u8[1769472]{0}', space=vmem, size = 0x1b0000, scoped, tag = 'input window, operand 1, single buffered']
    #allocation3 [shape = 's32[1]{0}', space=sflag, size = 0x4, scoped, tag = 'scoped memory for tpu_custom_call.1']
    %9 = vsyncpa [#allocation3], 0
    // Predicated region
    $region2: #{tpu_custom_call.1} parent=1 // pred_check
      _
    $region3: #{tpu_custom_call.1} parent=1 // pred_check_branch
      %11 = sbr.rel (0) target = $region5
    $region4: #{tpu_custom_call.1} parent=1 // pred_region
      _
    $region5: #{tpu_custom_call.1} parent=1 // pred_fallthru
      _
    // Predicated region
    $region6: #{tpu_custom_call.1} parent=1 // pred_check
      _
    $region7: #{tpu_custom_call.1} parent=1 // pred_check_branch
      %13 = sbr.rel (0) target = $region9
    $region8: #{tpu_custom_call.1} parent=1 // pred_region
      %s15 = ssub.s32 55296, 55296
      %16 = vsyncadd [#allocation3], %s15
      %s17 = sshll.u32 [#allocation2], 4
      %s18 = int_to_ptr.vmem [resolvable:$true] %s17
      %23 = dma.hbm_to_vmem [thread:$0]  %s1, 55296, %s18, [#allocation3], 1152, 1152, 72
    $region9: #{tpu_custom_call.1} parent=1 // pred_fallthru
      _
    // Predicated region
    $region10: #{tpu_custom_call.1} parent=1 // pred_check
      _
    $region11: #{tpu_custom_call.1} parent=1 // pred_check_branch
      %25 = sbr.rel (0) target = $region13
    $region12: #{tpu_custom_call.1} parent=1 // pred_region
      _
    $region13: #{tpu_custom_call.1} parent=1 // pred_fallthru
      _
    // Predicated region
    $region14: #{tpu_custom_call.1} parent=1 // pred_check
      _
    $region15: #{tpu_custom_call.1} parent=1 // pred_check_branch
      %27 = sbr.rel (0) target = $region17
    $region16: #{tpu_custom_call.1} parent=1 // pred_region
      _
    $region17: #{tpu_custom_call.1} parent=1 // pred_fallthru
      _
    // Predicated region
    $region18: #{tpu_custom_call.1} parent=1 // pred_check
      _
    $region19: #{tpu_custom_call.1} parent=1 // pred_check_branch
      %29 = sbr.rel (0) target = $region21
    $region20: #{tpu_custom_call.1} parent=1 // pred_region
      %30 = dma.done [#allocation3], 55296
    $region21: #{tpu_custom_call.1} parent=1 // pred_fallthru
      _
    %v32 = vld [vmem:[#allocation2] sm:$0xff]
    %v33 = vld [vmem:[#allocation2 + $0x8] sm:$0xff]
    %v34 = vld [vmem:[#allocation2 + $0x10] sm:$0xff]
    %v35 = vld [vmem:[#allocation2 + $0x18] sm:$0xff]
    %v36 = vld [vmem:[#allocation2 + $0x20] sm:$0xff]
    %v37 = vld [vmem:[#allocation2 + $0x28] sm:$0xff]
    %v38 = vld [vmem:[#allocation2 + $0x30] sm:$0xff]
    %v39 = vld [vmem:[#allocation2 + $0x38] sm:$0xff]
    %v40 = vld [vmem:[#allocation2 + $0x40] sm:$0xff]
    %v41 = vld [vmem:[#allocation2 + $0x48] sm:$0xff]
    %v42 = vld [vmem:[#allocation2 + $0x50] sm:$0xff]
    %v43 = vld [vmem:[#allocation2 + $0x58] sm:$0xff]
    %v44 = vld [vmem:[#allocation2 + $0x60] sm:$0xff]
    %v45 = vld [vmem:[#allocation2 + $0x68] sm:$0xff]
    %v46 = vld [vmem:[#allocation2 + $0x70] sm:$0xff]
    %v47 = vld [vmem:[#allocation2 + $0x78] sm:$0xff]
    %v48 = vld [vmem:[#allocation2 + $0x80] sm:$0xff]
    %v49 = vld [vmem:[#allocation2 + $0x88] sm:$0xff]
    %v50 = vld [vmem:[#allocation2 + $0x90] sm:$0xff]
    %v51 = vld [vmem:[#allocation2 + $0x98] sm:$0xff]
    %v52 = vld [vmem:[#allocation2 + $0xa0] sm:$0xff]
    %v53 = vld [vmem:[#allocation2 + $0xa8] sm:$0xff]
    %v54 = vld [vmem:[#allocation2 + $0xb0] sm:$0xff]
    %v55 = vld [vmem:[#allocation2 + $0xb8] sm:$0xff]
    %v56 = vld [vmem:[#allocation2 + $0xc0] sm:$0xff]
    %v57 = vld [vmem:[#allocation2 + $0xc8] sm:$0xff]
    %v58 = vld [vmem:[#allocation2 + $0xd0] sm:$0xff]
    %v59 = vld [vmem:[#allocation2 + $0xd8] sm:$0xff]
    %v60 = vld [vmem:[#allocation2 + $0xe0] sm:$0xff]
    %v61 = vld [vmem:[#allocation2 + $0xe8] sm:$0xff]
    %v62 = vld [vmem:[#allocation2 + $0xf0] sm:$0xff]
    %v63 = vld [vmem:[#allocation2 + $0xf8] sm:$0xff]
    %v64 = vld [vmem:[#allocation2 + $0x100] sm:$0xff]
    %v65 = vld [vmem:[#allocation2 + $0x108] sm:$0xff]
    %v66 = vld [vmem:[#allocation2 + $0x110] sm:$0xff]
    %v67 = vld [vmem:[#allocation2 + $0x118] sm:$0xff]
    %v68 = vld [vmem:[#allocation2 + $0x120] sm:$0xff]
    %v69 = vld [vmem:[#allocation2 + $0x128] sm:$0xff]
    %v70 = vld [vmem:[#allocation2 + $0x130] sm:$0xff]
    %v71 = vld [vmem:[#allocation2 + $0x138] sm:$0xff]
    %v72 = vld [vmem:[#allocation2 + $0x140] sm:$0xff]
    %v73 = vld [vmem:[#allocation2 + $0x148] sm:$0xff]
    %v74 = vld [vmem:[#allocation2 + $0x150] sm:$0xff]
    %v75 = vld [vmem:[#allocation2 + $0x158] sm:$0xff]
    %v76 = vld [vmem:[#allocation2 + $0x160] sm:$0xff]
    %v77 = vld [vmem:[#allocation2 + $0x168] sm:$0xff]
    %v78 = vld [vmem:[#allocation2 + $0x170] sm:$0xff]
    %v79 = vld [vmem:[#allocation2 + $0x178] sm:$0xff]
    %v80 = vld [vmem:[#allocation2 + $0x180] sm:$0xff]
    %v81 = vld [vmem:[#allocation2 + $0x188] sm:$0xff]
    %v82 = vld [vmem:[#allocation2 + $0x190] sm:$0xff]
    %v83 = vld [vmem:[#allocation2 + $0x198] sm:$0xff]
    %v84 = vld [vmem:[#allocation2 + $0x1a0] sm:$0xff]
    %v85 = vld [vmem:[#allocation2 + $0x1a8] sm:$0xff]
    %v86 = vld [vmem:[#allocation2 + $0x1b0] sm:$0xff]
    %v87 = vld [vmem:[#allocation2 + $0x1b8] sm:$0xff]
    %v88 = vld [vmem:[#allocation2 + $0x1c0] sm:$0xff]
    %v89 = vld [vmem:[#allocation2 + $0x1c8] sm:$0xff]
    %v90 = vld [vmem:[#allocation2 + $0x1d0] sm:$0xff]
    %v91 = vld [vmem:[#allocation2 + $0x1d8] sm:$0xff]
    %v92 = vld [vmem:[#allocation2 + $0x1e0] sm:$0xff]
    %v93 = vld [vmem:[#allocation2 + $0x1e8] sm:$0xff]
    %v94 = vld [vmem:[#allocation2 + $0x1f0] sm:$0xff]
    %v95 = vld [vmem:[#allocation2 + $0x1f8] sm:$0xff]
    %v96 = vld [vmem:[#allocation2 + $0x200] sm:$0xff]
    %v97 = vld [vmem:[#allocation2 + $0x208] sm:$0xff]
    %v98 = vld [vmem:[#allocation2 + $0x210] sm:$0xff]
    %v99 = vld [vmem:[#allocation2 + $0x218] sm:$0xff]
    %v100 = vld [vmem:[#allocation2 + $0x220] sm:$0xff]
    %v101 = vld [vmem:[#allocation2 + $0x228] sm:$0xff]
    %v102 = vld [vmem:[#allocation2 + $0x230] sm:$0xff]
    %v103 = vld [vmem:[#allocation2 + $0x238] sm:$0xff]
    %v104 = vld [vmem:[#allocation2 + $0x240] sm:$0xff]
    %v105 = vld [vmem:[#allocation2 + $0x248] sm:$0xff]
    %v106 = vld [vmem:[#allocation2 + $0x250] sm:$0xff]
    %v107 = vld [vmem:[#allocation2 + $0x258] sm:$0xff]
    %v108 = vld [vmem:[#allocation2 + $0x260] sm:$0xff]
    %v109 = vld [vmem:[#allocation2 + $0x268] sm:$0xff]
    %v110 = vld [vmem:[#allocation2 + $0x270] sm:$0xff]
    %v111 = vld [vmem:[#allocation2 + $0x278] sm:$0xff]
    %v112 = vld [vmem:[#allocation2 + $0x280] sm:$0xff]
    %v113 = vld [vmem:[#allocation2 + $0x288] sm:$0xff]
    %v114 = vld [vmem:[#allocation2 + $0x290] sm:$0xff]
    %v115 = vld [vmem:[#allocation2 + $0x298] sm:$0xff]
    %v116 = vld [vmem:[#allocation2 + $0x2a0] sm:$0xff]
    %v117 = vld [vmem:[#allocation2 + $0x2a8] sm:$0xff]
    %v118 = vld [vmem:[#allocation2 + $0x2b0] sm:$0xff]
    %v119 = vld [vmem:[#allocation2 + $0x2b8] sm:$0xff]
    %v120 = vld [vmem:[#allocation2 + $0x2c0] sm:$0xff]
    %v121 = vld [vmem:[#allocation2 + $0x2c8] sm:$0xff]
    %v122 = vld [vmem:[#allocation2 + $0x2d0] sm:$0xff]
    %v123 = vld [vmem:[#allocation2 + $0x2d8] sm:$0xff]
    %v124 = vld [vmem:[#allocation2 + $0x2e0] sm:$0xff]
    %v125 = vld [vmem:[#allocation2 + $0x2e8] sm:$0xff]
    %v126 = vld [vmem:[#allocation2 + $0x2f0] sm:$0xff]
    %v127 = vld [vmem:[#allocation2 + $0x2f8] sm:$0xff]
    %v128 = vld [vmem:[#allocation2 + $0x300] sm:$0xff]
    %v129 = vld [vmem:[#allocation2 + $0x308] sm:$0xff]
    %v130 = vld [vmem:[#allocation2 + $0x310] sm:$0xff]
    %v131 = vld [vmem:[#allocation2 + $0x318] sm:$0xff]
    %v132 = vld [vmem:[#allocation2 + $0x320] sm:$0xff]
    %v133 = vld [vmem:[#allocation2 + $0x328] sm:$0xff]
    %v134 = vld [vmem:[#allocation2 + $0x330] sm:$0xff]
    %v135 = vld [vmem:[#allocation2 + $0x338] sm:$0xff]
    %v136 = vld [vmem:[#allocation2 + $0x340] sm:$0xff]
    %v137 = vld [vmem:[#allocation2 + $0x348] sm:$0xff]
    %v138 = vld [vmem:[#allocation2 + $0x350] sm:$0xff]
    %v139 = vld [vmem:[#allocation2 + $0x358] sm:$0xff]
    %v140 = vld [vmem:[#allocation2 + $0x360] sm:$0xff]
    %v141 = vld [vmem:[#allocation2 + $0x368] sm:$0xff]
    %v142 = vld [vmem:[#allocation2 + $0x370] sm:$0xff]
    %v143 = vld [vmem:[#allocation2 + $0x378] sm:$0xff]
    %v144 = vld [vmem:[#allocation2 + $0x380] sm:$0xff]
    %v145 = vld [vmem:[#allocation2 + $0x388] sm:$0xff]
    %v146 = vld [vmem:[#allocation2 + $0x390] sm:$0xff]
    %v147 = vld [vmem:[#allocation2 + $0x398] sm:$0xff]
    %v148 = vld [vmem:[#allocation2 + $0x3a0] sm:$0xff]
    %v149 = vld [vmem:[#allocation2 + $0x3a8] sm:$0xff]
    %v150 = vld [vmem:[#allocation2 + $0x3b0] sm:$0xff]
    %v151 = vld [vmem:[#allocation2 + $0x3b8] sm:$0xff]
    %v152 = vld [vmem:[#allocation2 + $0x3c0] sm:$0xff]
    %v153 = vld [vmem:[#allocation2 + $0x3c8] sm:$0xff]
    %v154 = vld [vmem:[#allocation2 + $0x3d0] sm:$0xff]
    %v155 = vld [vmem:[#allocation2 + $0x3d8] sm:$0xff]
    %v156 = vld [vmem:[#allocation2 + $0x3e0] sm:$0xff]
    %v157 = vld [vmem:[#allocation2 + $0x3e8] sm:$0xff]
    %v158 = vld [vmem:[#allocation2 + $0x3f0] sm:$0xff]
    %v159 = vld [vmem:[#allocation2 + $0x3f8] sm:$0xff]
    %v160 = vld [vmem:[#allocation2 + $0x400] sm:$0xff]
    %v161 = vld [vmem:[#allocation2 + $0x408] sm:$0xff]
    %v162 = vld [vmem:[#allocation2 + $0x410] sm:$0xff]
    %v163 = vld [vmem:[#allocation2 + $0x418] sm:$0xff]
    %v164 = vld [vmem:[#allocation2 + $0x420] sm:$0xff]
    %v165 = vld [vmem:[#allocation2 + $0x428] sm:$0xff]
    %v166 = vld [vmem:[#allocation2 + $0x430] sm:$0xff]
    %v167 = vld [vmem:[#allocation2 + $0x438] sm:$0xff]
    %v168 = vld [vmem:[#allocation2 + $0x440] sm:$0xff]
    %v169 = vld [vmem:[#allocation2 + $0x448] sm:$0xff]
    %v170 = vld [vmem:[#allocation2 + $0x450] sm:$0xff]
    %v171 = vld [vmem:[#allocation2 + $0x458] sm:$0xff]
    %v172 = vld [vmem:[#allocation2 + $0x460] sm:$0xff]
    %v173 = vld [vmem:[#allocation2 + $0x468] sm:$0xff]
    %v174 = vld [vmem:[#allocation2 + $0x470] sm:$0xff]
    %v175 = vld [vmem:[#allocation2 + $0x478] sm:$0xff]
    %v176 = vld [vmem:[#allocation2 + $0x480] sm:$0xff]
    %v177 = vld [vmem:[#allocation2 + $0x488] sm:$0xff]
    %v178 = vld [vmem:[#allocation2 + $0x490] sm:$0xff]
    %v179 = vld [vmem:[#allocation2 + $0x498] sm:$0xff]
    %v180 = vld [vmem:[#allocation2 + $0x4a0] sm:$0xff]
    %v181 = vld [vmem:[#allocation2 + $0x4a8] sm:$0xff]
    %v182 = vld [vmem:[#allocation2 + $0x4b0] sm:$0xff]
    %v183 = vld [vmem:[#allocation2 + $0x4b8] sm:$0xff]
    %v184 = vld [vmem:[#allocation2 + $0x4c0] sm:$0xff]
    %v185 = vld [vmem:[#allocation2 + $0x4c8] sm:$0xff]
    %v186 = vld [vmem:[#allocation2 + $0x4d0] sm:$0xff]
    %v187 = vld [vmem:[#allocation2 + $0x4d8] sm:$0xff]
    %v188 = vld [vmem:[#allocation2 + $0x4e0] sm:$0xff]
    %v189 = vld [vmem:[#allocation2 + $0x4e8] sm:$0xff]
    %v190 = vld [vmem:[#allocation2 + $0x4f0] sm:$0xff]
    %v191 = vld [vmem:[#allocation2 + $0x4f8] sm:$0xff]
    %v192 = vld [vmem:[#allocation2 + $0x500] sm:$0xff]
    %v193 = vld [vmem:[#allocation2 + $0x508] sm:$0xff]
    %v194 = vld [vmem:[#allocation2 + $0x510] sm:$0xff]
    %v195 = vld [vmem:[#allocation2 + $0x518] sm:$0xff]
    %v196 = vld [vmem:[#allocation2 + $0x520] sm:$0xff]
    %v197 = vld [vmem:[#allocation2 + $0x528] sm:$0xff]
    %v198 = vld [vmem:[#allocation2 + $0x530] sm:$0xff]
    %v199 = vld [vmem:[#allocation2 + $0x538] sm:$0xff]
    %v200 = vld [vmem:[#allocation2 + $0x540] sm:$0xff]
    %v201 = vld [vmem:[#allocation2 + $0x548] sm:$0xff]
    %v202 = vld [vmem:[#allocation2 + $0x550] sm:$0xff]
    %v203 = vld [vmem:[#allocation2 + $0x558] sm:$0xff]
    %v204 = vld [vmem:[#allocation2 + $0x560] sm:$0xff]
    %v205 = vld [vmem:[#allocation2 + $0x568] sm:$0xff]
    %v206 = vld [vmem:[#allocation2 + $0x570] sm:$0xff]
    %v207 = vld [vmem:[#allocation2 + $0x578] sm:$0xff]
    %v208 = vld [vmem:[#allocation2 + $0x580] sm:$0xff]
    %v209 = vld [vmem:[#allocation2 + $0x588] sm:$0xff]
    %v210 = vld [vmem:[#allocation2 + $0x590] sm:$0xff]
    %v211 = vld [vmem:[#allocation2 + $0x598] sm:$0xff]
    %v212 = vld [vmem:[#allocation2 + $0x5a0] sm:$0xff]
    %v213 = vld [vmem:[#allocation2 + $0x5a8] sm:$0xff]
    %v214 = vld [vmem:[#allocation2 + $0x5b0] sm:$0xff]
    %v215 = vld [vmem:[#allocation2 + $0x5b8] sm:$0xff]
    %v216 = vld [vmem:[#allocation2 + $0x5c0] sm:$0xff]
    %v217 = vld [vmem:[#allocation2 + $0x5c8] sm:$0xff]
    %v218 = vld [vmem:[#allocation2 + $0x5d0] sm:$0xff]
    %v219 = vld [vmem:[#allocation2 + $0x5d8] sm:$0xff]
    %v220 = vld [vmem:[#allocation2 + $0x5e0] sm:$0xff]
    %v221 = vld [vmem:[#allocation2 + $0x5e8] sm:$0xff]
    %v222 = vld [vmem:[#allocation2 + $0x5f0] sm:$0xff]
    %v223 = vld [vmem:[#allocation2 + $0x5f8] sm:$0xff]
    %v224 = vld [vmem:[#allocation2 + $0x600] sm:$0xff]
    %v225 = vld [vmem:[#allocation2 + $0x608] sm:$0xff]
    %v226 = vld [vmem:[#allocation2 + $0x610] sm:$0xff]
    %v227 = vld [vmem:[#allocation2 + $0x618] sm:$0xff]
    %v228 = vld [vmem:[#allocation2 + $0x620] sm:$0xff]
    %v229 = vld [vmem:[#allocation2 + $0x628] sm:$0xff]
    %v230 = vld [vmem:[#allocation2 + $0x630] sm:$0xff]
    %v231 = vld [vmem:[#allocation2 + $0x638] sm:$0xff]
    %v232 = vld [vmem:[#allocation2 + $0x640] sm:$0xff]
    %v233 = vld [vmem:[#allocation2 + $0x648] sm:$0xff]
    %v234 = vld [vmem:[#allocation2 + $0x650] sm:$0xff]
    %v235 = vld [vmem:[#allocation2 + $0x658] sm:$0xff]
    %v236 = vld [vmem:[#allocation2 + $0x660] sm:$0xff]
    %v237 = vld [vmem:[#allocation2 + $0x668] sm:$0xff]
    %v238 = vld [vmem:[#allocation2 + $0x670] sm:$0xff]
    %v239 = vld [vmem:[#allocation2 + $0x678] sm:$0xff]
    %v240 = vld [vmem:[#allocation2 + $0x680] sm:$0xff]
    %v241 = vld [vmem:[#allocation2 + $0x688] sm:$0xff]
    %v242 = vld [vmem:[#allocation2 + $0x690] sm:$0xff]
    %v243 = vld [vmem:[#allocation2 + $0x698] sm:$0xff]
    %v244 = vld [vmem:[#allocation2 + $0x6a0] sm:$0xff]
    %v245 = vld [vmem:[#allocation2 + $0x6a8] sm:$0xff]
    %v246 = vld [vmem:[#allocation2 + $0x6b0] sm:$0xff]
    %v247 = vld [vmem:[#allocation2 + $0x6b8] sm:$0xff]
    %v248 = vld [vmem:[#allocation2 + $0x6c0] sm:$0xff]
    %v249 = vld [vmem:[#allocation2 + $0x6c8] sm:$0xff]
    %v250 = vld [vmem:[#allocation2 + $0x6d0] sm:$0xff]
    %v251 = vld [vmem:[#allocation2 + $0x6d8] sm:$0xff]
    %v252 = vld [vmem:[#allocation2 + $0x6e0] sm:$0xff]
    %v253 = vld [vmem:[#allocation2 + $0x6e8] sm:$0xff]
    %v254 = vld [vmem:[#allocation2 + $0x6f0] sm:$0xff]
    %v255 = vld [vmem:[#allocation2 + $0x6f8] sm:$0xff]
    %v256 = vld [vmem:[#allocation2 + $0x700] sm:$0xff]
    %v257 = vld [vmem:[#allocation2 + $0x708] sm:$0xff]
    %v258 = vld [vmem:[#allocation2 + $0x710] sm:$0xff]
    %v259 = vld [vmem:[#allocation2 + $0x718] sm:$0xff]
    %v260 = vld [vmem:[#allocation2 + $0x720] sm:$0xff]
    %v261 = vld [vmem:[#allocation2 + $0x728] sm:$0xff]
    %v262 = vld [vmem:[#allocation2 + $0x730] sm:$0xff]
    %v263 = vld [vmem:[#allocation2 + $0x738] sm:$0xff]
    %v264 = vld [vmem:[#allocation2 + $0x740] sm:$0xff]
    %v265 = vld [vmem:[#allocation2 + $0x748] sm:$0xff]
    %v266 = vld [vmem:[#allocation2 + $0x750] sm:$0xff]
    %v267 = vld [vmem:[#allocation2 + $0x758] sm:$0xff]
    %v268 = vld [vmem:[#allocation2 + $0x760] sm:$0xff]
    %v269 = vld [vmem:[#allocation2 + $0x768] sm:$0xff]
    %v270 = vld [vmem:[#allocation2 + $0x770] sm:$0xff]
    %v271 = vld [vmem:[#allocation2 + $0x778] sm:$0xff]
    %v272 = vld [vmem:[#allocation2 + $0x780] sm:$0xff]
    %v273 = vld [vmem:[#allocation2 + $0x788] sm:$0xff]
    %v274 = vld [vmem:[#allocation2 + $0x790] sm:$0xff]
    %v275 = vld [vmem:[#allocation2 + $0x798] sm:$0xff]
    %v276 = vld [vmem:[#allocation2 + $0x7a0] sm:$0xff]
    %v277 = vld [vmem:[#allocation2 + $0x7a8] sm:$0xff]
    %v278 = vld [vmem:[#allocation2 + $0x7b0] sm:$0xff]
    %v279 = vld [vmem:[#allocation2 + $0x7b8] sm:$0xff]
    %v280 = vld [vmem:[#allocation2 + $0x7c0] sm:$0xff]
    %v281 = vld [vmem:[#allocation2 + $0x7c8] sm:$0xff]
    %v282 = vld [vmem:[#allocation2 + $0x7d0] sm:$0xff]
    %v283 = vld [vmem:[#allocation2 + $0x7d8] sm:$0xff]
    %v284 = vld [vmem:[#allocation2 + $0x7e0] sm:$0xff]
    %v285 = vld [vmem:[#allocation2 + $0x7e8] sm:$0xff]
    %v286 = vld [vmem:[#allocation2 + $0x7f0] sm:$0xff]
    %v287 = vld [vmem:[#allocation2 + $0x7f8] sm:$0xff]
    %v288 = vld [vmem:[#allocation2 + $0x800] sm:$0xff]
    %v289 = vld [vmem:[#allocation2 + $0x808] sm:$0xff]
    %v290 = vld [vmem:[#allocation2 + $0x810] sm:$0xff]
    %v291 = vld [vmem:[#allocation2 + $0x818] sm:$0xff]
    %v292 = vld [vmem:[#allocation2 + $0x820] sm:$0xff]
    %v293 = vld [vmem:[#allocation2 + $0x828] sm:$0xff]
    %v294 = vld [vmem:[#allocation2 + $0x830] sm:$0xff]
    %v295 = vld [vmem:[#allocation2 + $0x838] sm:$0xff]
    %v296 = vld [vmem:[#allocation2 + $0x840] sm:$0xff]
    %v297 = vld [vmem:[#allocation2 + $0x848] sm:$0xff]
    %v298 = vld [vmem:[#allocation2 + $0x850] sm:$0xff]
    %v299 = vld [vmem:[#allocation2 + $0x858] sm:$0xff]
    %v300 = vld [vmem:[#allocation2 + $0x860] sm:$0xff]
    %v301 = vld [vmem:[#allocation2 + $0x868] sm:$0xff]
    %v302 = vld [vmem:[#allocation2 + $0x870] sm:$0xff]
    %v303 = vld [vmem:[#allocation2 + $0x878] sm:$0xff]
    %v304 = vld [vmem:[#allocation2 + $0x880] sm:$0xff]
    %v305 = vld [vmem:[#allocation2 + $0x888] sm:$0xff]
    %v306 = vld [vmem:[#allocation2 + $0x890] sm:$0xff]
    %v307 = vld [vmem:[#allocation2 + $0x898] sm:$0xff]
    %v308 = vld [vmem:[#allocation2 + $0x8a0] sm:$0xff]
    %v309 = vld [vmem:[#allocation2 + $0x8a8] sm:$0xff]
    %v310 = vld [vmem:[#allocation2 + $0x8b0] sm:$0xff]
    %v311 = vld [vmem:[#allocation2 + $0x8b8] sm:$0xff]
    %v312 = vld [vmem:[#allocation2 + $0x8c0] sm:$0xff]
    %v313 = vld [vmem:[#allocation2 + $0x8c8] sm:$0xff]
    %v314 = vld [vmem:[#allocation2 + $0x8d0] sm:$0xff]
    %v315 = vld [vmem:[#allocation2 + $0x8d8] sm:$0xff]
    %v316 = vld [vmem:[#allocation2 + $0x8e0] sm:$0xff]
    %v317 = vld [vmem:[#allocation2 + $0x8e8] sm:$0xff]
    %v318 = vld [vmem:[#allocation2 + $0x8f0] sm:$0xff]
    %v319 = vld [vmem:[#allocation2 + $0x8f8] sm:$0xff]
    %v320 = vld [vmem:[#allocation2 + $0x900] sm:$0xff]
    %v321 = vld [vmem:[#allocation2 + $0x908] sm:$0xff]
    %v322 = vld [vmem:[#allocation2 + $0x910] sm:$0xff]
    %v323 = vld [vmem:[#allocation2 + $0x918] sm:$0xff]
    %v324 = vld [vmem:[#allocation2 + $0x920] sm:$0xff]
    %v325 = vld [vmem:[#allocation2 + $0x928] sm:$0xff]
    %v326 = vld [vmem:[#allocation2 + $0x930] sm:$0xff]
    %v327 = vld [vmem:[#allocation2 + $0x938] sm:$0xff]
    %v328 = vld [vmem:[#allocation2 + $0x940] sm:$0xff]
    %v329 = vld [vmem:[#allocation2 + $0x948] sm:$0xff]
    %v330 = vld [vmem:[#allocation2 + $0x950] sm:$0xff]
    %v331 = vld [vmem:[#allocation2 + $0x958] sm:$0xff]
    %v332 = vld [vmem:[#allocation2 + $0x960] sm:$0xff]
    %v333 = vld [vmem:[#allocation2 + $0x968] sm:$0xff]
    %v334 = vld [vmem:[#allocation2 + $0x970] sm:$0xff]
    %v335 = vld [vmem:[#allocation2 + $0x978] sm:$0xff]
    %v336 = vld [vmem:[#allocation2 + $0x980] sm:$0xff]
    %v337 = vld [vmem:[#allocation2 + $0x988] sm:$0xff]
    %v338 = vld [vmem:[#allocation2 + $0x990] sm:$0xff]
    %v339 = vld [vmem:[#allocation2 + $0x998] sm:$0xff]
    %v340 = vld [vmem:[#allocation2 + $0x9a0] sm:$0xff]
    %v341 = vld [vmem:[#allocation2 + $0x9a8] sm:$0xff]
    %v342 = vld [vmem:[#allocation2 + $0x9b0] sm:$0xff]
    %v343 = vld [vmem:[#allocation2 + $0x9b8] sm:$0xff]
    %v344 = vld [vmem:[#allocation2 + $0x9c0] sm:$0xff]
    %v345 = vld [vmem:[#allocation2 + $0x9c8] sm:$0xff]
    %v346 = vld [vmem:[#allocation2 + $0x9d0] sm:$0xff]
    %v347 = vld [vmem:[#allocation2 + $0x9d8] sm:$0xff]
    %v348 = vld [vmem:[#allocation2 + $0x9e0] sm:$0xff]
    %v349 = vld [vmem:[#allocation2 + $0x9e8] sm:$0xff]
    %v350 = vld [vmem:[#allocation2 + $0x9f0] sm:$0xff]
    %v351 = vld [vmem:[#allocation2 + $0x9f8] sm:$0xff]
    %v352 = vld [vmem:[#allocation2 + $0xa00] sm:$0xff]
    %v353 = vld [vmem:[#allocation2 + $0xa08] sm:$0xff]
    %v354 = vld [vmem:[#allocation2 + $0xa10] sm:$0xff]
    %v355 = vld [vmem:[#allocation2 + $0xa18] sm:$0xff]
    %v356 = vld [vmem:[#allocation2 + $0xa20] sm:$0xff]
    %v357 = vld [vmem:[#allocation2 + $0xa28] sm:$0xff]
    %v358 = vld [vmem:[#allocation2 + $0xa30] sm:$0xff]
    %v359 = vld [vmem:[#allocation2 + $0xa38] sm:$0xff]
    %v360 = vld [vmem:[#allocation2 + $0xa40] sm:$0xff]
    %v361 = vld [vmem:[#allocation2 + $0xa48] sm:$0xff]
    %v362 = vld [vmem:[#allocation2 + $0xa50] sm:$0xff]
    %v363 = vld [vmem:[#allocation2 + $0xa58] sm:$0xff]
    %v364 = vld [vmem:[#allocation2 + $0xa60] sm:$0xff]
    %v365 = vld [vmem:[#allocation2 + $0xa68] sm:$0xff]
    %v366 = vld [vmem:[#allocation2 + $0xa70] sm:$0xff]
    %v367 = vld [vmem:[#allocation2 + $0xa78] sm:$0xff]
    %v368 = vld [vmem:[#allocation2 + $0xa80] sm:$0xff]
    %v369 = vld [vmem:[#allocation2 + $0xa88] sm:$0xff]
    %v370 = vld [vmem:[#allocation2 + $0xa90] sm:$0xff]
    %v371 = vld [vmem:[#allocation2 + $0xa98] sm:$0xff]
    %v372 = vld [vmem:[#allocation2 + $0xaa0] sm:$0xff]
    %v373 = vld [vmem:[#allocation2 + $0xaa8] sm:$0xff]
    %v374 = vld [vmem:[#allocation2 + $0xab0] sm:$0xff]
    %v375 = vld [vmem:[#allocation2 + $0xab8] sm:$0xff]
    %v376 = vld [vmem:[#allocation2 + $0xac0] sm:$0xff]
    %v377 = vld [vmem:[#allocation2 + $0xac8] sm:$0xff]
    %v378 = vld [vmem:[#allocation2 + $0xad0] sm:$0xff]
    %v379 = vld [vmem:[#allocation2 + $0xad8] sm:$0xff]
    %v380 = vld [vmem:[#allocation2 + $0xae0] sm:$0xff]
    %v381 = vld [vmem:[#allocation2 + $0xae8] sm:$0xff]
    %v382 = vld [vmem:[#allocation2 + $0xaf0] sm:$0xff]
    %v383 = vld [vmem:[#allocation2 + $0xaf8] sm:$0xff]
    %v384 = vld [vmem:[#allocation2 + $0xb00] sm:$0xff]
    %v385 = vld [vmem:[#allocation2 + $0xb08] sm:$0xff]
    %v386 = vld [vmem:[#allocation2 + $0xb10] sm:$0xff]
    %v387 = vld [vmem:[#allocation2 + $0xb18] sm:$0xff]
    %v388 = vld [vmem:[#allocation2 + $0xb20] sm:$0xff]
    %v389 = vld [vmem:[#allocation2 + $0xb28] sm:$0xff]
    %v390 = vld [vmem:[#allocation2 + $0xb30] sm:$0xff]
    %v391 = vld [vmem:[#allocation2 + $0xb38] sm:$0xff]
    %v392 = vld [vmem:[#allocation2 + $0xb40] sm:$0xff]
    %v393 = vld [vmem:[#allocation2 + $0xb48] sm:$0xff]
    %v394 = vld [vmem:[#allocation2 + $0xb50] sm:$0xff]
    %v395 = vld [vmem:[#allocation2 + $0xb58] sm:$0xff]
    %v396 = vld [vmem:[#allocation2 + $0xb60] sm:$0xff]
    %v397 = vld [vmem:[#allocation2 + $0xb68] sm:$0xff]
    %v398 = vld [vmem:[#allocation2 + $0xb70] sm:$0xff]
    %v399 = vld [vmem:[#allocation2 + $0xb78] sm:$0xff]
    %v400 = vld [vmem:[#allocation2 + $0xb80] sm:$0xff]
    %v401 = vld [vmem:[#allocation2 + $0xb88] sm:$0xff]
    %v402 = vld [vmem:[#allocation2 + $0xb90] sm:$0xff]
    %v403 = vld [vmem:[#allocation2 + $0xb98] sm:$0xff]
    %v404 = vld [vmem:[#allocation2 + $0xba0] sm:$0xff]
    %v405 = vld [vmem:[#allocation2 + $0xba8] sm:$0xff]
    %v406 = vld [vmem:[#allocation2 + $0xbb0] sm:$0xff]
    %v407 = vld [vmem:[#allocation2 + $0xbb8] sm:$0xff]
    %v408 = vld [vmem:[#allocation2 + $0xbc0] sm:$0xff]
    %v409 = vld [vmem:[#allocation2 + $0xbc8] sm:$0xff]
    %v410 = vld [vmem:[#allocation2 + $0xbd0] sm:$0xff]
    %v411 = vld [vmem:[#allocation2 + $0xbd8] sm:$0xff]
    %v412 = vld [vmem:[#allocation2 + $0xbe0] sm:$0xff]
    %v413 = vld [vmem:[#allocation2 + $0xbe8] sm:$0xff]
    %v414 = vld [vmem:[#allocation2 + $0xbf0] sm:$0xff]
    %v415 = vld [vmem:[#allocation2 + $0xbf8] sm:$0xff]
    %v416 = vld [vmem:[#allocation2 + $0xc00] sm:$0xff]
    %v417 = vld [vmem:[#allocation2 + $0xc08] sm:$0xff]
    %v418 = vld [vmem:[#allocation2 + $0xc10] sm:$0xff]
    %v419 = vld [vmem:[#allocation2 + $0xc18] sm:$0xff]
    %v420 = vld [vmem:[#allocation2 + $0xc20] sm:$0xff]
    %v421 = vld [vmem:[#allocation2 + $0xc28] sm:$0xff]
    %v422 = vld [vmem:[#allocation2 + $0xc30] sm:$0xff]
    %v423 = vld [vmem:[#allocation2 + $0xc38] sm:$0xff]
    %v424 = vld [vmem:[#allocation2 + $0xc40] sm:$0xff]
    %v425 = vld [vmem:[#allocation2 + $0xc48] sm:$0xff]
    %v426 = vld [vmem:[#allocation2 + $0xc50] sm:$0xff]
    %v427 = vld [vmem:[#allocation2 + $0xc58] sm:$0xff]
    %v428 = vld [vmem:[#allocation2 + $0xc60] sm:$0xff]
    %v429 = vld [vmem:[#allocation2 + $0xc68] sm:$0xff]
    %v430 = vld [vmem:[#allocation2 + $0xc70] sm:$0xff]
    %v431 = vld [vmem:[#allocation2 + $0xc78] sm:$0xff]
    %v432 = vld [vmem:[#allocation2 + $0xc80] sm:$0xff]
    %v433 = vld [vmem:[#allocation2 + $0xc88] sm:$0xff]
    %v434 = vld [vmem:[#allocation2 + $0xc90] sm:$0xff]
    %v435 = vld [vmem:[#allocation2 + $0xc98] sm:$0xff]
    %v436 = vld [vmem:[#allocation2 + $0xca0] sm:$0xff]
    %v437 = vld [vmem:[#allocation2 + $0xca8] sm:$0xff]
    %v438 = vld [vmem:[#allocation2 + $0xcb0] sm:$0xff]
    %v439 = vld [vmem:[#allocation2 + $0xcb8] sm:$0xff]
    %v440 = vld [vmem:[#allocation2 + $0xcc0] sm:$0xff]
    %v441 = vld [vmem:[#allocation2 + $0xcc8] sm:$0xff]
    %v442 = vld [vmem:[#allocation2 + $0xcd0] sm:$0xff]
    %v443 = vld [vmem:[#allocation2 + $0xcd8] sm:$0xff]
    %v444 = vld [vmem:[#allocation2 + $0xce0] sm:$0xff]
    %v445 = vld [vmem:[#allocation2 + $0xce8] sm:$0xff]
    %v446 = vld [vmem:[#allocation2 + $0xcf0] sm:$0xff]
    %v447 = vld [vmem:[#allocation2 + $0xcf8] sm:$0xff]
    %v448 = vld [vmem:[#allocation2 + $0xd00] sm:$0xff]
    %v449 = vld [vmem:[#allocation2 + $0xd08] sm:$0xff]
    %v450 = vld [vmem:[#allocation2 + $0xd10] sm:$0xff]
    %v451 = vld [vmem:[#allocation2 + $0xd18] sm:$0xff]
    %v452 = vld [vmem:[#allocation2 + $0xd20] sm:$0xff]
    %v453 = vld [vmem:[#allocation2 + $0xd28] sm:$0xff]
    %v454 = vld [vmem:[#allocation2 + $0xd30] sm:$0xff]
    %v455 = vld [vmem:[#allocation2 + $0xd38] sm:$0xff]
    %v456 = vld [vmem:[#allocation2 + $0xd40] sm:$0xff]
    %v457 = vld [vmem:[#allocation2 + $0xd48] sm:$0xff]
    %v458 = vld [vmem:[#allocation2 + $0xd50] sm:$0xff]
    %v459 = vld [vmem:[#allocation2 + $0xd58] sm:$0xff]
    %v460 = vld [vmem:[#allocation2 + $0xd60] sm:$0xff]
    %v461 = vld [vmem:[#allocation2 + $0xd68] sm:$0xff]
    %v462 = vld [vmem:[#allocation2 + $0xd70] sm:$0xff]
    %v463 = vld [vmem:[#allocation2 + $0xd78] sm:$0xff]
    %v464 = vld [vmem:[%s0] sm:$0xf]
    %v465 = vld [vmem:[%s0 + $0x4] sm:$0xf]
    %v466 = vld [vmem:[%s0 + $0x8] sm:$0xf]
    %v467 = vld [vmem:[%s0 + $0xc] sm:$0xf]
    %v468 = vld [vmem:[%s0 + $0x10] sm:$0xf]
    %v469 = vld [vmem:[%s0 + $0x14] sm:$0xf]
    %v470 = vld [vmem:[%s0 + $0x18] sm:$0xf]
    %v471 = vld [vmem:[%s0 + $0x1c] sm:$0xf]
    %v472 = vld [vmem:[%s0 + $0x20] sm:$0xf]
    %v473 = vld [vmem:[%s0 + $0x24] sm:$0xf]
    %v474 = vld [vmem:[%s0 + $0x28] sm:$0xf]
    %v475 = vld [vmem:[%s0 + $0x2c] sm:$0xf]
    %v476 = vld [vmem:[%s0 + $0x30] sm:$0xf]
    %v477 = vld [vmem:[%s0 + $0x34] sm:$0xf]
    %v478 = vld [vmem:[%s0 + $0x38] sm:$0xf]
    %v479 = vld [vmem:[%s0 + $0x3c] sm:$0xf]
    %v480 = vld [vmem:[%s0 + $0x40] sm:$0xf]
    %v481 = vld [vmem:[%s0 + $0x44] sm:$0xf]
    %v482 = vld [vmem:[%s0 + $0x48] sm:$0xf]
    %v483 = vld [vmem:[%s0 + $0x4c] sm:$0xf]
    %v484 = vld [vmem:[%s0 + $0x50] sm:$0xf]
    %v485 = vld [vmem:[%s0 + $0x54] sm:$0xf]
    %v486 = vld [vmem:[%s0 + $0x58] sm:$0xf]
    %v487 = vld [vmem:[%s0 + $0x5c] sm:$0xf]
    %v488 = vld [vmem:[%s0 + $0x60] sm:$0xf]
    %v489 = vld [vmem:[%s0 + $0x64] sm:$0xf]
    %v490 = vld [vmem:[%s0 + $0x68] sm:$0xf]
    %v491 = vld [vmem:[%s0 + $0x6c] sm:$0xf]
    %v492 = vld [vmem:[%s0 + $0x70] sm:$0xf]
    %v493 = vld [vmem:[%s0 + $0x74] sm:$0xf]
    %v494 = vld [vmem:[%s0 + $0x78] sm:$0xf]
    %v495 = vld [vmem:[%s0 + $0x7c] sm:$0xf]
    %v496 = vld [vmem:[%s0 + $0x80] sm:$0xf]
    %v497 = vld [vmem:[%s0 + $0x84] sm:$0xf]
    %v498 = vld [vmem:[%s0 + $0x88] sm:$0xf]
    %v499 = vld [vmem:[%s0 + $0x8c] sm:$0xf]
    %v500 = vld [vmem:[%s0 + $0x90] sm:$0xf]
    %v501 = vld [vmem:[%s0 + $0x94] sm:$0xf]
    %v502 = vld [vmem:[%s0 + $0x98] sm:$0xf]
    %v503 = vld [vmem:[%s0 + $0x9c] sm:$0xf]
    %v504 = vld [vmem:[%s0 + $0xa0] sm:$0xf]
    %v505 = vld [vmem:[%s0 + $0xa4] sm:$0xf]
    %v506 = vld [vmem:[%s0 + $0xa8] sm:$0xf]
    %v507 = vld [vmem:[%s0 + $0xac] sm:$0xf]
    %v508 = vld [vmem:[%s0 + $0xb0] sm:$0xf]
    %v509 = vld [vmem:[%s0 + $0xb4] sm:$0xf]
    %v510 = vld [vmem:[%s0 + $0xb8] sm:$0xf]
    %v511 = vld [vmem:[%s0 + $0xbc] sm:$0xf]
    %v512 = vld [vmem:[%s0 + $0xc0] sm:$0xf]
    %v513 = vld [vmem:[%s0 + $0xc4] sm:$0xf]
    %v514 = vld [vmem:[%s0 + $0xc8] sm:$0xf]
    %v515 = vld [vmem:[%s0 + $0xcc] sm:$0xf]
    %v516 = vld [vmem:[%s0 + $0xd0] sm:$0xf]
    %v517 = vld [vmem:[%s0 + $0xd4] sm:$0xf]
    %v518 = vld [vmem:[%s0 + $0xd8] sm:$0xf]
    %v519 = vld [vmem:[%s0 + $0xdc] sm:$0xf]
    %v520 = vld [vmem:[%s0 + $0xe0] sm:$0xf]
    %v521 = vld [vmem:[%s0 + $0xe4] sm:$0xf]
    %v522 = vld [vmem:[%s0 + $0xe8] sm:$0xf]
    %v523 = vld [vmem:[%s0 + $0xec] sm:$0xf]
    %v524 = vld [vmem:[%s0 + $0xf0] sm:$0xf]
    %v525 = vld [vmem:[%s0 + $0xf4] sm:$0xf]
    %v526 = vld [vmem:[%s0 + $0xf8] sm:$0xf]
    %v527 = vld [vmem:[%s0 + $0xfc] sm:$0xf]
    %v528 = vld [vmem:[%s0 + $0x100] sm:$0xf]
    %v529 = vld [vmem:[%s0 + $0x104] sm:$0xf]
    %v530 = vld [vmem:[%s0 + $0x108] sm:$0xf]
    %v531 = vld [vmem:[%s0 + $0x10c] sm:$0xf]
    %v532 = vld [vmem:[%s0 + $0x110] sm:$0xf]
    %v533 = vld [vmem:[%s0 + $0x114] sm:$0xf]
    %v534 = vld [vmem:[%s0 + $0x118] sm:$0xf]
    %v535 = vld [vmem:[%s0 + $0x11c] sm:$0xf]
    %v536 = vld [vmem:[%s0 + $0x120] sm:$0xf]
    %v537 = vld [vmem:[%s0 + $0x124] sm:$0xf]
    %v538 = vld [vmem:[%s0 + $0x128] sm:$0xf]
    %v539 = vld [vmem:[%s0 + $0x12c] sm:$0xf]
    %v540 = vld [vmem:[%s0 + $0x130] sm:$0xf]
    %v541 = vld [vmem:[%s0 + $0x134] sm:$0xf]
    %v542 = vld [vmem:[%s0 + $0x138] sm:$0xf]
    %v543 = vld [vmem:[%s0 + $0x13c] sm:$0xf]
    %v544 = vld [vmem:[%s0 + $0x140] sm:$0xf]
    %v545 = vld [vmem:[%s0 + $0x144] sm:$0xf]
    %v546 = vld [vmem:[%s0 + $0x148] sm:$0xf]
    %v547 = vld [vmem:[%s0 + $0x14c] sm:$0xf]
    %v548 = vld [vmem:[%s0 + $0x150] sm:$0xf]
    %v549 = vld [vmem:[%s0 + $0x154] sm:$0xf]
    %v550 = vld [vmem:[%s0 + $0x158] sm:$0xf]
    %v551 = vld [vmem:[%s0 + $0x15c] sm:$0xf]
    %v552 = vld [vmem:[%s0 + $0x160] sm:$0xf]
    %v553 = vld [vmem:[%s0 + $0x164] sm:$0xf]
    %v554 = vld [vmem:[%s0 + $0x168] sm:$0xf]
    %v555 = vld [vmem:[%s0 + $0x16c] sm:$0xf]
    %v556 = vld [vmem:[%s0 + $0x170] sm:$0xf]
    %v557 = vld [vmem:[%s0 + $0x174] sm:$0xf]
    %v558 = vld [vmem:[%s0 + $0x178] sm:$0xf]
    %v559 = vld [vmem:[%s0 + $0x17c] sm:$0xf]
    %v560 = vld [vmem:[%s0 + $0x180] sm:$0xf]
    %v561 = vld [vmem:[%s0 + $0x184] sm:$0xf]
    %v562 = vld [vmem:[%s0 + $0x188] sm:$0xf]
    %v563 = vld [vmem:[%s0 + $0x18c] sm:$0xf]
    %v564 = vld [vmem:[%s0 + $0x190] sm:$0xf]
    %v565 = vld [vmem:[%s0 + $0x194] sm:$0xf]
    %v566 = vld [vmem:[%s0 + $0x198] sm:$0xf]
    %v567 = vld [vmem:[%s0 + $0x19c] sm:$0xf]
    %v568 = vld [vmem:[%s0 + $0x1a0] sm:$0xf]
    %v569 = vld [vmem:[%s0 + $0x1a4] sm:$0xf]
    %v570 = vld [vmem:[%s0 + $0x1a8] sm:$0xf]
    %v571 = vld [vmem:[%s0 + $0x1ac] sm:$0xf]
    %v572 = vld [vmem:[%s0 + $0x1b0] sm:$0xf]
    %v573 = vld [vmem:[%s0 + $0x1b4] sm:$0xf]
    %v574 = vld [vmem:[%s0 + $0x1b8] sm:$0xf]
    %v575 = vld [vmem:[%s0 + $0x1bc] sm:$0xf]
    %v576 = vld [vmem:[%s0 + $0x1c0] sm:$0xf]
    %v577 = vld [vmem:[%s0 + $0x1c4] sm:$0xf]
    %v578 = vld [vmem:[%s0 + $0x1c8] sm:$0xf]
    %v579 = vld [vmem:[%s0 + $0x1cc] sm:$0xf]
    %v580 = vld [vmem:[%s0 + $0x1d0] sm:$0xf]
    %v581 = vld [vmem:[%s0 + $0x1d4] sm:$0xf]
    %v582 = vld [vmem:[%s0 + $0x1d8] sm:$0xf]
    %v583 = vld [vmem:[%s0 + $0x1dc] sm:$0xf]
    %v584 = vld [vmem:[%s0 + $0x1e0] sm:$0xf]
    %v585 = vld [vmem:[%s0 + $0x1e4] sm:$0xf]
    %v586 = vld [vmem:[%s0 + $0x1e8] sm:$0xf]
    %v587 = vld [vmem:[%s0 + $0x1ec] sm:$0xf]
    %v588 = vld [vmem:[%s0 + $0x1f0] sm:$0xf]
    %v589 = vld [vmem:[%s0 + $0x1f4] sm:$0xf]
    %v590 = vld [vmem:[%s0 + $0x1f8] sm:$0xf]
    %v591 = vld [vmem:[%s0 + $0x1fc] sm:$0xf]
    %v592 = vld [vmem:[%s0 + $0x200] sm:$0xf]
    %v593 = vld [vmem:[%s0 + $0x204] sm:$0xf]
    %v594 = vld [vmem:[%s0 + $0x208] sm:$0xf]
    %v595 = vld [vmem:[%s0 + $0x20c] sm:$0xf]
    %v596 = vld [vmem:[%s0 + $0x210] sm:$0xf]
    %v597 = vld [vmem:[%s0 + $0x214] sm:$0xf]
    %v598 = vld [vmem:[%s0 + $0x218] sm:$0xf]
    %v599 = vld [vmem:[%s0 + $0x21c] sm:$0xf]
    %v600 = vld [vmem:[%s0 + $0x220] sm:$0xf]
    %v601 = vld [vmem:[%s0 + $0x224] sm:$0xf]
    %v602 = vld [vmem:[%s0 + $0x228] sm:$0xf]
    %v603 = vld [vmem:[%s0 + $0x22c] sm:$0xf]
    %v604 = vld [vmem:[%s0 + $0x230] sm:$0xf]
    %v605 = vld [vmem:[%s0 + $0x234] sm:$0xf]
    %v606 = vld [vmem:[%s0 + $0x238] sm:$0xf]
    %v607 = vld [vmem:[%s0 + $0x23c] sm:$0xf]
    %v608 = vld [vmem:[%s0 + $0x240] sm:$0xf]
    %v609 = vld [vmem:[%s0 + $0x244] sm:$0xf]
    %v610 = vld [vmem:[%s0 + $0x248] sm:$0xf]
    %v611 = vld [vmem:[%s0 + $0x24c] sm:$0xf]
    %v612 = vld [vmem:[%s0 + $0x250] sm:$0xf]
    %v613 = vld [vmem:[%s0 + $0x254] sm:$0xf]
    %v614 = vld [vmem:[%s0 + $0x258] sm:$0xf]
    %v615 = vld [vmem:[%s0 + $0x25c] sm:$0xf]
    %v616 = vld [vmem:[%s0 + $0x260] sm:$0xf]
    %v617 = vld [vmem:[%s0 + $0x264] sm:$0xf]
    %v618 = vld [vmem:[%s0 + $0x268] sm:$0xf]
    %v619 = vld [vmem:[%s0 + $0x26c] sm:$0xf]
    %v620 = vld [vmem:[%s0 + $0x270] sm:$0xf]
    %v621 = vld [vmem:[%s0 + $0x274] sm:$0xf]
    %v622 = vld [vmem:[%s0 + $0x278] sm:$0xf]
    %v623 = vld [vmem:[%s0 + $0x27c] sm:$0xf]
    %v624 = vld [vmem:[%s0 + $0x280] sm:$0xf]
    %v625 = vld [vmem:[%s0 + $0x284] sm:$0xf]
    %v626 = vld [vmem:[%s0 + $0x288] sm:$0xf]
    %v627 = vld [vmem:[%s0 + $0x28c] sm:$0xf]
    %v628 = vld [vmem:[%s0 + $0x290] sm:$0xf]
    %v629 = vld [vmem:[%s0 + $0x294] sm:$0xf]
    %v630 = vld [vmem:[%s0 + $0x298] sm:$0xf]
    %v631 = vld [vmem:[%s0 + $0x29c] sm:$0xf]
    %v632 = vld [vmem:[%s0 + $0x2a0] sm:$0xf]
    %v633 = vld [vmem:[%s0 + $0x2a4] sm:$0xf]
    %v634 = vld [vmem:[%s0 + $0x2a8] sm:$0xf]
    %v635 = vld [vmem:[%s0 + $0x2ac] sm:$0xf]
    %v636 = vld [vmem:[%s0 + $0x2b0] sm:$0xf]
    %v637 = vld [vmem:[%s0 + $0x2b4] sm:$0xf]
    %v638 = vld [vmem:[%s0 + $0x2b8] sm:$0xf]
    %v639 = vld [vmem:[%s0 + $0x2bc] sm:$0xf]
    %v640 = vld [vmem:[%s0 + $0x2c0] sm:$0xf]
    %v641 = vld [vmem:[%s0 + $0x2c4] sm:$0xf]
    %v642 = vld [vmem:[%s0 + $0x2c8] sm:$0xf]
    %v643 = vld [vmem:[%s0 + $0x2cc] sm:$0xf]
    %v644 = vld [vmem:[%s0 + $0x2d0] sm:$0xf]
    %v645 = vld [vmem:[%s0 + $0x2d4] sm:$0xf]
    %v646 = vld [vmem:[%s0 + $0x2d8] sm:$0xf]
    %v647 = vld [vmem:[%s0 + $0x2dc] sm:$0xf]
    %v648 = vld [vmem:[%s0 + $0x2e0] sm:$0xf]
    %v649 = vld [vmem:[%s0 + $0x2e4] sm:$0xf]
    %v650 = vld [vmem:[%s0 + $0x2e8] sm:$0xf]
    %v651 = vld [vmem:[%s0 + $0x2ec] sm:$0xf]
    %v652 = vld [vmem:[%s0 + $0x2f0] sm:$0xf]
    %v653 = vld [vmem:[%s0 + $0x2f4] sm:$0xf]
    %v654 = vld [vmem:[%s0 + $0x2f8] sm:$0xf]
    %v655 = vld [vmem:[%s0 + $0x2fc] sm:$0xf]
    %v656 = vld [vmem:[%s0 + $0x300] sm:$0xf]
    %v657 = vld [vmem:[%s0 + $0x304] sm:$0xf]
    %v658 = vld [vmem:[%s0 + $0x308] sm:$0xf]
    %v659 = vld [vmem:[%s0 + $0x30c] sm:$0xf]
    %v660 = vld [vmem:[%s0 + $0x310] sm:$0xf]
    %v661 = vld [vmem:[%s0 + $0x314] sm:$0xf]
    %v662 = vld [vmem:[%s0 + $0x318] sm:$0xf]
    %v663 = vld [vmem:[%s0 + $0x31c] sm:$0xf]
    %v664 = vld [vmem:[%s0 + $0x320] sm:$0xf]
    %v665 = vld [vmem:[%s0 + $0x324] sm:$0xf]
    %v666 = vld [vmem:[%s0 + $0x328] sm:$0xf]
    %v667 = vld [vmem:[%s0 + $0x32c] sm:$0xf]
    %v668 = vld [vmem:[%s0 + $0x330] sm:$0xf]
    %v669 = vld [vmem:[%s0 + $0x334] sm:$0xf]
    %v670 = vld [vmem:[%s0 + $0x338] sm:$0xf]
    %v671 = vld [vmem:[%s0 + $0x33c] sm:$0xf]
    %v672 = vld [vmem:[%s0 + $0x340] sm:$0xf]
    %v673 = vld [vmem:[%s0 + $0x344] sm:$0xf]
    %v674 = vld [vmem:[%s0 + $0x348] sm:$0xf]
    %v675 = vld [vmem:[%s0 + $0x34c] sm:$0xf]
    %v676 = vld [vmem:[%s0 + $0x350] sm:$0xf]
    %v677 = vld [vmem:[%s0 + $0x354] sm:$0xf]
    %v678 = vld [vmem:[%s0 + $0x358] sm:$0xf]
    %v679 = vld [vmem:[%s0 + $0x35c] sm:$0xf]
    %v680 = vld [vmem:[%s0 + $0x360] sm:$0xf]
    %v681 = vld [vmem:[%s0 + $0x364] sm:$0xf]
    %v682 = vld [vmem:[%s0 + $0x368] sm:$0xf]
    %v683 = vld [vmem:[%s0 + $0x36c] sm:$0xf]
    %v684 = vld [vmem:[%s0 + $0x370] sm:$0xf]
    %v685 = vld [vmem:[%s0 + $0x374] sm:$0xf]
    %v686 = vld [vmem:[%s0 + $0x378] sm:$0xf]
    %v687 = vld [vmem:[%s0 + $0x37c] sm:$0xf]
    %v688 = vld [vmem:[%s0 + $0x380] sm:$0xf]
    %v689 = vld [vmem:[%s0 + $0x384] sm:$0xf]
    %v690 = vld [vmem:[%s0 + $0x388] sm:$0xf]
    %v691 = vld [vmem:[%s0 + $0x38c] sm:$0xf]
    %v692 = vld [vmem:[%s0 + $0x390] sm:$0xf]
    %v693 = vld [vmem:[%s0 + $0x394] sm:$0xf]
    %v694 = vld [vmem:[%s0 + $0x398] sm:$0xf]
    %v695 = vld [vmem:[%s0 + $0x39c] sm:$0xf]
    %v696 = vld [vmem:[%s0 + $0x3a0] sm:$0xf]
    %v697 = vld [vmem:[%s0 + $0x3a4] sm:$0xf]
    %v698 = vld [vmem:[%s0 + $0x3a8] sm:$0xf]
    %v699 = vld [vmem:[%s0 + $0x3ac] sm:$0xf]
    %v700 = vld [vmem:[%s0 + $0x3b0] sm:$0xf]
    %v701 = vld [vmem:[%s0 + $0x3b4] sm:$0xf]
    %v702 = vld [vmem:[%s0 + $0x3b8] sm:$0xf]
    %v703 = vld [vmem:[%s0 + $0x3bc] sm:$0xf]
    %v704 = vld [vmem:[%s0 + $0x3c0] sm:$0xf]
    %v705 = vld [vmem:[%s0 + $0x3c4] sm:$0xf]
    %v706 = vld [vmem:[%s0 + $0x3c8] sm:$0xf]
    %v707 = vld [vmem:[%s0 + $0x3cc] sm:$0xf]
    %v708 = vld [vmem:[%s0 + $0x3d0] sm:$0xf]
    %v709 = vld [vmem:[%s0 + $0x3d4] sm:$0xf]
    %v710 = vld [vmem:[%s0 + $0x3d8] sm:$0xf]
    %v711 = vld [vmem:[%s0 + $0x3dc] sm:$0xf]
    %v712 = vld [vmem:[%s0 + $0x3e0] sm:$0xf]
    %v713 = vld [vmem:[%s0 + $0x3e4] sm:$0xf]
    %v714 = vld [vmem:[%s0 + $0x3e8] sm:$0xf]
    %v715 = vld [vmem:[%s0 + $0x3ec] sm:$0xf]
    %v716 = vld [vmem:[%s0 + $0x3f0] sm:$0xf]
    %v717 = vld [vmem:[%s0 + $0x3f4] sm:$0xf]
    %v718 = vld [vmem:[%s0 + $0x3f8] sm:$0xf]
    %v719 = vld [vmem:[%s0 + $0x3fc] sm:$0xf]
    %v720 = vld [vmem:[%s0 + $0x400] sm:$0xf]
    %v721 = vld [vmem:[%s0 + $0x404] sm:$0xf]
    %v722 = vld [vmem:[%s0 + $0x408] sm:$0xf]
    %v723 = vld [vmem:[%s0 + $0x40c] sm:$0xf]
    %v724 = vld [vmem:[%s0 + $0x410] sm:$0xf]
    %v725 = vld [vmem:[%s0 + $0x414] sm:$0xf]
    %v726 = vld [vmem:[%s0 + $0x418] sm:$0xf]
    %v727 = vld [vmem:[%s0 + $0x41c] sm:$0xf]
    %v728 = vld [vmem:[%s0 + $0x420] sm:$0xf]
    %v729 = vld [vmem:[%s0 + $0x424] sm:$0xf]
    %v730 = vld [vmem:[%s0 + $0x428] sm:$0xf]
    %v731 = vld [vmem:[%s0 + $0x42c] sm:$0xf]
    %v732 = vld [vmem:[%s0 + $0x430] sm:$0xf]
    %v733 = vld [vmem:[%s0 + $0x434] sm:$0xf]
    %v734 = vld [vmem:[%s0 + $0x438] sm:$0xf]
    %v735 = vld [vmem:[%s0 + $0x43c] sm:$0xf]
    %v736 = vld [vmem:[%s0 + $0x440] sm:$0xf]
    %v737 = vld [vmem:[%s0 + $0x444] sm:$0xf]
    %v738 = vld [vmem:[%s0 + $0x448] sm:$0xf]
    %v739 = vld [vmem:[%s0 + $0x44c] sm:$0xf]
    %v740 = vld [vmem:[%s0 + $0x450] sm:$0xf]
    %v741 = vld [vmem:[%s0 + $0x454] sm:$0xf]
    %v742 = vld [vmem:[%s0 + $0x458] sm:$0xf]
    %v743 = vld [vmem:[%s0 + $0x45c] sm:$0xf]
    %v744 = vld [vmem:[%s0 + $0x460] sm:$0xf]
    %v745 = vld [vmem:[%s0 + $0x464] sm:$0xf]
    %v746 = vld [vmem:[%s0 + $0x468] sm:$0xf]
    %v747 = vld [vmem:[%s0 + $0x46c] sm:$0xf]
    %v748 = vld [vmem:[%s0 + $0x470] sm:$0xf]
    %v749 = vld [vmem:[%s0 + $0x474] sm:$0xf]
    %v750 = vld [vmem:[%s0 + $0x478] sm:$0xf]
    %v751 = vld [vmem:[%s0 + $0x47c] sm:$0xf]
    %v1184 = vunpack.c.l.b16 %v32
    %v1185 = vunpack.c.h.b16 %v32
    %v1186 = vunpack.c.l.b16 %v33
    %v1187 = vunpack.c.h.b16 %v33
    %v1188 = vunpack.c.l.b16 %v34
    %v1189 = vunpack.c.h.b16 %v34
    %v1190 = vunpack.c.l.b16 %v35
    %v1191 = vunpack.c.h.b16 %v35
    %v1192 = vunpack.c.l.b16 %v36
    %v1193 = vunpack.c.h.b16 %v36
    %v1194 = vunpack.c.l.b16 %v37
    %v1195 = vunpack.c.h.b16 %v37
    %v1196 = vunpack.c.l.b16 %v38
    %v1197 = vunpack.c.h.b16 %v38
    %v1198 = vunpack.c.l.b16 %v39
    %v1199 = vunpack.c.h.b16 %v39
    %v1200 = vunpack.c.l.b16 %v40
    %v1201 = vunpack.c.h.b16 %v40
    %v1202 = vunpack.c.l.b16 %v41
    %v1203 = vunpack.c.h.b16 %v41
    %v1204 = vunpack.c.l.b16 %v42
    %v1205 = vunpack.c.h.b16 %v42
    %v1206 = vunpack.c.l.b16 %v43
    %v1207 = vunpack.c.h.b16 %v43
    %v1208 = vunpack.c.l.b16 %v44
    %v1209 = vunpack.c.h.b16 %v44
    %v1210 = vunpack.c.l.b16 %v45
    %v1211 = vunpack.c.h.b16 %v45
    %v1212 = vunpack.c.l.b16 %v46
    %v1213 = vunpack.c.h.b16 %v46
    %v1214 = vunpack.c.l.b16 %v47
    %v1215 = vunpack.c.h.b16 %v47
    %v1216 = vunpack.c.l.b16 %v48
    %v1217 = vunpack.c.h.b16 %v48
    %v1218 = vunpack.c.l.b16 %v49
    %v1219 = vunpack.c.h.b16 %v49
    %v1220 = vunpack.c.l.b16 %v50
    %v1221 = vunpack.c.h.b16 %v50
    %v1222 = vunpack.c.l.b16 %v51
    %v1223 = vunpack.c.h.b16 %v51
    %v1224 = vunpack.c.l.b16 %v52
    %v1225 = vunpack.c.h.b16 %v52
    %v1226 = vunpack.c.l.b16 %v53
    %v1227 = vunpack.c.h.b16 %v53
    %v1228 = vunpack.c.l.b16 %v54
    %v1229 = vunpack.c.h.b16 %v54
    %v1230 = vunpack.c.l.b16 %v55
    %v1231 = vunpack.c.h.b16 %v55
    %v1232 = vunpack.c.l.b16 %v56
    %v1233 = vunpack.c.h.b16 %v56
    %v1234 = vunpack.c.l.b16 %v57
    %v1235 = vunpack.c.h.b16 %v57
    %v1236 = vunpack.c.l.b16 %v58
    %v1237 = vunpack.c.h.b16 %v58
    %v1238 = vunpack.c.l.b16 %v59
    %v1239 = vunpack.c.h.b16 %v59
    %v1240 = vunpack.c.l.b16 %v60
    %v1241 = vunpack.c.h.b16 %v60
    %v1242 = vunpack.c.l.b16 %v61
    %v1243 = vunpack.c.h.b16 %v61
    %v1244 = vunpack.c.l.b16 %v62
    %v1245 = vunpack.c.h.b16 %v62
    %v1246 = vunpack.c.l.b16 %v63
    %v1247 = vunpack.c.h.b16 %v63
    %v1248 = vunpack.c.l.b16 %v64
    %v1249 = vunpack.c.h.b16 %v64
    %v1250 = vunpack.c.l.b16 %v65
    %v1251 = vunpack.c.h.b16 %v65
    %v1252 = vunpack.c.l.b16 %v66
    %v1253 = vunpack.c.h.b16 %v66
    %v1254 = vunpack.c.l.b16 %v67
    %v1255 = vunpack.c.h.b16 %v67
    %v1256 = vunpack.c.l.b16 %v68
    %v1257 = vunpack.c.h.b16 %v68
    %v1258 = vunpack.c.l.b16 %v69
    %v1259 = vunpack.c.h.b16 %v69
    %v1260 = vunpack.c.l.b16 %v70
    %v1261 = vunpack.c.h.b16 %v70
    %v1262 = vunpack.c.l.b16 %v71
    %v1263 = vunpack.c.h.b16 %v71
    %v1264 = vunpack.c.l.b16 %v72
    %v1265 = vunpack.c.h.b16 %v72
    %v1266 = vunpack.c.l.b16 %v73
    %v1267 = vunpack.c.h.b16 %v73
    %v1268 = vunpack.c.l.b16 %v74
    %v1269 = vunpack.c.h.b16 %v74
    %v1270 = vunpack.c.l.b16 %v75
    %v1271 = vunpack.c.h.b16 %v75
    %v1272 = vunpack.c.l.b16 %v76
    %v1273 = vunpack.c.h.b16 %v76
    %v1274 = vunpack.c.l.b16 %v77
    %v1275 = vunpack.c.h.b16 %v77
    %v1276 = vunpack.c.l.b16 %v78
    %v1277 = vunpack.c.h.b16 %v78
    %v1278 = vunpack.c.l.b16 %v79
    %v1279 = vunpack.c.h.b16 %v79
    %v1280 = vunpack.c.l.b16 %v80
    %v1281 = vunpack.c.h.b16 %v80
    %v1282 = vunpack.c.l.b16 %v81
    %v1283 = vunpack.c.h.b16 %v81
    %v1284 = vunpack.c.l.b16 %v82
    %v1285 = vunpack.c.h.b16 %v82
    %v1286 = vunpack.c.l.b16 %v83
    %v1287 = vunpack.c.h.b16 %v83
    %v1288 = vunpack.c.l.b16 %v84
    %v1289 = vunpack.c.h.b16 %v84
    %v1290 = vunpack.c.l.b16 %v85
    %v1291 = vunpack.c.h.b16 %v85
    %v1292 = vunpack.c.l.b16 %v86
    %v1293 = vunpack.c.h.b16 %v86
    %v1294 = vunpack.c.l.b16 %v87
    %v1295 = vunpack.c.h.b16 %v87
    %v1296 = vunpack.c.l.b16 %v88
    %v1297 = vunpack.c.h.b16 %v88
    %v1298 = vunpack.c.l.b16 %v89
    %v1299 = vunpack.c.h.b16 %v89
    %v1300 = vunpack.c.l.b16 %v90
    %v1301 = vunpack.c.h.b16 %v90
    %v1302 = vunpack.c.l.b16 %v91
    %v1303 = vunpack.c.h.b16 %v91
    %v1304 = vunpack.c.l.b16 %v92
    %v1305 = vunpack.c.h.b16 %v92
    %v1306 = vunpack.c.l.b16 %v93
    %v1307 = vunpack.c.h.b16 %v93
    %v1308 = vunpack.c.l.b16 %v94
    %v1309 = vunpack.c.h.b16 %v94
    %v1310 = vunpack.c.l.b16 %v95
    %v1311 = vunpack.c.h.b16 %v95
    %v1312 = vunpack.c.l.b16 %v96
    %v1313 = vunpack.c.h.b16 %v96
    %v1314 = vunpack.c.l.b16 %v97
    %v1315 = vunpack.c.h.b16 %v97
    %v1316 = vunpack.c.l.b16 %v98
    %v1317 = vunpack.c.h.b16 %v98
    %v1318 = vunpack.c.l.b16 %v99
    %v1319 = vunpack.c.h.b16 %v99
    %v1320 = vunpack.c.l.b16 %v100
    %v1321 = vunpack.c.h.b16 %v100
    %v1322 = vunpack.c.l.b16 %v101
    %v1323 = vunpack.c.h.b16 %v101
    %v1324 = vunpack.c.l.b16 %v102
    %v1325 = vunpack.c.h.b16 %v102
    %v1326 = vunpack.c.l.b16 %v103
    %v1327 = vunpack.c.h.b16 %v103
    %v1328 = vunpack.c.l.b16 %v104
    %v1329 = vunpack.c.h.b16 %v104
    %v1330 = vunpack.c.l.b16 %v105
    %v1331 = vunpack.c.h.b16 %v105
    %v1332 = vunpack.c.l.b16 %v106
    %v1333 = vunpack.c.h.b16 %v106
    %v1334 = vunpack.c.l.b16 %v107
    %v1335 = vunpack.c.h.b16 %v107
    %v1336 = vunpack.c.l.b16 %v108
    %v1337 = vunpack.c.h.b16 %v108
    %v1338 = vunpack.c.l.b16 %v109
    %v1339 = vunpack.c.h.b16 %v109
    %v1340 = vunpack.c.l.b16 %v110
    %v1341 = vunpack.c.h.b16 %v110
    %v1342 = vunpack.c.l.b16 %v111
    %v1343 = vunpack.c.h.b16 %v111
    %v1344 = vunpack.c.l.b16 %v112
    %v1345 = vunpack.c.h.b16 %v112
    %v1346 = vunpack.c.l.b16 %v113
    %v1347 = vunpack.c.h.b16 %v113
    %v1348 = vunpack.c.l.b16 %v114
    %v1349 = vunpack.c.h.b16 %v114
    %v1350 = vunpack.c.l.b16 %v115
    %v1351 = vunpack.c.h.b16 %v115
    %v1352 = vunpack.c.l.b16 %v116
    %v1353 = vunpack.c.h.b16 %v116
    %v1354 = vunpack.c.l.b16 %v117
    %v1355 = vunpack.c.h.b16 %v117
    %v1356 = vunpack.c.l.b16 %v118
    %v1357 = vunpack.c.h.b16 %v118
    %v1358 = vunpack.c.l.b16 %v119
    %v1359 = vunpack.c.h.b16 %v119
    %v1360 = vunpack.c.l.b16 %v120
    %v1361 = vunpack.c.h.b16 %v120
    %v1362 = vunpack.c.l.b16 %v121
    %v1363 = vunpack.c.h.b16 %v121
    %v1364 = vunpack.c.l.b16 %v122
    %v1365 = vunpack.c.h.b16 %v122
    %v1366 = vunpack.c.l.b16 %v123
    %v1367 = vunpack.c.h.b16 %v123
    %v1368 = vunpack.c.l.b16 %v124
    %v1369 = vunpack.c.h.b16 %v124
    %v1370 = vunpack.c.l.b16 %v125
    %v1371 = vunpack.c.h.b16 %v125
    %v1372 = vunpack.c.l.b16 %v126
    %v1373 = vunpack.c.h.b16 %v126
    %v1374 = vunpack.c.l.b16 %v127
    %v1375 = vunpack.c.h.b16 %v127
    %v1376 = vunpack.c.l.b16 %v128
    %v1377 = vunpack.c.h.b16 %v128
    %v1378 = vunpack.c.l.b16 %v129
    %v1379 = vunpack.c.h.b16 %v129
    %v1380 = vunpack.c.l.b16 %v130
    %v1381 = vunpack.c.h.b16 %v130
    %v1382 = vunpack.c.l.b16 %v131
    %v1383 = vunpack.c.h.b16 %v131
    %v1384 = vunpack.c.l.b16 %v132
    %v1385 = vunpack.c.h.b16 %v132
    %v1386 = vunpack.c.l.b16 %v133
    %v1387 = vunpack.c.h.b16 %v133
    %v1388 = vunpack.c.l.b16 %v134
    %v1389 = vunpack.c.h.b16 %v134
    %v1390 = vunpack.c.l.b16 %v135
    %v1391 = vunpack.c.h.b16 %v135
    %v1392 = vunpack.c.l.b16 %v136
    %v1393 = vunpack.c.h.b16 %v136
    %v1394 = vunpack.c.l.b16 %v137
    %v1395 = vunpack.c.h.b16 %v137
    %v1396 = vunpack.c.l.b16 %v138
    %v1397 = vunpack.c.h.b16 %v138
    %v1398 = vunpack.c.l.b16 %v139
    %v1399 = vunpack.c.h.b16 %v139
    %v1400 = vunpack.c.l.b16 %v140
    %v1401 = vunpack.c.h.b16 %v140
    %v1402 = vunpack.c.l.b16 %v141
    %v1403 = vunpack.c.h.b16 %v141
    %v1404 = vunpack.c.l.b16 %v142
    %v1405 = vunpack.c.h.b16 %v142
    %v1406 = vunpack.c.l.b16 %v143
    %v1407 = vunpack.c.h.b16 %v143
    %v1408 = vunpack.c.l.b16 %v144
    %v1409 = vunpack.c.h.b16 %v144
    %v1410 = vunpack.c.l.b16 %v145
    %v1411 = vunpack.c.h.b16 %v145
    %v1412 = vunpack.c.l.b16 %v146
    %v1413 = vunpack.c.h.b16 %v146
    %v1414 = vunpack.c.l.b16 %v147
    %v1415 = vunpack.c.h.b16 %v147
    %v1416 = vunpack.c.l.b16 %v148
    %v1417 = vunpack.c.h.b16 %v148
    %v1418 = vunpack.c.l.b16 %v149
    %v1419 = vunpack.c.h.b16 %v149
    %v1420 = vunpack.c.l.b16 %v150
    %v1421 = vunpack.c.h.b16 %v150
    %v1422 = vunpack.c.l.b16 %v151
    %v1423 = vunpack.c.h.b16 %v151
    %v1424 = vunpack.c.l.b16 %v152
    %v1425 = vunpack.c.h.b16 %v152
    %v1426 = vunpack.c.l.b16 %v153
    %v1427 = vunpack.c.h.b16 %v153
    %v1428 = vunpack.c.l.b16 %v154
    %v1429 = vunpack.c.h.b16 %v154
    %v1430 = vunpack.c.l.b16 %v155
    %v1431 = vunpack.c.h.b16 %v155
    %v1432 = vunpack.c.l.b16 %v156
    %v1433 = vunpack.c.h.b16 %v156
    %v1434 = vunpack.c.l.b16 %v157
    %v1435 = vunpack.c.h.b16 %v157
    %v1436 = vunpack.c.l.b16 %v158
    %v1437 = vunpack.c.h.b16 %v158
    %v1438 = vunpack.c.l.b16 %v159
    %v1439 = vunpack.c.h.b16 %v159
    %v1440 = vunpack.c.l.b16 %v160
    %v1441 = vunpack.c.h.b16 %v160
    %v1442 = vunpack.c.l.b16 %v161
    %v1443 = vunpack.c.h.b16 %v161
    %v1444 = vunpack.c.l.b16 %v162
    %v1445 = vunpack.c.h.b16 %v162
    %v1446 = vunpack.c.l.b16 %v163
    %v1447 = vunpack.c.h.b16 %v163
    %v1448 = vunpack.c.l.b16 %v164
    %v1449 = vunpack.c.h.b16 %v164
    %v1450 = vunpack.c.l.b16 %v165
    %v1451 = vunpack.c.h.b16 %v165
    %v1452 = vunpack.c.l.b16 %v166
    %v1453 = vunpack.c.h.b16 %v166
    %v1454 = vunpack.c.l.b16 %v167
    %v1455 = vunpack.c.h.b16 %v167
    %v1456 = vunpack.c.l.b16 %v168
    %v1457 = vunpack.c.h.b16 %v168
    %v1458 = vunpack.c.l.b16 %v169
    %v1459 = vunpack.c.h.b16 %v169
    %v1460 = vunpack.c.l.b16 %v170
    %v1461 = vunpack.c.h.b16 %v170
    %v1462 = vunpack.c.l.b16 %v171
    %v1463 = vunpack.c.h.b16 %v171
    %v1464 = vunpack.c.l.b16 %v172
    %v1465 = vunpack.c.h.b16 %v172
    %v1466 = vunpack.c.l.b16 %v173
    %v1467 = vunpack.c.h.b16 %v173
    %v1468 = vunpack.c.l.b16 %v174
    %v1469 = vunpack.c.h.b16 %v174
    %v1470 = vunpack.c.l.b16 %v175
    %v1471 = vunpack.c.h.b16 %v175
    %v1472 = vunpack.c.l.b16 %v176
    %v1473 = vunpack.c.h.b16 %v176
    %v1474 = vunpack.c.l.b16 %v177
    %v1475 = vunpack.c.h.b16 %v177
    %v1476 = vunpack.c.l.b16 %v178
    %v1477 = vunpack.c.h.b16 %v178
    %v1478 = vunpack.c.l.b16 %v179
    %v1479 = vunpack.c.h.b16 %v179
    %v1480 = vunpack.c.l.b16 %v180
    %v1481 = vunpack.c.h.b16 %v180
    %v1482 = vunpack.c.l.b16 %v181
    %v1483 = vunpack.c.h.b16 %v181
    %v1484 = vunpack.c.l.b16 %v182
    %v1485 = vunpack.c.h.b16 %v182
    %v1486 = vunpack.c.l.b16 %v183
    %v1487 = vunpack.c.h.b16 %v183
    %v1488 = vunpack.c.l.b16 %v184
    %v1489 = vunpack.c.h.b16 %v184
    %v1490 = vunpack.c.l.b16 %v185
    %v1491 = vunpack.c.h.b16 %v185
    %v1492 = vunpack.c.l.b16 %v186
    %v1493 = vunpack.c.h.b16 %v186
    %v1494 = vunpack.c.l.b16 %v187
    %v1495 = vunpack.c.h.b16 %v187
    %v1496 = vunpack.c.l.b16 %v188
    %v1497 = vunpack.c.h.b16 %v188
    %v1498 = vunpack.c.l.b16 %v189
    %v1499 = vunpack.c.h.b16 %v189
    %v1500 = vunpack.c.l.b16 %v190
    %v1501 = vunpack.c.h.b16 %v190
    %v1502 = vunpack.c.l.b16 %v191
    %v1503 = vunpack.c.h.b16 %v191
    %v1504 = vunpack.c.l.b16 %v192
    %v1505 = vunpack.c.h.b16 %v192
    %v1506 = vunpack.c.l.b16 %v193
    %v1507 = vunpack.c.h.b16 %v193
    %v1508 = vunpack.c.l.b16 %v194
    %v1509 = vunpack.c.h.b16 %v194
    %v1510 = vunpack.c.l.b16 %v195
    %v1511 = vunpack.c.h.b16 %v195
    %v1512 = vunpack.c.l.b16 %v196
    %v1513 = vunpack.c.h.b16 %v196
    %v1514 = vunpack.c.l.b16 %v197
    %v1515 = vunpack.c.h.b16 %v197
    %v1516 = vunpack.c.l.b16 %v198
    %v1517 = vunpack.c.h.b16 %v198
    %v1518 = vunpack.c.l.b16 %v199
    %v1519 = vunpack.c.h.b16 %v199
    %v1520 = vunpack.c.l.b16 %v200
    %v1521 = vunpack.c.h.b16 %v200
    %v1522 = vunpack.c.l.b16 %v201
    %v1523 = vunpack.c.h.b16 %v201
    %v1524 = vunpack.c.l.b16 %v202
    %v1525 = vunpack.c.h.b16 %v202
    %v1526 = vunpack.c.l.b16 %v203
    %v1527 = vunpack.c.h.b16 %v203
    %v1528 = vunpack.c.l.b16 %v204
    %v1529 = vunpack.c.h.b16 %v204
    %v1530 = vunpack.c.l.b16 %v205
    %v1531 = vunpack.c.h.b16 %v205
    %v1532 = vunpack.c.l.b16 %v206
    %v1533 = vunpack.c.h.b16 %v206
    %v1534 = vunpack.c.l.b16 %v207
    %v1535 = vunpack.c.h.b16 %v207
    %v1536 = vunpack.c.l.b16 %v208
    %v1537 = vunpack.c.h.b16 %v208
    %v1538 = vunpack.c.l.b16 %v209
    %v1539 = vunpack.c.h.b16 %v209
    %v1540 = vunpack.c.l.b16 %v210
    %v1541 = vunpack.c.h.b16 %v210
    %v1542 = vunpack.c.l.b16 %v211
    %v1543 = vunpack.c.h.b16 %v211
    %v1544 = vunpack.c.l.b16 %v212
    %v1545 = vunpack.c.h.b16 %v212
    %v1546 = vunpack.c.l.b16 %v213
    %v1547 = vunpack.c.h.b16 %v213
    %v1548 = vunpack.c.l.b16 %v214
    %v1549 = vunpack.c.h.b16 %v214
    %v1550 = vunpack.c.l.b16 %v215
    %v1551 = vunpack.c.h.b16 %v215
    %v1552 = vunpack.c.l.b16 %v216
    %v1553 = vunpack.c.h.b16 %v216
    %v1554 = vunpack.c.l.b16 %v217
    %v1555 = vunpack.c.h.b16 %v217
    %v1556 = vunpack.c.l.b16 %v218
    %v1557 = vunpack.c.h.b16 %v218
    %v1558 = vunpack.c.l.b16 %v219
    %v1559 = vunpack.c.h.b16 %v219
    %v1560 = vunpack.c.l.b16 %v220
    %v1561 = vunpack.c.h.b16 %v220
    %v1562 = vunpack.c.l.b16 %v221
    %v1563 = vunpack.c.h.b16 %v221
    %v1564 = vunpack.c.l.b16 %v222
    %v1565 = vunpack.c.h.b16 %v222
    %v1566 = vunpack.c.l.b16 %v223
    %v1567 = vunpack.c.h.b16 %v223
    %v1568 = vunpack.c.l.b16 %v224
    %v1569 = vunpack.c.h.b16 %v224
    %v1570 = vunpack.c.l.b16 %v225
    %v1571 = vunpack.c.h.b16 %v225
    %v1572 = vunpack.c.l.b16 %v226
    %v1573 = vunpack.c.h.b16 %v226
    %v1574 = vunpack.c.l.b16 %v227
    %v1575 = vunpack.c.h.b16 %v227
    %v1576 = vunpack.c.l.b16 %v228
    %v1577 = vunpack.c.h.b16 %v228
    %v1578 = vunpack.c.l.b16 %v229
    %v1579 = vunpack.c.h.b16 %v229
    %v1580 = vunpack.c.l.b16 %v230
    %v1581 = vunpack.c.h.b16 %v230
    %v1582 = vunpack.c.l.b16 %v231
    %v1583 = vunpack.c.h.b16 %v231
    %v1584 = vunpack.c.l.b16 %v232
    %v1585 = vunpack.c.h.b16 %v232
    %v1586 = vunpack.c.l.b16 %v233
    %v1587 = vunpack.c.h.b16 %v233
    %v1588 = vunpack.c.l.b16 %v234
    %v1589 = vunpack.c.h.b16 %v234
    %v1590 = vunpack.c.l.b16 %v235
    %v1591 = vunpack.c.h.b16 %v235
    %v1592 = vunpack.c.l.b16 %v236
    %v1593 = vunpack.c.h.b16 %v236
    %v1594 = vunpack.c.l.b16 %v237
    %v1595 = vunpack.c.h.b16 %v237
    %v1596 = vunpack.c.l.b16 %v238
    %v1597 = vunpack.c.h.b16 %v238
    %v1598 = vunpack.c.l.b16 %v239
    %v1599 = vunpack.c.h.b16 %v239
    %v1600 = vunpack.c.l.b16 %v240
    %v1601 = vunpack.c.h.b16 %v240
    %v1602 = vunpack.c.l.b16 %v241
    %v1603 = vunpack.c.h.b16 %v241
    %v1604 = vunpack.c.l.b16 %v242
    %v1605 = vunpack.c.h.b16 %v242
    %v1606 = vunpack.c.l.b16 %v243
    %v1607 = vunpack.c.h.b16 %v243
    %v1608 = vunpack.c.l.b16 %v244
    %v1609 = vunpack.c.h.b16 %v244
    %v1610 = vunpack.c.l.b16 %v245
    %v1611 = vunpack.c.h.b16 %v245
    %v1612 = vunpack.c.l.b16 %v246
    %v1613 = vunpack.c.h.b16 %v246
    %v1614 = vunpack.c.l.b16 %v247
    %v1615 = vunpack.c.h.b16 %v247
    %v1616 = vunpack.c.l.b16 %v248
    %v1617 = vunpack.c.h.b16 %v248
    %v1618 = vunpack.c.l.b16 %v249
    %v1619 = vunpack.c.h.b16 %v249
    %v1620 = vunpack.c.l.b16 %v250
    %v1621 = vunpack.c.h.b16 %v250
    %v1622 = vunpack.c.l.b16 %v251
    %v1623 = vunpack.c.h.b16 %v251
    %v1624 = vunpack.c.l.b16 %v252
    %v1625 = vunpack.c.h.b16 %v252
    %v1626 = vunpack.c.l.b16 %v253
    %v1627 = vunpack.c.h.b16 %v253
    %v1628 = vunpack.c.l.b16 %v254
    %v1629 = vunpack.c.h.b16 %v254
    %v1630 = vunpack.c.l.b16 %v255
    %v1631 = vunpack.c.h.b16 %v255
    %v1632 = vunpack.c.l.b16 %v256
    %v1633 = vunpack.c.h.b16 %v256
    %v1634 = vunpack.c.l.b16 %v257
    %v1635 = vunpack.c.h.b16 %v257
    %v1636 = vunpack.c.l.b16 %v258
    %v1637 = vunpack.c.h.b16 %v258
    %v1638 = vunpack.c.l.b16 %v259
    %v1639 = vunpack.c.h.b16 %v259
    %v1640 = vunpack.c.l.b16 %v260
    %v1641 = vunpack.c.h.b16 %v260
    %v1642 = vunpack.c.l.b16 %v261
    %v1643 = vunpack.c.h.b16 %v261
    %v1644 = vunpack.c.l.b16 %v262
    %v1645 = vunpack.c.h.b16 %v262
    %v1646 = vunpack.c.l.b16 %v263
    %v1647 = vunpack.c.h.b16 %v263
    %v1648 = vunpack.c.l.b16 %v264
    %v1649 = vunpack.c.h.b16 %v264
    %v1650 = vunpack.c.l.b16 %v265
    %v1651 = vunpack.c.h.b16 %v265
    %v1652 = vunpack.c.l.b16 %v266
    %v1653 = vunpack.c.h.b16 %v266
    %v1654 = vunpack.c.l.b16 %v267
    %v1655 = vunpack.c.h.b16 %v267
    %v1656 = vunpack.c.l.b16 %v268
    %v1657 = vunpack.c.h.b16 %v268
    %v1658 = vunpack.c.l.b16 %v269
    %v1659 = vunpack.c.h.b16 %v269
    %v1660 = vunpack.c.l.b16 %v270
    %v1661 = vunpack.c.h.b16 %v270
    %v1662 = vunpack.c.l.b16 %v271
    %v1663 = vunpack.c.h.b16 %v271
    %v1664 = vunpack.c.l.b16 %v272
    %v1665 = vunpack.c.h.b16 %v272
    %v1666 = vunpack.c.l.b16 %v273
    %v1667 = vunpack.c.h.b16 %v273
    %v1668 = vunpack.c.l.b16 %v274
    %v1669 = vunpack.c.h.b16 %v274
    %v1670 = vunpack.c.l.b16 %v275
    %v1671 = vunpack.c.h.b16 %v275
    %v1672 = vunpack.c.l.b16 %v276
    %v1673 = vunpack.c.h.b16 %v276
    %v1674 = vunpack.c.l.b16 %v277
    %v1675 = vunpack.c.h.b16 %v277
    %v1676 = vunpack.c.l.b16 %v278
    %v1677 = vunpack.c.h.b16 %v278
    %v1678 = vunpack.c.l.b16 %v279
    %v1679 = vunpack.c.h.b16 %v279
    %v1680 = vunpack.c.l.b16 %v280
    %v1681 = vunpack.c.h.b16 %v280
    %v1682 = vunpack.c.l.b16 %v281
    %v1683 = vunpack.c.h.b16 %v281
    %v1684 = vunpack.c.l.b16 %v282
    %v1685 = vunpack.c.h.b16 %v282
    %v1686 = vunpack.c.l.b16 %v283
    %v1687 = vunpack.c.h.b16 %v283
    %v1688 = vunpack.c.l.b16 %v284
    %v1689 = vunpack.c.h.b16 %v284
    %v1690 = vunpack.c.l.b16 %v285
    %v1691 = vunpack.c.h.b16 %v285
    %v1692 = vunpack.c.l.b16 %v286
    %v1693 = vunpack.c.h.b16 %v286
    %v1694 = vunpack.c.l.b16 %v287
    %v1695 = vunpack.c.h.b16 %v287
    %v1696 = vunpack.c.l.b16 %v288
    %v1697 = vunpack.c.h.b16 %v288
    %v1698 = vunpack.c.l.b16 %v289
    %v1699 = vunpack.c.h.b16 %v289
    %v1700 = vunpack.c.l.b16 %v290
    %v1701 = vunpack.c.h.b16 %v290
    %v1702 = vunpack.c.l.b16 %v291
    %v1703 = vunpack.c.h.b16 %v291
    %v1704 = vunpack.c.l.b16 %v292
    %v1705 = vunpack.c.h.b16 %v292
    %v1706 = vunpack.c.l.b16 %v293
    %v1707 = vunpack.c.h.b16 %v293
    %v1708 = vunpack.c.l.b16 %v294
    %v1709 = vunpack.c.h.b16 %v294
    %v1710 = vunpack.c.l.b16 %v295
    %v1711 = vunpack.c.h.b16 %v295
    %v1712 = vunpack.c.l.b16 %v296
    %v1713 = vunpack.c.h.b16 %v296
    %v1714 = vunpack.c.l.b16 %v297
    %v1715 = vunpack.c.h.b16 %v297
    %v1716 = vunpack.c.l.b16 %v298
    %v1717 = vunpack.c.h.b16 %v298
    %v1718 = vunpack.c.l.b16 %v299
    %v1719 = vunpack.c.h.b16 %v299
    %v1720 = vunpack.c.l.b16 %v300
    %v1721 = vunpack.c.h.b16 %v300
    %v1722 = vunpack.c.l.b16 %v301
    %v1723 = vunpack.c.h.b16 %v301
    %v1724 = vunpack.c.l.b16 %v302
    %v1725 = vunpack.c.h.b16 %v302
    %v1726 = vunpack.c.l.b16 %v303
    %v1727 = vunpack.c.h.b16 %v303
    %v1728 = vunpack.c.l.b16 %v304
    %v1729 = vunpack.c.h.b16 %v304
    %v1730 = vunpack.c.l.b16 %v305
    %v1731 = vunpack.c.h.b16 %v305
    %v1732 = vunpack.c.l.b16 %v306
    %v1733 = vunpack.c.h.b16 %v306
    %v1734 = vunpack.c.l.b16 %v307
    %v1735 = vunpack.c.h.b16 %v307
    %v1736 = vunpack.c.l.b16 %v308
    %v1737 = vunpack.c.h.b16 %v308
    %v1738 = vunpack.c.l.b16 %v309
    %v1739 = vunpack.c.h.b16 %v309
    %v1740 = vunpack.c.l.b16 %v310
    %v1741 = vunpack.c.h.b16 %v310
    %v1742 = vunpack.c.l.b16 %v311
    %v1743 = vunpack.c.h.b16 %v311
    %v1744 = vunpack.c.l.b16 %v312
    %v1745 = vunpack.c.h.b16 %v312
    %v1746 = vunpack.c.l.b16 %v313
    %v1747 = vunpack.c.h.b16 %v313
    %v1748 = vunpack.c.l.b16 %v314
    %v1749 = vunpack.c.h.b16 %v314
    %v1750 = vunpack.c.l.b16 %v315
    %v1751 = vunpack.c.h.b16 %v315
    %v1752 = vunpack.c.l.b16 %v316
    %v1753 = vunpack.c.h.b16 %v316
    %v1754 = vunpack.c.l.b16 %v317
    %v1755 = vunpack.c.h.b16 %v317
    %v1756 = vunpack.c.l.b16 %v318
    %v1757 = vunpack.c.h.b16 %v318
    %v1758 = vunpack.c.l.b16 %v319
    %v1759 = vunpack.c.h.b16 %v319
    %v1760 = vunpack.c.l.b16 %v320
    %v1761 = vunpack.c.h.b16 %v320
    %v1762 = vunpack.c.l.b16 %v321
    %v1763 = vunpack.c.h.b16 %v321
    %v1764 = vunpack.c.l.b16 %v322
    %v1765 = vunpack.c.h.b16 %v322
    %v1766 = vunpack.c.l.b16 %v323
    %v1767 = vunpack.c.h.b16 %v323
    %v1768 = vunpack.c.l.b16 %v324
    %v1769 = vunpack.c.h.b16 %v324
    %v1770 = vunpack.c.l.b16 %v325
    %v1771 = vunpack.c.h.b16 %v325
    %v1772 = vunpack.c.l.b16 %v326
    %v1773 = vunpack.c.h.b16 %v326
    %v1774 = vunpack.c.l.b16 %v327
    %v1775 = vunpack.c.h.b16 %v327
    %v1776 = vunpack.c.l.b16 %v328
    %v1777 = vunpack.c.h.b16 %v328
    %v1778 = vunpack.c.l.b16 %v329
    %v1779 = vunpack.c.h.b16 %v329
    %v1780 = vunpack.c.l.b16 %v330
    %v1781 = vunpack.c.h.b16 %v330
    %v1782 = vunpack.c.l.b16 %v331
    %v1783 = vunpack.c.h.b16 %v331
    %v1784 = vunpack.c.l.b16 %v332
    %v1785 = vunpack.c.h.b16 %v332
    %v1786 = vunpack.c.l.b16 %v333
    %v1787 = vunpack.c.h.b16 %v333
    %v1788 = vunpack.c.l.b16 %v334
    %v1789 = vunpack.c.h.b16 %v334
    %v1790 = vunpack.c.l.b16 %v335
    %v1791 = vunpack.c.h.b16 %v335
    %v1792 = vunpack.c.l.b16 %v336
    %v1793 = vunpack.c.h.b16 %v336
    %v1794 = vunpack.c.l.b16 %v337
    %v1795 = vunpack.c.h.b16 %v337
    %v1796 = vunpack.c.l.b16 %v338
    %v1797 = vunpack.c.h.b16 %v338
    %v1798 = vunpack.c.l.b16 %v339
    %v1799 = vunpack.c.h.b16 %v339
    %v1800 = vunpack.c.l.b16 %v340
    %v1801 = vunpack.c.h.b16 %v340
    %v1802 = vunpack.c.l.b16 %v341
    %v1803 = vunpack.c.h.b16 %v341
    %v1804 = vunpack.c.l.b16 %v342
    %v1805 = vunpack.c.h.b16 %v342
    %v1806 = vunpack.c.l.b16 %v343
    %v1807 = vunpack.c.h.b16 %v343
    %v1808 = vunpack.c.l.b16 %v344
    %v1809 = vunpack.c.h.b16 %v344
    %v1810 = vunpack.c.l.b16 %v345
    %v1811 = vunpack.c.h.b16 %v345
    %v1812 = vunpack.c.l.b16 %v346
    %v1813 = vunpack.c.h.b16 %v346
    %v1814 = vunpack.c.l.b16 %v347
    %v1815 = vunpack.c.h.b16 %v347
    %v1816 = vunpack.c.l.b16 %v348
    %v1817 = vunpack.c.h.b16 %v348
    %v1818 = vunpack.c.l.b16 %v349
    %v1819 = vunpack.c.h.b16 %v349
    %v1820 = vunpack.c.l.b16 %v350
    %v1821 = vunpack.c.h.b16 %v350
    %v1822 = vunpack.c.l.b16 %v351
    %v1823 = vunpack.c.h.b16 %v351
    %v1824 = vunpack.c.l.b16 %v352
    %v1825 = vunpack.c.h.b16 %v352
    %v1826 = vunpack.c.l.b16 %v353
    %v1827 = vunpack.c.h.b16 %v353
    %v1828 = vunpack.c.l.b16 %v354
    %v1829 = vunpack.c.h.b16 %v354
    %v1830 = vunpack.c.l.b16 %v355
    %v1831 = vunpack.c.h.b16 %v355
    %v1832 = vunpack.c.l.b16 %v356
    %v1833 = vunpack.c.h.b16 %v356
    %v1834 = vunpack.c.l.b16 %v357
    %v1835 = vunpack.c.h.b16 %v357
    %v1836 = vunpack.c.l.b16 %v358
    %v1837 = vunpack.c.h.b16 %v358
    %v1838 = vunpack.c.l.b16 %v359
    %v1839 = vunpack.c.h.b16 %v359
    %v1840 = vunpack.c.l.b16 %v360
    %v1841 = vunpack.c.h.b16 %v360
    %v1842 = vunpack.c.l.b16 %v361
    %v1843 = vunpack.c.h.b16 %v361
    %v1844 = vunpack.c.l.b16 %v362
    %v1845 = vunpack.c.h.b16 %v362
    %v1846 = vunpack.c.l.b16 %v363
    %v1847 = vunpack.c.h.b16 %v363
    %v1848 = vunpack.c.l.b16 %v364
    %v1849 = vunpack.c.h.b16 %v364
    %v1850 = vunpack.c.l.b16 %v365
    %v1851 = vunpack.c.h.b16 %v365
    %v1852 = vunpack.c.l.b16 %v366
    %v1853 = vunpack.c.h.b16 %v366
    %v1854 = vunpack.c.l.b16 %v367
    %v1855 = vunpack.c.h.b16 %v367
    %v1856 = vunpack.c.l.b16 %v368
    %v1857 = vunpack.c.h.b16 %v368
    %v1858 = vunpack.c.l.b16 %v369
    %v1859 = vunpack.c.h.b16 %v369
    %v1860 = vunpack.c.l.b16 %v370
    %v1861 = vunpack.c.h.b16 %v370
    %v1862 = vunpack.c.l.b16 %v371
    %v1863 = vunpack.c.h.b16 %v371
    %v1864 = vunpack.c.l.b16 %v372
    %v1865 = vunpack.c.h.b16 %v372
    %v1866 = vunpack.c.l.b16 %v373
    %v1867 = vunpack.c.h.b16 %v373
    %v1868 = vunpack.c.l.b16 %v374
    %v1869 = vunpack.c.h.b16 %v374
    %v1870 = vunpack.c.l.b16 %v375
    %v1871 = vunpack.c.h.b16 %v375
    %v1872 = vunpack.c.l.b16 %v376
    %v1873 = vunpack.c.h.b16 %v376
    %v1874 = vunpack.c.l.b16 %v377
    %v1875 = vunpack.c.h.b16 %v377
    %v1876 = vunpack.c.l.b16 %v378
    %v1877 = vunpack.c.h.b16 %v378
    %v1878 = vunpack.c.l.b16 %v379
    %v1879 = vunpack.c.h.b16 %v379
    %v1880 = vunpack.c.l.b16 %v380
    %v1881 = vunpack.c.h.b16 %v380
    %v1882 = vunpack.c.l.b16 %v381
    %v1883 = vunpack.c.h.b16 %v381
    %v1884 = vunpack.c.l.b16 %v382
    %v1885 = vunpack.c.h.b16 %v382
    %v1886 = vunpack.c.l.b16 %v383
    %v1887 = vunpack.c.h.b16 %v383
    %v1888 = vunpack.c.l.b16 %v384
    %v1889 = vunpack.c.h.b16 %v384
    %v1890 = vunpack.c.l.b16 %v385
    %v1891 = vunpack.c.h.b16 %v385
    %v1892 = vunpack.c.l.b16 %v386
    %v1893 = vunpack.c.h.b16 %v386
    %v1894 = vunpack.c.l.b16 %v387
    %v1895 = vunpack.c.h.b16 %v387
    %v1896 = vunpack.c.l.b16 %v388
    %v1897 = vunpack.c.h.b16 %v388
    %v1898 = vunpack.c.l.b16 %v389
    %v1899 = vunpack.c.h.b16 %v389
    %v1900 = vunpack.c.l.b16 %v390
    %v1901 = vunpack.c.h.b16 %v390
    %v1902 = vunpack.c.l.b16 %v391
    %v1903 = vunpack.c.h.b16 %v391
    %v1904 = vunpack.c.l.b16 %v392
    %v1905 = vunpack.c.h.b16 %v392
    %v1906 = vunpack.c.l.b16 %v393
    %v1907 = vunpack.c.h.b16 %v393
    %v1908 = vunpack.c.l.b16 %v394
    %v1909 = vunpack.c.h.b16 %v394
    %v1910 = vunpack.c.l.b16 %v395
    %v1911 = vunpack.c.h.b16 %v395
    %v1912 = vunpack.c.l.b16 %v396
    %v1913 = vunpack.c.h.b16 %v396
    %v1914 = vunpack.c.l.b16 %v397
    %v1915 = vunpack.c.h.b16 %v397
    %v1916 = vunpack.c.l.b16 %v398
    %v1917 = vunpack.c.h.b16 %v398
    %v1918 = vunpack.c.l.b16 %v399
    %v1919 = vunpack.c.h.b16 %v399
    %v1920 = vunpack.c.l.b16 %v400
    %v1921 = vunpack.c.h.b16 %v400
    %v1922 = vunpack.c.l.b16 %v401
    %v1923 = vunpack.c.h.b16 %v401
    %v1924 = vunpack.c.l.b16 %v402
    %v1925 = vunpack.c.h.b16 %v402
    %v1926 = vunpack.c.l.b16 %v403
    %v1927 = vunpack.c.h.b16 %v403
    %v1928 = vunpack.c.l.b16 %v404
    %v1929 = vunpack.c.h.b16 %v404
    %v1930 = vunpack.c.l.b16 %v405
    %v1931 = vunpack.c.h.b16 %v405
    %v1932 = vunpack.c.l.b16 %v406
    %v1933 = vunpack.c.h.b16 %v406
    %v1934 = vunpack.c.l.b16 %v407
    %v1935 = vunpack.c.h.b16 %v407
    %v1936 = vunpack.c.l.b16 %v408
    %v1937 = vunpack.c.h.b16 %v408
    %v1938 = vunpack.c.l.b16 %v409
    %v1939 = vunpack.c.h.b16 %v409
    %v1940 = vunpack.c.l.b16 %v410
    %v1941 = vunpack.c.h.b16 %v410
    %v1942 = vunpack.c.l.b16 %v411
    %v1943 = vunpack.c.h.b16 %v411
    %v1944 = vunpack.c.l.b16 %v412
    %v1945 = vunpack.c.h.b16 %v412
    %v1946 = vunpack.c.l.b16 %v413
    %v1947 = vunpack.c.h.b16 %v413
    %v1948 = vunpack.c.l.b16 %v414
    %v1949 = vunpack.c.h.b16 %v414
    %v1950 = vunpack.c.l.b16 %v415
    %v1951 = vunpack.c.h.b16 %v415
    %v1952 = vunpack.c.l.b16 %v416
    %v1953 = vunpack.c.h.b16 %v416
    %v1954 = vunpack.c.l.b16 %v417
    %v1955 = vunpack.c.h.b16 %v417
    %v1956 = vunpack.c.l.b16 %v418
    %v1957 = vunpack.c.h.b16 %v418
    %v1958 = vunpack.c.l.b16 %v419
    %v1959 = vunpack.c.h.b16 %v419
    %v1960 = vunpack.c.l.b16 %v420
    %v1961 = vunpack.c.h.b16 %v420
    %v1962 = vunpack.c.l.b16 %v421
    %v1963 = vunpack.c.h.b16 %v421
    %v1964 = vunpack.c.l.b16 %v422
    %v1965 = vunpack.c.h.b16 %v422
    %v1966 = vunpack.c.l.b16 %v423
    %v1967 = vunpack.c.h.b16 %v423
    %v1968 = vunpack.c.l.b16 %v424
    %v1969 = vunpack.c.h.b16 %v424
    %v1970 = vunpack.c.l.b16 %v425
    %v1971 = vunpack.c.h.b16 %v425
    %v1972 = vunpack.c.l.b16 %v426
    %v1973 = vunpack.c.h.b16 %v426
    %v1974 = vunpack.c.l.b16 %v427
    %v1975 = vunpack.c.h.b16 %v427
    %v1976 = vunpack.c.l.b16 %v428
    %v1977 = vunpack.c.h.b16 %v428
    %v1978 = vunpack.c.l.b16 %v429
    %v1979 = vunpack.c.h.b16 %v429
    %v1980 = vunpack.c.l.b16 %v430
    %v1981 = vunpack.c.h.b16 %v430
    %v1982 = vunpack.c.l.b16 %v431
    %v1983 = vunpack.c.h.b16 %v431
    %v1984 = vunpack.c.l.b16 %v432
    %v1985 = vunpack.c.h.b16 %v432
    %v1986 = vunpack.c.l.b16 %v433
    %v1987 = vunpack.c.h.b16 %v433
    %v1988 = vunpack.c.l.b16 %v434
    %v1989 = vunpack.c.h.b16 %v434
    %v1990 = vunpack.c.l.b16 %v435
    %v1991 = vunpack.c.h.b16 %v435
    %v1992 = vunpack.c.l.b16 %v436
    %v1993 = vunpack.c.h.b16 %v436
    %v1994 = vunpack.c.l.b16 %v437
    %v1995 = vunpack.c.h.b16 %v437
    %v1996 = vunpack.c.l.b16 %v438
    %v1997 = vunpack.c.h.b16 %v438
    %v1998 = vunpack.c.l.b16 %v439
    %v1999 = vunpack.c.h.b16 %v439
    %v2000 = vunpack.c.l.b16 %v440
    %v2001 = vunpack.c.h.b16 %v440
    %v2002 = vunpack.c.l.b16 %v441
    %v2003 = vunpack.c.h.b16 %v441
    %v2004 = vunpack.c.l.b16 %v442
    %v2005 = vunpack.c.h.b16 %v442
    %v2006 = vunpack.c.l.b16 %v443
    %v2007 = vunpack.c.h.b16 %v443
    %v2008 = vunpack.c.l.b16 %v444
    %v2009 = vunpack.c.h.b16 %v444
    %v2010 = vunpack.c.l.b16 %v445
    %v2011 = vunpack.c.h.b16 %v445
    %v2012 = vunpack.c.l.b16 %v446
    %v2013 = vunpack.c.h.b16 %v446
    %v2014 = vunpack.c.l.b16 %v447
    %v2015 = vunpack.c.h.b16 %v447
    %v2016 = vunpack.c.l.b16 %v448
    %v2017 = vunpack.c.h.b16 %v448
    %v2018 = vunpack.c.l.b16 %v449
    %v2019 = vunpack.c.h.b16 %v449
    %v2020 = vunpack.c.l.b16 %v450
    %v2021 = vunpack.c.h.b16 %v450
    %v2022 = vunpack.c.l.b16 %v451
    %v2023 = vunpack.c.h.b16 %v451
    %v2024 = vunpack.c.l.b16 %v452
    %v2025 = vunpack.c.h.b16 %v452
    %v2026 = vunpack.c.l.b16 %v453
    %v2027 = vunpack.c.h.b16 %v453
    %v2028 = vunpack.c.l.b16 %v454
    %v2029 = vunpack.c.h.b16 %v454
    %v2030 = vunpack.c.l.b16 %v455
    %v2031 = vunpack.c.h.b16 %v455
    %v2032 = vunpack.c.l.b16 %v456
    %v2033 = vunpack.c.h.b16 %v456
    %v2034 = vunpack.c.l.b16 %v457
    %v2035 = vunpack.c.h.b16 %v457
    %v2036 = vunpack.c.l.b16 %v458
    %v2037 = vunpack.c.h.b16 %v458
    %v2038 = vunpack.c.l.b16 %v459
    %v2039 = vunpack.c.h.b16 %v459
    %v2040 = vunpack.c.l.b16 %v460
    %v2041 = vunpack.c.h.b16 %v460
    %v2042 = vunpack.c.l.b16 %v461
    %v2043 = vunpack.c.h.b16 %v461
    %v2044 = vunpack.c.l.b16 %v462
    %v2045 = vunpack.c.h.b16 %v462
    %v2046 = vunpack.c.l.b16 %v463
    %v2047 = vunpack.c.h.b16 %v463
    %v2048 = vpack.c.b16 %v1202, %v1184
    %v2049 = vpack.c.b16 %v1203, %v1185
    %v2050 = vpack.c.b16 %v1204, %v1186
    %v2051 = vpack.c.b16 %v1205, %v1187
    %v2052 = vpack.c.b16 %v1206, %v1188
    %v2053 = vpack.c.b16 %v1207, %v1189
    %v2054 = vpack.c.b16 %v1208, %v1190
    %v2055 = vpack.c.b16 %v1209, %v1191
    %v2056 = vpack.c.b16 %v1210, %v1192
    %v2057 = vpack.c.b16 %v1211, %v1193
    %v2058 = vpack.c.b16 %v1212, %v1194
    %v2059 = vpack.c.b16 %v1213, %v1195
    %v2060 = vpack.c.b16 %v1214, %v1196
    %v2061 = vpack.c.b16 %v1215, %v1197
    %v2062 = vpack.c.b16 %v1216, %v1198
    %v2063 = vpack.c.b16 %v1217, %v1199
    %v2064 = vpack.c.b16 %v1218, %v1200
    %v2065 = vpack.c.b16 %v1219, %v1201
    %v2066 = vpack.c.b16 %v1238, %v1220
    %v2067 = vpack.c.b16 %v1239, %v1221
    %v2068 = vpack.c.b16 %v1240, %v1222
    %v2069 = vpack.c.b16 %v1241, %v1223
    %v2070 = vpack.c.b16 %v1242, %v1224
    %v2071 = vpack.c.b16 %v1243, %v1225
    %v2072 = vpack.c.b16 %v1244, %v1226
    %v2073 = vpack.c.b16 %v1245, %v1227
    %v2074 = vpack.c.b16 %v1246, %v1228
    %v2075 = vpack.c.b16 %v1247, %v1229
    %v2076 = vpack.c.b16 %v1248, %v1230
    %v2077 = vpack.c.b16 %v1249, %v1231
    %v2078 = vpack.c.b16 %v1250, %v1232
    %v2079 = vpack.c.b16 %v1251, %v1233
    %v2080 = vpack.c.b16 %v1252, %v1234
    %v2081 = vpack.c.b16 %v1253, %v1235
    %v2082 = vpack.c.b16 %v1254, %v1236
    %v2083 = vpack.c.b16 %v1255, %v1237
    %v2084 = vpack.c.b16 %v1274, %v1256
    %v2085 = vpack.c.b16 %v1275, %v1257
    %v2086 = vpack.c.b16 %v1276, %v1258
    %v2087 = vpack.c.b16 %v1277, %v1259
    %v2088 = vpack.c.b16 %v1278, %v1260
    %v2089 = vpack.c.b16 %v1279, %v1261
    %v2090 = vpack.c.b16 %v1280, %v1262
    %v2091 = vpack.c.b16 %v1281, %v1263
    %v2092 = vpack.c.b16 %v1282, %v1264
    %v2093 = vpack.c.b16 %v1283, %v1265
    %v2094 = vpack.c.b16 %v1284, %v1266
    %v2095 = vpack.c.b16 %v1285, %v1267
    %v2096 = vpack.c.b16 %v1286, %v1268
    %v2097 = vpack.c.b16 %v1287, %v1269
    %v2098 = vpack.c.b16 %v1288, %v1270
    %v2099 = vpack.c.b16 %v1289, %v1271
    %v2100 = vpack.c.b16 %v1290, %v1272
    %v2101 = vpack.c.b16 %v1291, %v1273
    %v2102 = vpack.c.b16 %v1310, %v1292
    %v2103 = vpack.c.b16 %v1311, %v1293
    %v2104 = vpack.c.b16 %v1312, %v1294
    %v2105 = vpack.c.b16 %v1313, %v1295
    %v2106 = vpack.c.b16 %v1314, %v1296
    %v2107 = vpack.c.b16 %v1315, %v1297
    %v2108 = vpack.c.b16 %v1316, %v1298
    %v2109 = vpack.c.b16 %v1317, %v1299
    %v2110 = vpack.c.b16 %v1318, %v1300
    %v2111 = vpack.c.b16 %v1319, %v1301
    %v2112 = vpack.c.b16 %v1320, %v1302
    %v2113 = vpack.c.b16 %v1321, %v1303
    %v2114 = vpack.c.b16 %v1322, %v1304
    %v2115 = vpack.c.b16 %v1323, %v1305
    %v2116 = vpack.c.b16 %v1324, %v1306
    %v2117 = vpack.c.b16 %v1325, %v1307
    %v2118 = vpack.c.b16 %v1326, %v1308
    %v2119 = vpack.c.b16 %v1327, %v1309
    %v2120 = vpack.c.b16 %v1346, %v1328
    %v2121 = vpack.c.b16 %v1347, %v1329
    %v2122 = vpack.c.b16 %v1348, %v1330
    %v2123 = vpack.c.b16 %v1349, %v1331
    %v2124 = vpack.c.b16 %v1350, %v1332
    %v2125 = vpack.c.b16 %v1351, %v1333
    %v2126 = vpack.c.b16 %v1352, %v1334
    %v2127 = vpack.c.b16 %v1353, %v1335
    %v2128 = vpack.c.b16 %v1354, %v1336
    %v2129 = vpack.c.b16 %v1355, %v1337
    %v2130 = vpack.c.b16 %v1356, %v1338
    %v2131 = vpack.c.b16 %v1357, %v1339
    %v2132 = vpack.c.b16 %v1358, %v1340
    %v2133 = vpack.c.b16 %v1359, %v1341
    %v2134 = vpack.c.b16 %v1360, %v1342
    %v2135 = vpack.c.b16 %v1361, %v1343
    %v2136 = vpack.c.b16 %v1362, %v1344
    %v2137 = vpack.c.b16 %v1363, %v1345
    %v2138 = vpack.c.b16 %v1382, %v1364
    %v2139 = vpack.c.b16 %v1383, %v1365
    %v2140 = vpack.c.b16 %v1384, %v1366
    %v2141 = vpack.c.b16 %v1385, %v1367
    %v2142 = vpack.c.b16 %v1386, %v1368
    %v2143 = vpack.c.b16 %v1387, %v1369
    %v2144 = vpack.c.b16 %v1388, %v1370
    %v2145 = vpack.c.b16 %v1389, %v1371
    %v2146 = vpack.c.b16 %v1390, %v1372
    %v2147 = vpack.c.b16 %v1391, %v1373
    %v2148 = vpack.c.b16 %v1392, %v1374
    %v2149 = vpack.c.b16 %v1393, %v1375
    %v2150 = vpack.c.b16 %v1394, %v1376
    %v2151 = vpack.c.b16 %v1395, %v1377
    %v2152 = vpack.c.b16 %v1396, %v1378
    %v2153 = vpack.c.b16 %v1397, %v1379
    %v2154 = vpack.c.b16 %v1398, %v1380
    %v2155 = vpack.c.b16 %v1399, %v1381
    %v2156 = vpack.c.b16 %v1418, %v1400
    %v2157 = vpack.c.b16 %v1419, %v1401
    %v2158 = vpack.c.b16 %v1420, %v1402
    %v2159 = vpack.c.b16 %v1421, %v1403
    %v2160 = vpack.c.b16 %v1422, %v1404
    %v2161 = vpack.c.b16 %v1423, %v1405
    %v2162 = vpack.c.b16 %v1424, %v1406
    %v2163 = vpack.c.b16 %v1425, %v1407
    %v2164 = vpack.c.b16 %v1426, %v1408
    %v2165 = vpack.c.b16 %v1427, %v1409
    %v2166 = vpack.c.b16 %v1428, %v1410
    %v2167 = vpack.c.b16 %v1429, %v1411
    %v2168 = vpack.c.b16 %v1430, %v1412
    %v2169 = vpack.c.b16 %v1431, %v1413
    %v2170 = vpack.c.b16 %v1432, %v1414
    %v2171 = vpack.c.b16 %v1433, %v1415
    %v2172 = vpack.c.b16 %v1434, %v1416
    %v2173 = vpack.c.b16 %v1435, %v1417
    %v2174 = vpack.c.b16 %v1454, %v1436
    %v2175 = vpack.c.b16 %v1455, %v1437
    %v2176 = vpack.c.b16 %v1456, %v1438
    %v2177 = vpack.c.b16 %v1457, %v1439
    %v2178 = vpack.c.b16 %v1458, %v1440
    %v2179 = vpack.c.b16 %v1459, %v1441
    %v2180 = vpack.c.b16 %v1460, %v1442
    %v2181 = vpack.c.b16 %v1461, %v1443
    %v2182 = vpack.c.b16 %v1462, %v1444
    %v2183 = vpack.c.b16 %v1463, %v1445
    %v2184 = vpack.c.b16 %v1464, %v1446
    %v2185 = vpack.c.b16 %v1465, %v1447
    %v2186 = vpack.c.b16 %v1466, %v1448
    %v2187 = vpack.c.b16 %v1467, %v1449
    %v2188 = vpack.c.b16 %v1468, %v1450
    %v2189 = vpack.c.b16 %v1469, %v1451
    %v2190 = vpack.c.b16 %v1470, %v1452
    %v2191 = vpack.c.b16 %v1471, %v1453
    %v2192 = vpack.c.b16 %v1490, %v1472
    %v2193 = vpack.c.b16 %v1491, %v1473
    %v2194 = vpack.c.b16 %v1492, %v1474
    %v2195 = vpack.c.b16 %v1493, %v1475
    %v2196 = vpack.c.b16 %v1494, %v1476
    %v2197 = vpack.c.b16 %v1495, %v1477
    %v2198 = vpack.c.b16 %v1496, %v1478
    %v2199 = vpack.c.b16 %v1497, %v1479
    %v2200 = vpack.c.b16 %v1498, %v1480
    %v2201 = vpack.c.b16 %v1499, %v1481
    %v2202 = vpack.c.b16 %v1500, %v1482
    %v2203 = vpack.c.b16 %v1501, %v1483
    %v2204 = vpack.c.b16 %v1502, %v1484
    %v2205 = vpack.c.b16 %v1503, %v1485
    %v2206 = vpack.c.b16 %v1504, %v1486
    %v2207 = vpack.c.b16 %v1505, %v1487
    %v2208 = vpack.c.b16 %v1506, %v1488
    %v2209 = vpack.c.b16 %v1507, %v1489
    %v2210 = vpack.c.b16 %v1526, %v1508
    %v2211 = vpack.c.b16 %v1527, %v1509
    %v2212 = vpack.c.b16 %v1528, %v1510
    %v2213 = vpack.c.b16 %v1529, %v1511
    %v2214 = vpack.c.b16 %v1530, %v1512
    %v2215 = vpack.c.b16 %v1531, %v1513
    %v2216 = vpack.c.b16 %v1532, %v1514
    %v2217 = vpack.c.b16 %v1533, %v1515
    %v2218 = vpack.c.b16 %v1534, %v1516
    %v2219 = vpack.c.b16 %v1535, %v1517
    %v2220 = vpack.c.b16 %v1536, %v1518
    %v2221 = vpack.c.b16 %v1537, %v1519
    %v2222 = vpack.c.b16 %v1538, %v1520
    %v2223 = vpack.c.b16 %v1539, %v1521
    %v2224 = vpack.c.b16 %v1540, %v1522
    %v2225 = vpack.c.b16 %v1541, %v1523
    %v2226 = vpack.c.b16 %v1542, %v1524
    %v2227 = vpack.c.b16 %v1543, %v1525
    %v2228 = vpack.c.b16 %v1562, %v1544
    %v2229 = vpack.c.b16 %v1563, %v1545
    %v2230 = vpack.c.b16 %v1564, %v1546
    %v2231 = vpack.c.b16 %v1565, %v1547
    %v2232 = vpack.c.b16 %v1566, %v1548
    %v2233 = vpack.c.b16 %v1567, %v1549
    %v2234 = vpack.c.b16 %v1568, %v1550
    %v2235 = vpack.c.b16 %v1569, %v1551
    %v2236 = vpack.c.b16 %v1570, %v1552
    %v2237 = vpack.c.b16 %v1571, %v1553
    %v2238 = vpack.c.b16 %v1572, %v1554
    %v2239 = vpack.c.b16 %v1573, %v1555
    %v2240 = vpack.c.b16 %v1574, %v1556
    %v2241 = vpack.c.b16 %v1575, %v1557
    %v2242 = vpack.c.b16 %v1576, %v1558
    %v2243 = vpack.c.b16 %v1577, %v1559
    %v2244 = vpack.c.b16 %v1578, %v1560
    %v2245 = vpack.c.b16 %v1579, %v1561
    %v2246 = vpack.c.b16 %v1598, %v1580
    %v2247 = vpack.c.b16 %v1599, %v1581
    %v2248 = vpack.c.b16 %v1600, %v1582
    %v2249 = vpack.c.b16 %v1601, %v1583
    %v2250 = vpack.c.b16 %v1602, %v1584
    %v2251 = vpack.c.b16 %v1603, %v1585
    %v2252 = vpack.c.b16 %v1604, %v1586
    %v2253 = vpack.c.b16 %v1605, %v1587
    %v2254 = vpack.c.b16 %v1606, %v1588
    %v2255 = vpack.c.b16 %v1607, %v1589
    %v2256 = vpack.c.b16 %v1608, %v1590
    %v2257 = vpack.c.b16 %v1609, %v1591
    %v2258 = vpack.c.b16 %v1610, %v1592
    %v2259 = vpack.c.b16 %v1611, %v1593
    %v2260 = vpack.c.b16 %v1612, %v1594
    %v2261 = vpack.c.b16 %v1613, %v1595
    %v2262 = vpack.c.b16 %v1614, %v1596
    %v2263 = vpack.c.b16 %v1615, %v1597
    %v2264 = vpack.c.b16 %v1634, %v1616
    %v2265 = vpack.c.b16 %v1635, %v1617
    %v2266 = vpack.c.b16 %v1636, %v1618
    %v2267 = vpack.c.b16 %v1637, %v1619
    %v2268 = vpack.c.b16 %v1638, %v1620
    %v2269 = vpack.c.b16 %v1639, %v1621
    %v2270 = vpack.c.b16 %v1640, %v1622
    %v2271 = vpack.c.b16 %v1641, %v1623
    %v2272 = vpack.c.b16 %v1642, %v1624
    %v2273 = vpack.c.b16 %v1643, %v1625
    %v2274 = vpack.c.b16 %v1644, %v1626
    %v2275 = vpack.c.b16 %v1645, %v1627
    %v2276 = vpack.c.b16 %v1646, %v1628
    %v2277 = vpack.c.b16 %v1647, %v1629
    %v2278 = vpack.c.b16 %v1648, %v1630
    %v2279 = vpack.c.b16 %v1649, %v1631
    %v2280 = vpack.c.b16 %v1650, %v1632
    %v2281 = vpack.c.b16 %v1651, %v1633
    %v2282 = vpack.c.b16 %v1670, %v1652
    %v2283 = vpack.c.b16 %v1671, %v1653
    %v2284 = vpack.c.b16 %v1672, %v1654
    %v2285 = vpack.c.b16 %v1673, %v1655
    %v2286 = vpack.c.b16 %v1674, %v1656
    %v2287 = vpack.c.b16 %v1675, %v1657
    %v2288 = vpack.c.b16 %v1676, %v1658
    %v2289 = vpack.c.b16 %v1677, %v1659
    %v2290 = vpack.c.b16 %v1678, %v1660
    %v2291 = vpack.c.b16 %v1679, %v1661
    %v2292 = vpack.c.b16 %v1680, %v1662
    %v2293 = vpack.c.b16 %v1681, %v1663
    %v2294 = vpack.c.b16 %v1682, %v1664
    %v2295 = vpack.c.b16 %v1683, %v1665
    %v2296 = vpack.c.b16 %v1684, %v1666
    %v2297 = vpack.c.b16 %v1685, %v1667
    %v2298 = vpack.c.b16 %v1686, %v1668
    %v2299 = vpack.c.b16 %v1687, %v1669
    %v2300 = vpack.c.b16 %v1706, %v1688
    %v2301 = vpack.c.b16 %v1707, %v1689
    %v2302 = vpack.c.b16 %v1708, %v1690
    %v2303 = vpack.c.b16 %v1709, %v1691
    %v2304 = vpack.c.b16 %v1710, %v1692
    %v2305 = vpack.c.b16 %v1711, %v1693
    %v2306 = vpack.c.b16 %v1712, %v1694
    %v2307 = vpack.c.b16 %v1713, %v1695
    %v2308 = vpack.c.b16 %v1714, %v1696
    %v2309 = vpack.c.b16 %v1715, %v1697
    %v2310 = vpack.c.b16 %v1716, %v1698
    %v2311 = vpack.c.b16 %v1717, %v1699
    %v2312 = vpack.c.b16 %v1718, %v1700
    %v2313 = vpack.c.b16 %v1719, %v1701
    %v2314 = vpack.c.b16 %v1720, %v1702
    %v2315 = vpack.c.b16 %v1721, %v1703
    %v2316 = vpack.c.b16 %v1722, %v1704
    %v2317 = vpack.c.b16 %v1723, %v1705
    %v2318 = vpack.c.b16 %v1742, %v1724
    %v2319 = vpack.c.b16 %v1743, %v1725
    %v2320 = vpack.c.b16 %v1744, %v1726
    %v2321 = vpack.c.b16 %v1745, %v1727
    %v2322 = vpack.c.b16 %v1746, %v1728
    %v2323 = vpack.c.b16 %v1747, %v1729
    %v2324 = vpack.c.b16 %v1748, %v1730
    %v2325 = vpack.c.b16 %v1749, %v1731
    %v2326 = vpack.c.b16 %v1750, %v1732
    %v2327 = vpack.c.b16 %v1751, %v1733
    %v2328 = vpack.c.b16 %v1752, %v1734
    %v2329 = vpack.c.b16 %v1753, %v1735
    %v2330 = vpack.c.b16 %v1754, %v1736
    %v2331 = vpack.c.b16 %v1755, %v1737
    %v2332 = vpack.c.b16 %v1756, %v1738
    %v2333 = vpack.c.b16 %v1757, %v1739
    %v2334 = vpack.c.b16 %v1758, %v1740
    %v2335 = vpack.c.b16 %v1759, %v1741
    %v2336 = vpack.c.b16 %v1778, %v1760
    %v2337 = vpack.c.b16 %v1779, %v1761
    %v2338 = vpack.c.b16 %v1780, %v1762
    %v2339 = vpack.c.b16 %v1781, %v1763
    %v2340 = vpack.c.b16 %v1782, %v1764
    %v2341 = vpack.c.b16 %v1783, %v1765
    %v2342 = vpack.c.b16 %v1784, %v1766
    %v2343 = vpack.c.b16 %v1785, %v1767
    %v2344 = vpack.c.b16 %v1786, %v1768
    %v2345 = vpack.c.b16 %v1787, %v1769
    %v2346 = vpack.c.b16 %v1788, %v1770
    %v2347 = vpack.c.b16 %v1789, %v1771
    %v2348 = vpack.c.b16 %v1790, %v1772
    %v2349 = vpack.c.b16 %v1791, %v1773
    %v2350 = vpack.c.b16 %v1792, %v1774
    %v2351 = vpack.c.b16 %v1793, %v1775
    %v2352 = vpack.c.b16 %v1794, %v1776
    %v2353 = vpack.c.b16 %v1795, %v1777
    %v2354 = vpack.c.b16 %v1814, %v1796
    %v2355 = vpack.c.b16 %v1815, %v1797
    %v2356 = vpack.c.b16 %v1816, %v1798
    %v2357 = vpack.c.b16 %v1817, %v1799
    %v2358 = vpack.c.b16 %v1818, %v1800
    %v2359 = vpack.c.b16 %v1819, %v1801
    %v2360 = vpack.c.b16 %v1820, %v1802
    %v2361 = vpack.c.b16 %v1821, %v1803
    %v2362 = vpack.c.b16 %v1822, %v1804
    %v2363 = vpack.c.b16 %v1823, %v1805
    %v2364 = vpack.c.b16 %v1824, %v1806
    %v2365 = vpack.c.b16 %v1825, %v1807
    %v2366 = vpack.c.b16 %v1826, %v1808
    %v2367 = vpack.c.b16 %v1827, %v1809
    %v2368 = vpack.c.b16 %v1828, %v1810
    %v2369 = vpack.c.b16 %v1829, %v1811
    %v2370 = vpack.c.b16 %v1830, %v1812
    %v2371 = vpack.c.b16 %v1831, %v1813
    %v2372 = vpack.c.b16 %v1850, %v1832
    %v2373 = vpack.c.b16 %v1851, %v1833
    %v2374 = vpack.c.b16 %v1852, %v1834
    %v2375 = vpack.c.b16 %v1853, %v1835
    %v2376 = vpack.c.b16 %v1854, %v1836
    %v2377 = vpack.c.b16 %v1855, %v1837
    %v2378 = vpack.c.b16 %v1856, %v1838
    %v2379 = vpack.c.b16 %v1857, %v1839
    %v2380 = vpack.c.b16 %v1858, %v1840
    %v2381 = vpack.c.b16 %v1859, %v1841
    %v2382 = vpack.c.b16 %v1860, %v1842
    %v2383 = vpack.c.b16 %v1861, %v1843
    %v2384 = vpack.c.b16 %v1862, %v1844
    %v2385 = vpack.c.b16 %v1863, %v1845
    %v2386 = vpack.c.b16 %v1864, %v1846
    %v2387 = vpack.c.b16 %v1865, %v1847
    %v2388 = vpack.c.b16 %v1866, %v1848
    %v2389 = vpack.c.b16 %v1867, %v1849
    %v2390 = vpack.c.b16 %v1886, %v1868
    %v2391 = vpack.c.b16 %v1887, %v1869
    %v2392 = vpack.c.b16 %v1888, %v1870
    %v2393 = vpack.c.b16 %v1889, %v1871
    %v2394 = vpack.c.b16 %v1890, %v1872
    %v2395 = vpack.c.b16 %v1891, %v1873
    %v2396 = vpack.c.b16 %v1892, %v1874
    %v2397 = vpack.c.b16 %v1893, %v1875
    %v2398 = vpack.c.b16 %v1894, %v1876
    %v2399 = vpack.c.b16 %v1895, %v1877
    %v2400 = vpack.c.b16 %v1896, %v1878
    %v2401 = vpack.c.b16 %v1897, %v1879
    %v2402 = vpack.c.b16 %v1898, %v1880
    %v2403 = vpack.c.b16 %v1899, %v1881
    %v2404 = vpack.c.b16 %v1900, %v1882
    %v2405 = vpack.c.b16 %v1901, %v1883
    %v2406 = vpack.c.b16 %v1902, %v1884
    %v2407 = vpack.c.b16 %v1903, %v1885
    %v2408 = vpack.c.b16 %v1922, %v1904
    %v2409 = vpack.c.b16 %v1923, %v1905
    %v2410 = vpack.c.b16 %v1924, %v1906
    %v2411 = vpack.c.b16 %v1925, %v1907
    %v2412 = vpack.c.b16 %v1926, %v1908
    %v2413 = vpack.c.b16 %v1927, %v1909
    %v2414 = vpack.c.b16 %v1928, %v1910
    %v2415 = vpack.c.b16 %v1929, %v1911
    %v2416 = vpack.c.b16 %v1930, %v1912
    %v2417 = vpack.c.b16 %v1931, %v1913
    %v2418 = vpack.c.b16 %v1932, %v1914
    %v2419 = vpack.c.b16 %v1933, %v1915
    %v2420 = vpack.c.b16 %v1934, %v1916
    %v2421 = vpack.c.b16 %v1935, %v1917
    %v2422 = vpack.c.b16 %v1936, %v1918
    %v2423 = vpack.c.b16 %v1937, %v1919
    %v2424 = vpack.c.b16 %v1938, %v1920
    %v2425 = vpack.c.b16 %v1939, %v1921
    %v2426 = vpack.c.b16 %v1958, %v1940
    %v2427 = vpack.c.b16 %v1959, %v1941
    %v2428 = vpack.c.b16 %v1960, %v1942
    %v2429 = vpack.c.b16 %v1961, %v1943
    %v2430 = vpack.c.b16 %v1962, %v1944
    %v2431 = vpack.c.b16 %v1963, %v1945
    %v2432 = vpack.c.b16 %v1964, %v1946
    %v2433 = vpack.c.b16 %v1965, %v1947
    %v2434 = vpack.c.b16 %v1966, %v1948
    %v2435 = vpack.c.b16 %v1967, %v1949
    %v2436 = vpack.c.b16 %v1968, %v1950
    %v2437 = vpack.c.b16 %v1969, %v1951
    %v2438 = vpack.c.b16 %v1970, %v1952
    %v2439 = vpack.c.b16 %v1971, %v1953
    %v2440 = vpack.c.b16 %v1972, %v1954
    %v2441 = vpack.c.b16 %v1973, %v1955
    %v2442 = vpack.c.b16 %v1974, %v1956
    %v2443 = vpack.c.b16 %v1975, %v1957
    %v2444 = vpack.c.b16 %v1994, %v1976
    %v2445 = vpack.c.b16 %v1995, %v1977
    %v2446 = vpack.c.b16 %v1996, %v1978
    %v2447 = vpack.c.b16 %v1997, %v1979
    %v2448 = vpack.c.b16 %v1998, %v1980
    %v2449 = vpack.c.b16 %v1999, %v1981
    %v2450 = vpack.c.b16 %v2000, %v1982
    %v2451 = vpack.c.b16 %v2001, %v1983
    %v2452 = vpack.c.b16 %v2002, %v1984
    %v2453 = vpack.c.b16 %v2003, %v1985
    %v2454 = vpack.c.b16 %v2004, %v1986
    %v2455 = vpack.c.b16 %v2005, %v1987
    %v2456 = vpack.c.b16 %v2006, %v1988
    %v2457 = vpack.c.b16 %v2007, %v1989
    %v2458 = vpack.c.b16 %v2008, %v1990
    %v2459 = vpack.c.b16 %v2009, %v1991
    %v2460 = vpack.c.b16 %v2010, %v1992
    %v2461 = vpack.c.b16 %v2011, %v1993
    %v2462 = vpack.c.b16 %v2030, %v2012
    %v2463 = vpack.c.b16 %v2031, %v2013
    %v2464 = vpack.c.b16 %v2032, %v2014
    %v2465 = vpack.c.b16 %v2033, %v2015
    %v2466 = vpack.c.b16 %v2034, %v2016
    %v2467 = vpack.c.b16 %v2035, %v2017
    %v2468 = vpack.c.b16 %v2036, %v2018
    %v2469 = vpack.c.b16 %v2037, %v2019
    %v2470 = vpack.c.b16 %v2038, %v2020
    %v2471 = vpack.c.b16 %v2039, %v2021
    %v2472 = vpack.c.b16 %v2040, %v2022
    %v2473 = vpack.c.b16 %v2041, %v2023
    %v2474 = vpack.c.b16 %v2042, %v2024
    %v2475 = vpack.c.b16 %v2043, %v2025
    %v2476 = vpack.c.b16 %v2044, %v2026
    %v2477 = vpack.c.b16 %v2045, %v2027
    %v2478 = vpack.c.b16 %v2046, %v2028
    %v2479 = vpack.c.b16 %v2047, %v2029
    %v3200 = vunpack.c.l.b16 %v464
    %v3201 = vunpack.c.l.b16 %v465
    %v3202 = vunpack.c.l.b16 %v466
    %v3203 = vunpack.c.l.b16 %v467
    %v3204 = vunpack.c.l.b16 %v468
    %v3205 = vunpack.c.l.b16 %v469
    %v3206 = vunpack.c.l.b16 %v470
    %v3207 = vunpack.c.l.b16 %v471
    %v3208 = vunpack.c.l.b16 %v472
    %v3209 = vunpack.c.l.b16 %v473
    %v3210 = vunpack.c.l.b16 %v474
    %v3211 = vunpack.c.l.b16 %v475
    %v3212 = vunpack.c.l.b16 %v476
    %v3213 = vunpack.c.l.b16 %v477
    %v3214 = vunpack.c.l.b16 %v478
    %v3215 = vunpack.c.l.b16 %v479
    %v3216 = vunpack.c.l.b16 %v480
    %v3217 = vunpack.c.l.b16 %v481
    %v3218 = vunpack.c.l.b16 %v482
    %v3219 = vunpack.c.l.b16 %v483
    %v3220 = vunpack.c.l.b16 %v484
    %v3221 = vunpack.c.l.b16 %v485
    %v3222 = vunpack.c.l.b16 %v486
    %v3223 = vunpack.c.l.b16 %v487
    %v3224 = vunpack.c.l.b16 %v488
    %v3225 = vunpack.c.l.b16 %v489
    %v3226 = vunpack.c.l.b16 %v490
    %v3227 = vunpack.c.l.b16 %v491
    %v3228 = vunpack.c.l.b16 %v492
    %v3229 = vunpack.c.l.b16 %v493
    %v3230 = vunpack.c.l.b16 %v494
    %v3231 = vunpack.c.l.b16 %v495
    %v3232 = vunpack.c.l.b16 %v496
    %v3233 = vunpack.c.l.b16 %v497
    %v3234 = vunpack.c.l.b16 %v498
    %v3235 = vunpack.c.l.b16 %v499
    %v3236 = vunpack.c.l.b16 %v500
    %v3237 = vunpack.c.l.b16 %v501
    %v3238 = vunpack.c.l.b16 %v502
    %v3239 = vunpack.c.l.b16 %v503
    %v3240 = vunpack.c.l.b16 %v504
    %v3241 = vunpack.c.l.b16 %v505
    %v3242 = vunpack.c.l.b16 %v506
    %v3243 = vunpack.c.l.b16 %v507
    %v3244 = vunpack.c.l.b16 %v508
    %v3245 = vunpack.c.l.b16 %v509
    %v3246 = vunpack.c.l.b16 %v510
    %v3247 = vunpack.c.l.b16 %v511
    %v3248 = vunpack.c.l.b16 %v512
    %v3249 = vunpack.c.l.b16 %v513
    %v3250 = vunpack.c.l.b16 %v514
    %v3251 = vunpack.c.l.b16 %v515
    %v3252 = vunpack.c.l.b16 %v516
    %v3253 = vunpack.c.l.b16 %v517
    %v3254 = vunpack.c.l.b16 %v518
    %v3255 = vunpack.c.l.b16 %v519
    %v3256 = vunpack.c.l.b16 %v520
    %v3257 = vunpack.c.l.b16 %v521
    %v3258 = vunpack.c.l.b16 %v522
    %v3259 = vunpack.c.l.b16 %v523
    %v3260 = vunpack.c.l.b16 %v524
    %v3261 = vunpack.c.l.b16 %v525
    %v3262 = vunpack.c.l.b16 %v526
    %v3263 = vunpack.c.l.b16 %v527
    %v3264 = vunpack.c.l.b16 %v528
    %v3265 = vunpack.c.l.b16 %v529
    %v3266 = vunpack.c.l.b16 %v530
    %v3267 = vunpack.c.l.b16 %v531
    %v3268 = vunpack.c.l.b16 %v532
    %v3269 = vunpack.c.l.b16 %v533
    %v3270 = vunpack.c.l.b16 %v534
    %v3271 = vunpack.c.l.b16 %v535
    %v3272 = vunpack.c.l.b16 %v536
    %v3273 = vunpack.c.l.b16 %v537
    %v3274 = vunpack.c.l.b16 %v538
    %v3275 = vunpack.c.l.b16 %v539
    %v3276 = vunpack.c.l.b16 %v540
    %v3277 = vunpack.c.l.b16 %v541
    %v3278 = vunpack.c.l.b16 %v542
    %v3279 = vunpack.c.l.b16 %v543
    %v3280 = vunpack.c.l.b16 %v544
    %v3281 = vunpack.c.l.b16 %v545
    %v3282 = vunpack.c.l.b16 %v546
    %v3283 = vunpack.c.l.b16 %v547
    %v3284 = vunpack.c.l.b16 %v548
    %v3285 = vunpack.c.l.b16 %v549
    %v3286 = vunpack.c.l.b16 %v550
    %v3287 = vunpack.c.l.b16 %v551
    %v3288 = vunpack.c.l.b16 %v552
    %v3289 = vunpack.c.l.b16 %v553
    %v3290 = vunpack.c.l.b16 %v554
    %v3291 = vunpack.c.l.b16 %v555
    %v3292 = vunpack.c.l.b16 %v556
    %v3293 = vunpack.c.l.b16 %v557
    %v3294 = vunpack.c.l.b16 %v558
    %v3295 = vunpack.c.l.b16 %v559
    %v3296 = vunpack.c.l.b16 %v560
    %v3297 = vunpack.c.l.b16 %v561
    %v3298 = vunpack.c.l.b16 %v562
    %v3299 = vunpack.c.l.b16 %v563
    %v3300 = vunpack.c.l.b16 %v564
    %v3301 = vunpack.c.l.b16 %v565
    %v3302 = vunpack.c.l.b16 %v566
    %v3303 = vunpack.c.l.b16 %v567
    %v3304 = vunpack.c.l.b16 %v568
    %v3305 = vunpack.c.l.b16 %v569
    %v3306 = vunpack.c.l.b16 %v570
    %v3307 = vunpack.c.l.b16 %v571
    %v3308 = vunpack.c.l.b16 %v572
    %v3309 = vunpack.c.l.b16 %v573
    %v3310 = vunpack.c.l.b16 %v574
    %v3311 = vunpack.c.l.b16 %v575
    %v3312 = vunpack.c.l.b16 %v576
    %v3313 = vunpack.c.l.b16 %v577
    %v3314 = vunpack.c.l.b16 %v578
    %v3315 = vunpack.c.l.b16 %v579
    %v3316 = vunpack.c.l.b16 %v580
    %v3317 = vunpack.c.l.b16 %v581
    %v3318 = vunpack.c.l.b16 %v582
    %v3319 = vunpack.c.l.b16 %v583
    %v3320 = vunpack.c.l.b16 %v584
    %v3321 = vunpack.c.l.b16 %v585
    %v3322 = vunpack.c.l.b16 %v586
    %v3323 = vunpack.c.l.b16 %v587
    %v3324 = vunpack.c.l.b16 %v588
    %v3325 = vunpack.c.l.b16 %v589
    %v3326 = vunpack.c.l.b16 %v590
    %v3327 = vunpack.c.l.b16 %v591
    %v3328 = vunpack.c.l.b16 %v592
    %v3329 = vunpack.c.l.b16 %v593
    %v3330 = vunpack.c.l.b16 %v594
    %v3331 = vunpack.c.l.b16 %v595
    %v3332 = vunpack.c.l.b16 %v596
    %v3333 = vunpack.c.l.b16 %v597
    %v3334 = vunpack.c.l.b16 %v598
    %v3335 = vunpack.c.l.b16 %v599
    %v3336 = vunpack.c.l.b16 %v600
    %v3337 = vunpack.c.l.b16 %v601
    %v3338 = vunpack.c.l.b16 %v602
    %v3339 = vunpack.c.l.b16 %v603
    %v3340 = vunpack.c.l.b16 %v604
    %v3341 = vunpack.c.l.b16 %v605
    %v3342 = vunpack.c.l.b16 %v606
    %v3343 = vunpack.c.l.b16 %v607
    %v3344 = vunpack.c.l.b16 %v608
    %v3345 = vunpack.c.l.b16 %v609
    %v3346 = vunpack.c.l.b16 %v610
    %v3347 = vunpack.c.l.b16 %v611
    %v3348 = vunpack.c.l.b16 %v612
    %v3349 = vunpack.c.l.b16 %v613
    %v3350 = vunpack.c.l.b16 %v614
    %v3351 = vunpack.c.l.b16 %v615
    %v3352 = vunpack.c.l.b16 %v616
    %v3353 = vunpack.c.l.b16 %v617
    %v3354 = vunpack.c.l.b16 %v618
    %v3355 = vunpack.c.l.b16 %v619
    %v3356 = vunpack.c.l.b16 %v620
    %v3357 = vunpack.c.l.b16 %v621
    %v3358 = vunpack.c.l.b16 %v622
    %v3359 = vunpack.c.l.b16 %v623
    %v3360 = vunpack.c.l.b16 %v624
    %v3361 = vunpack.c.l.b16 %v625
    %v3362 = vunpack.c.l.b16 %v626
    %v3363 = vunpack.c.l.b16 %v627
    %v3364 = vunpack.c.l.b16 %v628
    %v3365 = vunpack.c.l.b16 %v629
    %v3366 = vunpack.c.l.b16 %v630
    %v3367 = vunpack.c.l.b16 %v631
    %v3368 = vunpack.c.l.b16 %v632
    %v3369 = vunpack.c.l.b16 %v633
    %v3370 = vunpack.c.l.b16 %v634
    %v3371 = vunpack.c.l.b16 %v635
    %v3372 = vunpack.c.l.b16 %v636
    %v3373 = vunpack.c.l.b16 %v637
    %v3374 = vunpack.c.l.b16 %v638
    %v3375 = vunpack.c.l.b16 %v639
    %v3376 = vunpack.c.l.b16 %v640
    %v3377 = vunpack.c.l.b16 %v641
    %v3378 = vunpack.c.l.b16 %v642
    %v3379 = vunpack.c.l.b16 %v643
    %v3380 = vunpack.c.l.b16 %v644
    %v3381 = vunpack.c.l.b16 %v645
    %v3382 = vunpack.c.l.b16 %v646
    %v3383 = vunpack.c.l.b16 %v647
    %v3384 = vunpack.c.l.b16 %v648
    %v3385 = vunpack.c.l.b16 %v649
    %v3386 = vunpack.c.l.b16 %v650
    %v3387 = vunpack.c.l.b16 %v651
    %v3388 = vunpack.c.l.b16 %v652
    %v3389 = vunpack.c.l.b16 %v653
    %v3390 = vunpack.c.l.b16 %v654
    %v3391 = vunpack.c.l.b16 %v655
    %v3392 = vunpack.c.l.b16 %v656
    %v3393 = vunpack.c.l.b16 %v657
    %v3394 = vunpack.c.l.b16 %v658
    %v3395 = vunpack.c.l.b16 %v659
    %v3396 = vunpack.c.l.b16 %v660
    %v3397 = vunpack.c.l.b16 %v661
    %v3398 = vunpack.c.l.b16 %v662
    %v3399 = vunpack.c.l.b16 %v663
    %v3400 = vunpack.c.l.b16 %v664
    %v3401 = vunpack.c.l.b16 %v665
    %v3402 = vunpack.c.l.b16 %v666
    %v3403 = vunpack.c.l.b16 %v667
    %v3404 = vunpack.c.l.b16 %v668
    %v3405 = vunpack.c.l.b16 %v669
    %v3406 = vunpack.c.l.b16 %v670
    %v3407 = vunpack.c.l.b16 %v671
    %v3408 = vunpack.c.l.b16 %v672
    %v3409 = vunpack.c.l.b16 %v673
    %v3410 = vunpack.c.l.b16 %v674
    %v3411 = vunpack.c.l.b16 %v675
    %v3412 = vunpack.c.l.b16 %v676
    %v3413 = vunpack.c.l.b16 %v677
    %v3414 = vunpack.c.l.b16 %v678
    %v3415 = vunpack.c.l.b16 %v679
    %v3416 = vunpack.c.l.b16 %v680
    %v3417 = vunpack.c.l.b16 %v681
    %v3418 = vunpack.c.l.b16 %v682
    %v3419 = vunpack.c.l.b16 %v683
    %v3420 = vunpack.c.l.b16 %v684
    %v3421 = vunpack.c.l.b16 %v685
    %v3422 = vunpack.c.l.b16 %v686
    %v3423 = vunpack.c.l.b16 %v687
    %v3424 = vunpack.c.l.b16 %v688
    %v3425 = vunpack.c.l.b16 %v689
    %v3426 = vunpack.c.l.b16 %v690
    %v3427 = vunpack.c.l.b16 %v691
    %v3428 = vunpack.c.l.b16 %v692
    %v3429 = vunpack.c.l.b16 %v693
    %v3430 = vunpack.c.l.b16 %v694
    %v3431 = vunpack.c.l.b16 %v695
    %v3432 = vunpack.c.l.b16 %v696
    %v3433 = vunpack.c.l.b16 %v697
    %v3434 = vunpack.c.l.b16 %v698
    %v3435 = vunpack.c.l.b16 %v699
    %v3436 = vunpack.c.l.b16 %v700
    %v3437 = vunpack.c.l.b16 %v701
    %v3438 = vunpack.c.l.b16 %v702
    %v3439 = vunpack.c.l.b16 %v703
    %v3440 = vunpack.c.l.b16 %v704
    %v3441 = vunpack.c.l.b16 %v705
    %v3442 = vunpack.c.l.b16 %v706
    %v3443 = vunpack.c.l.b16 %v707
    %v3444 = vunpack.c.l.b16 %v708
    %v3445 = vunpack.c.l.b16 %v709
    %v3446 = vunpack.c.l.b16 %v710
    %v3447 = vunpack.c.l.b16 %v711
    %v3448 = vunpack.c.l.b16 %v712
    %v3449 = vunpack.c.l.b16 %v713
    %v3450 = vunpack.c.l.b16 %v714
    %v3451 = vunpack.c.l.b16 %v715
    %v3452 = vunpack.c.l.b16 %v716
    %v3453 = vunpack.c.l.b16 %v717
    %v3454 = vunpack.c.l.b16 %v718
    %v3455 = vunpack.c.l.b16 %v719
    %v3456 = vunpack.c.l.b16 %v720
    %v3457 = vunpack.c.l.b16 %v721
    %v3458 = vunpack.c.l.b16 %v722
    %v3459 = vunpack.c.l.b16 %v723
    %v3460 = vunpack.c.l.b16 %v724
    %v3461 = vunpack.c.l.b16 %v725
    %v3462 = vunpack.c.l.b16 %v726
    %v3463 = vunpack.c.l.b16 %v727
    %v3464 = vunpack.c.l.b16 %v728
    %v3465 = vunpack.c.l.b16 %v729
    %v3466 = vunpack.c.l.b16 %v730
    %v3467 = vunpack.c.l.b16 %v731
    %v3468 = vunpack.c.l.b16 %v732
    %v3469 = vunpack.c.l.b16 %v733
    %v3470 = vunpack.c.l.b16 %v734
    %v3471 = vunpack.c.l.b16 %v735
    %v3472 = vunpack.c.l.b16 %v736
    %v3473 = vunpack.c.l.b16 %v737
    %v3474 = vunpack.c.l.b16 %v738
    %v3475 = vunpack.c.l.b16 %v739
    %v3476 = vunpack.c.l.b16 %v740
    %v3477 = vunpack.c.l.b16 %v741
    %v3478 = vunpack.c.l.b16 %v742
    %v3479 = vunpack.c.l.b16 %v743
    %v3480 = vunpack.c.l.b16 %v744
    %v3481 = vunpack.c.l.b16 %v745
    %v3482 = vunpack.c.l.b16 %v746
    %v3483 = vunpack.c.l.b16 %v747
    %v3484 = vunpack.c.l.b16 %v748
    %v3485 = vunpack.c.l.b16 %v749
    %v3486 = vunpack.c.l.b16 %v750
    %v3487 = vunpack.c.l.b16 %v751
    %v3488 = vpack.c.b16 %v3201, %v3200
    %v3489 = vpack.c.b16 %v3203, %v3202
    %v3490 = vpack.c.b16 %v3205, %v3204
    %v3491 = vpack.c.b16 %v3207, %v3206
    %v3492 = vpack.c.b16 %v3209, %v3208
    %v3493 = vpack.c.b16 %v3211, %v3210
    %v3494 = vpack.c.b16 %v3213, %v3212
    %v3495 = vpack.c.b16 %v3215, %v3214
    %v3496 = vpack.c.b16 %v3217, %v3216
    %v3497 = vpack.c.b16 %v3219, %v3218
    %v3498 = vpack.c.b16 %v3221, %v3220
    %v3499 = vpack.c.b16 %v3223, %v3222
    %v3500 = vpack.c.b16 %v3225, %v3224
    %v3501 = vpack.c.b16 %v3227, %v3226
    %v3502 = vpack.c.b16 %v3229, %v3228
    %v3503 = vpack.c.b16 %v3231, %v3230
    %v3504 = vpack.c.b16 %v3233, %v3232
    %v3505 = vpack.c.b16 %v3235, %v3234
    %v3506 = vpack.c.b16 %v3237, %v3236
    %v3507 = vpack.c.b16 %v3239, %v3238
    %v3508 = vpack.c.b16 %v3241, %v3240
    %v3509 = vpack.c.b16 %v3243, %v3242
    %v3510 = vpack.c.b16 %v3245, %v3244
    %v3511 = vpack.c.b16 %v3247, %v3246
    %v3512 = vpack.c.b16 %v3249, %v3248
    %v3513 = vpack.c.b16 %v3251, %v3250
    %v3514 = vpack.c.b16 %v3253, %v3252
    %v3515 = vpack.c.b16 %v3255, %v3254
    %v3516 = vpack.c.b16 %v3257, %v3256
    %v3517 = vpack.c.b16 %v3259, %v3258
    %v3518 = vpack.c.b16 %v3261, %v3260
    %v3519 = vpack.c.b16 %v3263, %v3262
    %v3520 = vpack.c.b16 %v3265, %v3264
    %v3521 = vpack.c.b16 %v3267, %v3266
    %v3522 = vpack.c.b16 %v3269, %v3268
    %v3523 = vpack.c.b16 %v3271, %v3270
    %v3524 = vpack.c.b16 %v3273, %v3272
    %v3525 = vpack.c.b16 %v3275, %v3274
    %v3526 = vpack.c.b16 %v3277, %v3276
    %v3527 = vpack.c.b16 %v3279, %v3278
    %v3528 = vpack.c.b16 %v3281, %v3280
    %v3529 = vpack.c.b16 %v3283, %v3282
    %v3530 = vpack.c.b16 %v3285, %v3284
    %v3531 = vpack.c.b16 %v3287, %v3286
    %v3532 = vpack.c.b16 %v3289, %v3288
    %v3533 = vpack.c.b16 %v3291, %v3290
    %v3534 = vpack.c.b16 %v3293, %v3292
    %v3535 = vpack.c.b16 %v3295, %v3294
    %v3536 = vpack.c.b16 %v3297, %v3296
    %v3537 = vpack.c.b16 %v3299, %v3298
    %v3538 = vpack.c.b16 %v3301, %v3300
    %v3539 = vpack.c.b16 %v3303, %v3302
    %v3540 = vpack.c.b16 %v3305, %v3304
    %v3541 = vpack.c.b16 %v3307, %v3306
    %v3542 = vpack.c.b16 %v3309, %v3308
    %v3543 = vpack.c.b16 %v3311, %v3310
    %v3544 = vpack.c.b16 %v3313, %v3312
    %v3545 = vpack.c.b16 %v3315, %v3314
    %v3546 = vpack.c.b16 %v3317, %v3316
    %v3547 = vpack.c.b16 %v3319, %v3318
    %v3548 = vpack.c.b16 %v3321, %v3320
    %v3549 = vpack.c.b16 %v3323, %v3322
    %v3550 = vpack.c.b16 %v3325, %v3324
    %v3551 = vpack.c.b16 %v3327, %v3326
    %v3552 = vpack.c.b16 %v3329, %v3328
    %v3553 = vpack.c.b16 %v3331, %v3330
    %v3554 = vpack.c.b16 %v3333, %v3332
    %v3555 = vpack.c.b16 %v3335, %v3334
    %v3556 = vpack.c.b16 %v3337, %v3336
    %v3557 = vpack.c.b16 %v3339, %v3338
    %v3558 = vpack.c.b16 %v3341, %v3340
    %v3559 = vpack.c.b16 %v3343, %v3342
    %v3560 = vpack.c.b16 %v3345, %v3344
    %v3561 = vpack.c.b16 %v3347, %v3346
    %v3562 = vpack.c.b16 %v3349, %v3348
    %v3563 = vpack.c.b16 %v3351, %v3350
    %v3564 = vpack.c.b16 %v3353, %v3352
    %v3565 = vpack.c.b16 %v3355, %v3354
    %v3566 = vpack.c.b16 %v3357, %v3356
    %v3567 = vpack.c.b16 %v3359, %v3358
    %v3568 = vpack.c.b16 %v3361, %v3360
    %v3569 = vpack.c.b16 %v3363, %v3362
    %v3570 = vpack.c.b16 %v3365, %v3364
    %v3571 = vpack.c.b16 %v3367, %v3366
    %v3572 = vpack.c.b16 %v3369, %v3368
    %v3573 = vpack.c.b16 %v3371, %v3370
    %v3574 = vpack.c.b16 %v3373, %v3372
    %v3575 = vpack.c.b16 %v3375, %v3374
    %v3576 = vpack.c.b16 %v3377, %v3376
    %v3577 = vpack.c.b16 %v3379, %v3378
    %v3578 = vpack.c.b16 %v3381, %v3380
    %v3579 = vpack.c.b16 %v3383, %v3382
    %v3580 = vpack.c.b16 %v3385, %v3384
    %v3581 = vpack.c.b16 %v3387, %v3386
    %v3582 = vpack.c.b16 %v3389, %v3388
    %v3583 = vpack.c.b16 %v3391, %v3390
    %v3584 = vpack.c.b16 %v3393, %v3392
    %v3585 = vpack.c.b16 %v3395, %v3394
    %v3586 = vpack.c.b16 %v3397, %v3396
    %v3587 = vpack.c.b16 %v3399, %v3398
    %v3588 = vpack.c.b16 %v3401, %v3400
    %v3589 = vpack.c.b16 %v3403, %v3402
    %v3590 = vpack.c.b16 %v3405, %v3404
    %v3591 = vpack.c.b16 %v3407, %v3406
    %v3592 = vpack.c.b16 %v3409, %v3408
    %v3593 = vpack.c.b16 %v3411, %v3410
    %v3594 = vpack.c.b16 %v3413, %v3412
    %v3595 = vpack.c.b16 %v3415, %v3414
    %v3596 = vpack.c.b16 %v3417, %v3416
    %v3597 = vpack.c.b16 %v3419, %v3418
    %v3598 = vpack.c.b16 %v3421, %v3420
    %v3599 = vpack.c.b16 %v3423, %v3422
    %v3600 = vpack.c.b16 %v3425, %v3424
    %v3601 = vpack.c.b16 %v3427, %v3426
    %v3602 = vpack.c.b16 %v3429, %v3428
    %v3603 = vpack.c.b16 %v3431, %v3430
    %v3604 = vpack.c.b16 %v3433, %v3432
    %v3605 = vpack.c.b16 %v3435, %v3434
    %v3606 = vpack.c.b16 %v3437, %v3436
    %v3607 = vpack.c.b16 %v3439, %v3438
    %v3608 = vpack.c.b16 %v3441, %v3440
    %v3609 = vpack.c.b16 %v3443, %v3442
    %v3610 = vpack.c.b16 %v3445, %v3444
    %v3611 = vpack.c.b16 %v3447, %v3446
    %v3612 = vpack.c.b16 %v3449, %v3448
    %v3613 = vpack.c.b16 %v3451, %v3450
    %v3614 = vpack.c.b16 %v3453, %v3452
    %v3615 = vpack.c.b16 %v3455, %v3454
    %v3616 = vpack.c.b16 %v3457, %v3456
    %v3617 = vpack.c.b16 %v3459, %v3458
    %v3618 = vpack.c.b16 %v3461, %v3460
    %v3619 = vpack.c.b16 %v3463, %v3462
    %v3620 = vpack.c.b16 %v3465, %v3464
    %v3621 = vpack.c.b16 %v3467, %v3466
    %v3622 = vpack.c.b16 %v3469, %v3468
    %v3623 = vpack.c.b16 %v3471, %v3470
    %v3624 = vpack.c.b16 %v3473, %v3472
    %v3625 = vpack.c.b16 %v3475, %v3474
    %v3626 = vpack.c.b16 %v3477, %v3476
    %v3627 = vpack.c.b16 %v3479, %v3478
    %v3628 = vpack.c.b16 %v3481, %v3480
    %v3629 = vpack.c.b16 %v3483, %v3482
    %v3630 = vpack.c.b16 %v3485, %v3484
    %v3631 = vpack.c.b16 %v3487, %v3486
    %3776 = vmatprep.subr.bf16.mxu0 0
    %3777 = vmatpush1.bf16.msra.mxu0 %v3495
    %3778 = vmatprep.subr.bf16.mxu0 0
    %3779 = vmatpush1.bf16.msra.mxu0 %v3494
    %3780 = vmatprep.subr.bf16.mxu0 0
    %3781 = vmatpush1.bf16.msra.mxu0 %v3493
    %3782 = vmatprep.subr.bf16.mxu0 0
    %3783 = vmatpush1.bf16.msra.mxu0 %v3492
    %3784 = vmatprep.subr.bf16.mxu0 0
    %3785 = vmatpush1.bf16.msra.mxu0 %v3491
    %3786 = vmatprep.subr.bf16.mxu0 0
    %3787 = vmatpush1.bf16.msra.mxu0 %v3490
    %3788 = vmatprep.subr.bf16.mxu0 0
    %3789 = vmatpush1.bf16.msra.mxu0 %v3489
    %3790 = vmatprep.subr.bf16.mxu0 0
    %3791 = vmatpush1.bf16.msra.mxu0 %v3488
    %3792 = vmatprep.subr.bf16.mxu0 0
    %3793 = vmatpush2.bf16.msra.mxu0 %v3503
    %3794 = vmatprep.subr.bf16.mxu0 0
    %3795 = vmatpush2.bf16.msra.mxu0 %v3502
    %3796 = vmatprep.subr.bf16.mxu0 0
    %3797 = vmatpush2.bf16.msra.mxu0 %v3501
    %3798 = vmatprep.subr.bf16.mxu0 0
    %3799 = vmatpush2.bf16.msra.mxu0 %v3500
    %3800 = vmatprep.subr.bf16.mxu0 0
    %3801 = vmatpush2.bf16.msra.mxu0 %v3499
    %3802 = vmatprep.subr.bf16.mxu0 0
    %3803 = vmatpush2.bf16.msra.mxu0 %v3498
    %3804 = vmatprep.subr.bf16.mxu0 0
    %3805 = vmatpush2.bf16.msra.mxu0 %v3497
    %3806 = vmatprep.subr.bf16.mxu0 0
    %3807 = vmatpush2.bf16.msra.mxu0 %v3496
    %3808 = vmatprep.mubr.bf16.mxu0 %v2049
    %3809 = vmatmul.mubr.bf16.gmra.mxu0 %v2048
    %v3810 = vpop.f32.mrf.mxu0
    %v3811 = vadd.f32 0.0, %v3810
    %v3812 = vpop.f32.mrf.mxu0
    %v3813 = vpop.f32.mrf.mxu0
    %v3814 = vadd.f32 0.0, %v3813
    %v3815 = vpop.f32.mrf.mxu0
    %3816 = vmatprep.mubr.bf16.mxu0 %v2067
    %3817 = vmatmul.mubr.bf16.gmra.mxu0 %v2066
    %v3818 = vpop.f32.mrf.mxu0
    %v3819 = vadd.f32 0.0, %v3818
    %v3820 = vpop.f32.mrf.mxu0
    %v3821 = vpop.f32.mrf.mxu0
    %v3822 = vadd.f32 0.0, %v3821
    %v3823 = vpop.f32.mrf.mxu0
    %3824 = vmatprep.mubr.bf16.mxu0 %v2085
    %3825 = vmatmul.mubr.bf16.gmra.mxu0 %v2084
    %v3826 = vpop.f32.mrf.mxu0
    %v3827 = vadd.f32 0.0, %v3826
    %v3828 = vpop.f32.mrf.mxu0
    %v3829 = vpop.f32.mrf.mxu0
    %v3830 = vadd.f32 0.0, %v3829
    %v3831 = vpop.f32.mrf.mxu0
    %3832 = vmatprep.mubr.bf16.mxu0 %v2103
    %3833 = vmatmul.mubr.bf16.gmra.mxu0 %v2102
    %v3834 = vpop.f32.mrf.mxu0
    %v3835 = vadd.f32 0.0, %v3834
    %v3836 = vpop.f32.mrf.mxu0
    %v3837 = vpop.f32.mrf.mxu0
    %v3838 = vadd.f32 0.0, %v3837
    %v3839 = vpop.f32.mrf.mxu0
    %3840 = vmatprep.mubr.bf16.mxu0 %v2121
    %3841 = vmatmul.mubr.bf16.gmra.mxu0 %v2120
    %v3842 = vpop.f32.mrf.mxu0
    %v3843 = vadd.f32 0.0, %v3842
    %v3844 = vpop.f32.mrf.mxu0
    %v3845 = vpop.f32.mrf.mxu0
    %v3846 = vadd.f32 0.0, %v3845
    %v3847 = vpop.f32.mrf.mxu0
    %3848 = vmatprep.mubr.bf16.mxu0 %v2139
    %3849 = vmatmul.mubr.bf16.gmra.mxu0 %v2138
    %v3850 = vpop.f32.mrf.mxu0
    %v3851 = vadd.f32 0.0, %v3850
    %v3852 = vpop.f32.mrf.mxu0
    %v3853 = vpop.f32.mrf.mxu0
    %v3854 = vadd.f32 0.0, %v3853
    %v3855 = vpop.f32.mrf.mxu0
    %3856 = vmatprep.mubr.bf16.mxu0 %v2157
    %3857 = vmatmul.mubr.bf16.gmra.mxu0 %v2156
    %v3858 = vpop.f32.mrf.mxu0
    %v3859 = vadd.f32 0.0, %v3858
    %v3860 = vpop.f32.mrf.mxu0
    %v3861 = vpop.f32.mrf.mxu0
    %v3862 = vadd.f32 0.0, %v3861
    %v3863 = vpop.f32.mrf.mxu0
    %3864 = vmatprep.mubr.bf16.mxu0 %v2175
    %3865 = vmatmul.mubr.bf16.gmra.mxu0 %v2174
    %v3866 = vpop.f32.mrf.mxu0
    %v3867 = vadd.f32 0.0, %v3866
    %v3868 = vpop.f32.mrf.mxu0
    %v3869 = vpop.f32.mrf.mxu0
    %v3870 = vadd.f32 0.0, %v3869
    %v3871 = vpop.f32.mrf.mxu0
    %3872 = vmatprep.mubr.bf16.mxu0 %v2193
    %3873 = vmatmul.mubr.bf16.gmra.mxu0 %v2192
    %v3874 = vpop.f32.mrf.mxu0
    %v3875 = vadd.f32 0.0, %v3874
    %v3876 = vpop.f32.mrf.mxu0
    %v3877 = vpop.f32.mrf.mxu0
    %v3878 = vadd.f32 0.0, %v3877
    %v3879 = vpop.f32.mrf.mxu0
    %3880 = vmatprep.mubr.bf16.mxu0 %v2211
    %3881 = vmatmul.mubr.bf16.gmra.mxu0 %v2210
    %v3882 = vpop.f32.mrf.mxu0
    %v3883 = vadd.f32 0.0, %v3882
    %v3884 = vpop.f32.mrf.mxu0
    %v3885 = vpop.f32.mrf.mxu0
    %v3886 = vadd.f32 0.0, %v3885
    %v3887 = vpop.f32.mrf.mxu0
    %3888 = vmatprep.mubr.bf16.mxu0 %v2229
    %3889 = vmatmul.mubr.bf16.gmra.mxu0 %v2228
    %v3890 = vpop.f32.mrf.mxu0
    %v3891 = vadd.f32 0.0, %v3890
    %v3892 = vpop.f32.mrf.mxu0
    %v3893 = vpop.f32.mrf.mxu0
    %v3894 = vadd.f32 0.0, %v3893
    %v3895 = vpop.f32.mrf.mxu0
    %3896 = vmatprep.mubr.bf16.mxu0 %v2247
    %3897 = vmatmul.mubr.bf16.gmra.mxu0 %v2246
    %v3898 = vpop.f32.mrf.mxu0
    %v3899 = vadd.f32 0.0, %v3898
    %v3900 = vpop.f32.mrf.mxu0
    %v3901 = vpop.f32.mrf.mxu0
    %v3902 = vadd.f32 0.0, %v3901
    %v3903 = vpop.f32.mrf.mxu0
    %3904 = vmatprep.mubr.bf16.mxu0 %v2265
    %3905 = vmatmul.mubr.bf16.gmra.mxu0 %v2264
    %v3906 = vpop.f32.mrf.mxu0
    %v3907 = vadd.f32 0.0, %v3906
    %v3908 = vpop.f32.mrf.mxu0
    %v3909 = vpop.f32.mrf.mxu0
    %v3910 = vadd.f32 0.0, %v3909
    %v3911 = vpop.f32.mrf.mxu0
    %3912 = vmatprep.mubr.bf16.mxu0 %v2283
    %3913 = vmatmul.mubr.bf16.gmra.mxu0 %v2282
    %v3914 = vpop.f32.mrf.mxu0
    %v3915 = vadd.f32 0.0, %v3914
    %v3916 = vpop.f32.mrf.mxu0
    %v3917 = vpop.f32.mrf.mxu0
    %v3918 = vadd.f32 0.0, %v3917
    %v3919 = vpop.f32.mrf.mxu0
    %3920 = vmatprep.mubr.bf16.mxu0 %v2301
    %3921 = vmatmul.mubr.bf16.gmra.mxu0 %v2300
    %v3922 = vpop.f32.mrf.mxu0
    %v3923 = vadd.f32 0.0, %v3922
    %v3924 = vpop.f32.mrf.mxu0
    %v3925 = vpop.f32.mrf.mxu0
    %v3926 = vadd.f32 0.0, %v3925
    %v3927 = vpop.f32.mrf.mxu0
    %3928 = vmatprep.mubr.bf16.mxu0 %v2319
    %3929 = vmatmul.mubr.bf16.gmra.mxu0 %v2318
    %v3930 = vpop.f32.mrf.mxu0
    %v3931 = vadd.f32 0.0, %v3930
    %v3932 = vpop.f32.mrf.mxu0
    %v3933 = vpop.f32.mrf.mxu0
    %v3934 = vadd.f32 0.0, %v3933
    %v3935 = vpop.f32.mrf.mxu0
    %3936 = vmatprep.mubr.bf16.mxu0 %v2337
    %3937 = vmatmul.mubr.bf16.gmra.mxu0 %v2336
    %v3938 = vpop.f32.mrf.mxu0
    %v3939 = vadd.f32 0.0, %v3938
    %v3940 = vpop.f32.mrf.mxu0
    %v3941 = vpop.f32.mrf.mxu0
    %v3942 = vadd.f32 0.0, %v3941
    %v3943 = vpop.f32.mrf.mxu0
    %3944 = vmatprep.mubr.bf16.mxu0 %v2355
    %3945 = vmatmul.mubr.bf16.gmra.mxu0 %v2354
    %v3946 = vpop.f32.mrf.mxu0
    %v3947 = vadd.f32 0.0, %v3946
    %v3948 = vpop.f32.mrf.mxu0
    %v3949 = vpop.f32.mrf.mxu0
    %v3950 = vadd.f32 0.0, %v3949
    %v3951 = vpop.f32.mrf.mxu0
    %3952 = vmatprep.mubr.bf16.mxu0 %v2373
    %3953 = vmatmul.mubr.bf16.gmra.mxu0 %v2372
    %v3954 = vpop.f32.mrf.mxu0
    %v3955 = vadd.f32 0.0, %v3954
    %v3956 = vpop.f32.mrf.mxu0
    %v3957 = vpop.f32.mrf.mxu0
    %v3958 = vadd.f32 0.0, %v3957
    %v3959 = vpop.f32.mrf.mxu0
    %3960 = vmatprep.mubr.bf16.mxu0 %v2391
    %3961 = vmatmul.mubr.bf16.gmra.mxu0 %v2390
    %v3962 = vpop.f32.mrf.mxu0
    %v3963 = vadd.f32 0.0, %v3962
    %v3964 = vpop.f32.mrf.mxu0
    %v3965 = vpop.f32.mrf.mxu0
    %v3966 = vadd.f32 0.0, %v3965
    %v3967 = vpop.f32.mrf.mxu0
    %3968 = vmatprep.mubr.bf16.mxu0 %v2409
    %3969 = vmatmul.mubr.bf16.gmra.mxu0 %v2408
    %v3970 = vpop.f32.mrf.mxu0
    %v3971 = vadd.f32 0.0, %v3970
    %v3972 = vpop.f32.mrf.mxu0
    %v3973 = vpop.f32.mrf.mxu0
    %v3974 = vadd.f32 0.0, %v3973
    %v3975 = vpop.f32.mrf.mxu0
    %3976 = vmatprep.mubr.bf16.mxu0 %v2427
    %3977 = vmatmul.mubr.bf16.gmra.mxu0 %v2426
    %v3978 = vpop.f32.mrf.mxu0
    %v3979 = vadd.f32 0.0, %v3978
    %v3980 = vpop.f32.mrf.mxu0
    %v3981 = vpop.f32.mrf.mxu0
    %v3982 = vadd.f32 0.0, %v3981
    %v3983 = vpop.f32.mrf.mxu0
    %3984 = vmatprep.mubr.bf16.mxu0 %v2445
    %3985 = vmatmul.mubr.bf16.gmra.mxu0 %v2444
    %v3986 = vpop.f32.mrf.mxu0
    %v3987 = vadd.f32 0.0, %v3986
    %v3988 = vpop.f32.mrf.mxu0
    %v3989 = vpop.f32.mrf.mxu0
    %v3990 = vadd.f32 0.0, %v3989
    %v3991 = vpop.f32.mrf.mxu0
    %3992 = vmatprep.mubr.bf16.mxu0 %v2463
    %3993 = vmatmul.mubr.bf16.gmra.mxu0 %v2462
    %v3994 = vpop.f32.mrf.mxu0
    %v3995 = vadd.f32 0.0, %v3994
    %v3996 = vpop.f32.mrf.mxu0
    %v3997 = vpop.f32.mrf.mxu0
    %v3998 = vadd.f32 0.0, %v3997
    %v3999 = vpop.f32.mrf.mxu0
    %4000 = vdwg.mxu0
    %4001 = vmatprep.subr.bf16.mxu0 0
    %4002 = vmatpush1.bf16.msra.mxu0 %v3511
    %4003 = vmatprep.subr.bf16.mxu0 0
    %4004 = vmatpush1.bf16.msra.mxu0 %v3510
    %4005 = vmatprep.subr.bf16.mxu0 0
    %4006 = vmatpush1.bf16.msra.mxu0 %v3509
    %4007 = vmatprep.subr.bf16.mxu0 0
    %4008 = vmatpush1.bf16.msra.mxu0 %v3508
    %4009 = vmatprep.subr.bf16.mxu0 0
    %4010 = vmatpush1.bf16.msra.mxu0 %v3507
    %4011 = vmatprep.subr.bf16.mxu0 0
    %4012 = vmatpush1.bf16.msra.mxu0 %v3506
    %4013 = vmatprep.subr.bf16.mxu0 0
    %4014 = vmatpush1.bf16.msra.mxu0 %v3505
    %4015 = vmatprep.subr.bf16.mxu0 0
    %4016 = vmatpush1.bf16.msra.mxu0 %v3504
    %4017 = vmatprep.subr.bf16.mxu0 0
    %4018 = vmatpush2.bf16.msra.mxu0 %v3519
    %4019 = vmatprep.subr.bf16.mxu0 0
    %4020 = vmatpush2.bf16.msra.mxu0 %v3518
    %4021 = vmatprep.subr.bf16.mxu0 0
    %4022 = vmatpush2.bf16.msra.mxu0 %v3517
    %4023 = vmatprep.subr.bf16.mxu0 0
    %4024 = vmatpush2.bf16.msra.mxu0 %v3516
    %4025 = vmatprep.subr.bf16.mxu0 0
    %4026 = vmatpush2.bf16.msra.mxu0 %v3515
    %4027 = vmatprep.subr.bf16.mxu0 0
    %4028 = vmatpush2.bf16.msra.mxu0 %v3514
    %4029 = vmatprep.subr.bf16.mxu0 0
    %4030 = vmatpush2.bf16.msra.mxu0 %v3513
    %4031 = vmatprep.subr.bf16.mxu0 0
    %4032 = vmatpush2.bf16.msra.mxu0 %v3512
    %4033 = vmatprep.mubr.bf16.mxu0 %v2051
    %4034 = vmatmul.mubr.bf16.gmra.mxu0 %v2050
    %v4035 = vpop.f32.mrf.mxu0
    %v4036 = vadd.f32 %v3811, %v4035
    %v4037 = vpop.f32.mrf.mxu0
    %v4038 = vpop.f32.mrf.mxu0
    %v4039 = vadd.f32 %v3814, %v4038
    %v4040 = vpop.f32.mrf.mxu0
    %4041 = vmatprep.mubr.bf16.mxu0 %v2069
    %4042 = vmatmul.mubr.bf16.gmra.mxu0 %v2068
    %v4043 = vpop.f32.mrf.mxu0
    %v4044 = vadd.f32 %v3819, %v4043
    %v4045 = vpop.f32.mrf.mxu0
    %v4046 = vpop.f32.mrf.mxu0
    %v4047 = vadd.f32 %v3822, %v4046
    %v4048 = vpop.f32.mrf.mxu0
    %4049 = vmatprep.mubr.bf16.mxu0 %v2087
    %4050 = vmatmul.mubr.bf16.gmra.mxu0 %v2086
    %v4051 = vpop.f32.mrf.mxu0
    %v4052 = vadd.f32 %v3827, %v4051
    %v4053 = vpop.f32.mrf.mxu0
    %v4054 = vpop.f32.mrf.mxu0
    %v4055 = vadd.f32 %v3830, %v4054
    %v4056 = vpop.f32.mrf.mxu0
    %4057 = vmatprep.mubr.bf16.mxu0 %v2105
    %4058 = vmatmul.mubr.bf16.gmra.mxu0 %v2104
    %v4059 = vpop.f32.mrf.mxu0
    %v4060 = vadd.f32 %v3835, %v4059
    %v4061 = vpop.f32.mrf.mxu0
    %v4062 = vpop.f32.mrf.mxu0
    %v4063 = vadd.f32 %v3838, %v4062
    %v4064 = vpop.f32.mrf.mxu0
    %4065 = vmatprep.mubr.bf16.mxu0 %v2123
    %4066 = vmatmul.mubr.bf16.gmra.mxu0 %v2122
    %v4067 = vpop.f32.mrf.mxu0
    %v4068 = vadd.f32 %v3843, %v4067
    %v4069 = vpop.f32.mrf.mxu0
    %v4070 = vpop.f32.mrf.mxu0
    %v4071 = vadd.f32 %v3846, %v4070
    %v4072 = vpop.f32.mrf.mxu0
    %4073 = vmatprep.mubr.bf16.mxu0 %v2141
    %4074 = vmatmul.mubr.bf16.gmra.mxu0 %v2140
    %v4075 = vpop.f32.mrf.mxu0
    %v4076 = vadd.f32 %v3851, %v4075
    %v4077 = vpop.f32.mrf.mxu0
    %v4078 = vpop.f32.mrf.mxu0
    %v4079 = vadd.f32 %v3854, %v4078
    %v4080 = vpop.f32.mrf.mxu0
    %4081 = vmatprep.mubr.bf16.mxu0 %v2159
    %4082 = vmatmul.mubr.bf16.gmra.mxu0 %v2158
    %v4083 = vpop.f32.mrf.mxu0
    %v4084 = vadd.f32 %v3859, %v4083
    %v4085 = vpop.f32.mrf.mxu0
    %v4086 = vpop.f32.mrf.mxu0
    %v4087 = vadd.f32 %v3862, %v4086
    %v4088 = vpop.f32.mrf.mxu0
    %4089 = vmatprep.mubr.bf16.mxu0 %v2177
    %4090 = vmatmul.mubr.bf16.gmra.mxu0 %v2176
    %v4091 = vpop.f32.mrf.mxu0
    %v4092 = vadd.f32 %v3867, %v4091
    %v4093 = vpop.f32.mrf.mxu0
    %v4094 = vpop.f32.mrf.mxu0
    %v4095 = vadd.f32 %v3870, %v4094
    %v4096 = vpop.f32.mrf.mxu0
    %4097 = vmatprep.mubr.bf16.mxu0 %v2195
    %4098 = vmatmul.mubr.bf16.gmra.mxu0 %v2194
    %v4099 = vpop.f32.mrf.mxu0
    %v4100 = vadd.f32 %v3875, %v4099
    %v4101 = vpop.f32.mrf.mxu0
    %v4102 = vpop.f32.mrf.mxu0
    %v4103 = vadd.f32 %v3878, %v4102
    %v4104 = vpop.f32.mrf.mxu0
    %4105 = vmatprep.mubr.bf16.mxu0 %v2213
    %4106 = vmatmul.mubr.bf16.gmra.mxu0 %v2212
    %v4107 = vpop.f32.mrf.mxu0
    %v4108 = vadd.f32 %v3883, %v4107
    %v4109 = vpop.f32.mrf.mxu0
    %v4110 = vpop.f32.mrf.mxu0
    %v4111 = vadd.f32 %v3886, %v4110
    %v4112 = vpop.f32.mrf.mxu0
    %4113 = vmatprep.mubr.bf16.mxu0 %v2231
    %4114 = vmatmul.mubr.bf16.gmra.mxu0 %v2230
    %v4115 = vpop.f32.mrf.mxu0
    %v4116 = vadd.f32 %v3891, %v4115
    %v4117 = vpop.f32.mrf.mxu0
    %v4118 = vpop.f32.mrf.mxu0
    %v4119 = vadd.f32 %v3894, %v4118
    %v4120 = vpop.f32.mrf.mxu0
    %4121 = vmatprep.mubr.bf16.mxu0 %v2249
    %4122 = vmatmul.mubr.bf16.gmra.mxu0 %v2248
    %v4123 = vpop.f32.mrf.mxu0
    %v4124 = vadd.f32 %v3899, %v4123
    %v4125 = vpop.f32.mrf.mxu0
    %v4126 = vpop.f32.mrf.mxu0
    %v4127 = vadd.f32 %v3902, %v4126
    %v4128 = vpop.f32.mrf.mxu0
    %4129 = vmatprep.mubr.bf16.mxu0 %v2267
    %4130 = vmatmul.mubr.bf16.gmra.mxu0 %v2266
    %v4131 = vpop.f32.mrf.mxu0
    %v4132 = vadd.f32 %v3907, %v4131
    %v4133 = vpop.f32.mrf.mxu0
    %v4134 = vpop.f32.mrf.mxu0
    %v4135 = vadd.f32 %v3910, %v4134
    %v4136 = vpop.f32.mrf.mxu0
    %4137 = vmatprep.mubr.bf16.mxu0 %v2285
    %4138 = vmatmul.mubr.bf16.gmra.mxu0 %v2284
    %v4139 = vpop.f32.mrf.mxu0
    %v4140 = vadd.f32 %v3915, %v4139
    %v4141 = vpop.f32.mrf.mxu0
    %v4142 = vpop.f32.mrf.mxu0
    %v4143 = vadd.f32 %v3918, %v4142
    %v4144 = vpop.f32.mrf.mxu0
    %4145 = vmatprep.mubr.bf16.mxu0 %v2303
    %4146 = vmatmul.mubr.bf16.gmra.mxu0 %v2302
    %v4147 = vpop.f32.mrf.mxu0
    %v4148 = vadd.f32 %v3923, %v4147
    %v4149 = vpop.f32.mrf.mxu0
    %v4150 = vpop.f32.mrf.mxu0
    %v4151 = vadd.f32 %v3926, %v4150
    %v4152 = vpop.f32.mrf.mxu0
    %4153 = vmatprep.mubr.bf16.mxu0 %v2321
    %4154 = vmatmul.mubr.bf16.gmra.mxu0 %v2320
    %v4155 = vpop.f32.mrf.mxu0
    %v4156 = vadd.f32 %v3931, %v4155
    %v4157 = vpop.f32.mrf.mxu0
    %v4158 = vpop.f32.mrf.mxu0
    %v4159 = vadd.f32 %v3934, %v4158
    %v4160 = vpop.f32.mrf.mxu0
    %4161 = vmatprep.mubr.bf16.mxu0 %v2339
    %4162 = vmatmul.mubr.bf16.gmra.mxu0 %v2338
    %v4163 = vpop.f32.mrf.mxu0
    %v4164 = vadd.f32 %v3939, %v4163
    %v4165 = vpop.f32.mrf.mxu0
    %v4166 = vpop.f32.mrf.mxu0
    %v4167 = vadd.f32 %v3942, %v4166
    %v4168 = vpop.f32.mrf.mxu0
    %4169 = vmatprep.mubr.bf16.mxu0 %v2357
    %4170 = vmatmul.mubr.bf16.gmra.mxu0 %v2356
    %v4171 = vpop.f32.mrf.mxu0
    %v4172 = vadd.f32 %v3947, %v4171
    %v4173 = vpop.f32.mrf.mxu0
    %v4174 = vpop.f32.mrf.mxu0
    %v4175 = vadd.f32 %v3950, %v4174
    %v4176 = vpop.f32.mrf.mxu0
    %4177 = vmatprep.mubr.bf16.mxu0 %v2375
    %4178 = vmatmul.mubr.bf16.gmra.mxu0 %v2374
    %v4179 = vpop.f32.mrf.mxu0
    %v4180 = vadd.f32 %v3955, %v4179
    %v4181 = vpop.f32.mrf.mxu0
    %v4182 = vpop.f32.mrf.mxu0
    %v4183 = vadd.f32 %v3958, %v4182
    %v4184 = vpop.f32.mrf.mxu0
    %4185 = vmatprep.mubr.bf16.mxu0 %v2393
    %4186 = vmatmul.mubr.bf16.gmra.mxu0 %v2392
    %v4187 = vpop.f32.mrf.mxu0
    %v4188 = vadd.f32 %v3963, %v4187
    %v4189 = vpop.f32.mrf.mxu0
    %v4190 = vpop.f32.mrf.mxu0
    %v4191 = vadd.f32 %v3966, %v4190
    %v4192 = vpop.f32.mrf.mxu0
    %4193 = vmatprep.mubr.bf16.mxu0 %v2411
    %4194 = vmatmul.mubr.bf16.gmra.mxu0 %v2410
    %v4195 = vpop.f32.mrf.mxu0
    %v4196 = vadd.f32 %v3971, %v4195
    %v4197 = vpop.f32.mrf.mxu0
    %v4198 = vpop.f32.mrf.mxu0
    %v4199 = vadd.f32 %v3974, %v4198
    %v4200 = vpop.f32.mrf.mxu0
    %4201 = vmatprep.mubr.bf16.mxu0 %v2429
    %4202 = vmatmul.mubr.bf16.gmra.mxu0 %v2428
    %v4203 = vpop.f32.mrf.mxu0
    %v4204 = vadd.f32 %v3979, %v4203
    %v4205 = vpop.f32.mrf.mxu0
    %v4206 = vpop.f32.mrf.mxu0
    %v4207 = vadd.f32 %v3982, %v4206
    %v4208 = vpop.f32.mrf.mxu0
    %4209 = vmatprep.mubr.bf16.mxu0 %v2447
    %4210 = vmatmul.mubr.bf16.gmra.mxu0 %v2446
    %v4211 = vpop.f32.mrf.mxu0
    %v4212 = vadd.f32 %v3987, %v4211
    %v4213 = vpop.f32.mrf.mxu0
    %v4214 = vpop.f32.mrf.mxu0
    %v4215 = vadd.f32 %v3990, %v4214
    %v4216 = vpop.f32.mrf.mxu0
    %4217 = vmatprep.mubr.bf16.mxu0 %v2465
    %4218 = vmatmul.mubr.bf16.gmra.mxu0 %v2464
    %v4219 = vpop.f32.mrf.mxu0
    %v4220 = vadd.f32 %v3995, %v4219
    %v4221 = vpop.f32.mrf.mxu0
    %v4222 = vpop.f32.mrf.mxu0
    %v4223 = vadd.f32 %v3998, %v4222
    %v4224 = vpop.f32.mrf.mxu0
    %4225 = vdwg.mxu0
    %4226 = vmatprep.subr.bf16.mxu0 0
    %4227 = vmatpush1.bf16.msra.mxu0 %v3527
    %4228 = vmatprep.subr.bf16.mxu0 0
    %4229 = vmatpush1.bf16.msra.mxu0 %v3526
    %4230 = vmatprep.subr.bf16.mxu0 0
    %4231 = vmatpush1.bf16.msra.mxu0 %v3525
    %4232 = vmatprep.subr.bf16.mxu0 0
    %4233 = vmatpush1.bf16.msra.mxu0 %v3524
    %4234 = vmatprep.subr.bf16.mxu0 0
    %4235 = vmatpush1.bf16.msra.mxu0 %v3523
    %4236 = vmatprep.subr.bf16.mxu0 0
    %4237 = vmatpush1.bf16.msra.mxu0 %v3522
    %4238 = vmatprep.subr.bf16.mxu0 0
    %4239 = vmatpush1.bf16.msra.mxu0 %v3521
    %4240 = vmatprep.subr.bf16.mxu0 0
    %4241 = vmatpush1.bf16.msra.mxu0 %v3520
    %4242 = vmatprep.subr.bf16.mxu0 0
    %4243 = vmatpush2.bf16.msra.mxu0 %v3535
    %4244 = vmatprep.subr.bf16.mxu0 0
    %4245 = vmatpush2.bf16.msra.mxu0 %v3534
    %4246 = vmatprep.subr.bf16.mxu0 0
    %4247 = vmatpush2.bf16.msra.mxu0 %v3533
    %4248 = vmatprep.subr.bf16.mxu0 0
    %4249 = vmatpush2.bf16.msra.mxu0 %v3532
    %4250 = vmatprep.subr.bf16.mxu0 0
    %4251 = vmatpush2.bf16.msra.mxu0 %v3531
    %4252 = vmatprep.subr.bf16.mxu0 0
    %4253 = vmatpush2.bf16.msra.mxu0 %v3530
    %4254 = vmatprep.subr.bf16.mxu0 0
    %4255 = vmatpush2.bf16.msra.mxu0 %v3529
    %4256 = vmatprep.subr.bf16.mxu0 0
    %4257 = vmatpush2.bf16.msra.mxu0 %v3528
    %4258 = vmatprep.mubr.bf16.mxu0 %v2053
    %4259 = vmatmul.mubr.bf16.gmra.mxu0 %v2052
    %v4260 = vpop.f32.mrf.mxu0
    %v4261 = vadd.f32 %v4036, %v4260
    %v4262 = vpop.f32.mrf.mxu0
    %v4263 = vpop.f32.mrf.mxu0
    %v4264 = vadd.f32 %v4039, %v4263
    %v4265 = vpop.f32.mrf.mxu0
    %4266 = vmatprep.mubr.bf16.mxu0 %v2071
    %4267 = vmatmul.mubr.bf16.gmra.mxu0 %v2070
    %v4268 = vpop.f32.mrf.mxu0
    %v4269 = vadd.f32 %v4044, %v4268
    %v4270 = vpop.f32.mrf.mxu0
    %v4271 = vpop.f32.mrf.mxu0
    %v4272 = vadd.f32 %v4047, %v4271
    %v4273 = vpop.f32.mrf.mxu0
    %4274 = vmatprep.mubr.bf16.mxu0 %v2089
    %4275 = vmatmul.mubr.bf16.gmra.mxu0 %v2088
    %v4276 = vpop.f32.mrf.mxu0
    %v4277 = vadd.f32 %v4052, %v4276
    %v4278 = vpop.f32.mrf.mxu0
    %v4279 = vpop.f32.mrf.mxu0
    %v4280 = vadd.f32 %v4055, %v4279
    %v4281 = vpop.f32.mrf.mxu0
    %4282 = vmatprep.mubr.bf16.mxu0 %v2107
    %4283 = vmatmul.mubr.bf16.gmra.mxu0 %v2106
    %v4284 = vpop.f32.mrf.mxu0
    %v4285 = vadd.f32 %v4060, %v4284
    %v4286 = vpop.f32.mrf.mxu0
    %v4287 = vpop.f32.mrf.mxu0
    %v4288 = vadd.f32 %v4063, %v4287
    %v4289 = vpop.f32.mrf.mxu0
    %4290 = vmatprep.mubr.bf16.mxu0 %v2125
    %4291 = vmatmul.mubr.bf16.gmra.mxu0 %v2124
    %v4292 = vpop.f32.mrf.mxu0
    %v4293 = vadd.f32 %v4068, %v4292
    %v4294 = vpop.f32.mrf.mxu0
    %v4295 = vpop.f32.mrf.mxu0
    %v4296 = vadd.f32 %v4071, %v4295
    %v4297 = vpop.f32.mrf.mxu0
    %4298 = vmatprep.mubr.bf16.mxu0 %v2143
    %4299 = vmatmul.mubr.bf16.gmra.mxu0 %v2142
    %v4300 = vpop.f32.mrf.mxu0
    %v4301 = vadd.f32 %v4076, %v4300
    %v4302 = vpop.f32.mrf.mxu0
    %v4303 = vpop.f32.mrf.mxu0
    %v4304 = vadd.f32 %v4079, %v4303
    %v4305 = vpop.f32.mrf.mxu0
    %4306 = vmatprep.mubr.bf16.mxu0 %v2161
    %4307 = vmatmul.mubr.bf16.gmra.mxu0 %v2160
    %v4308 = vpop.f32.mrf.mxu0
    %v4309 = vadd.f32 %v4084, %v4308
    %v4310 = vpop.f32.mrf.mxu0
    %v4311 = vpop.f32.mrf.mxu0
    %v4312 = vadd.f32 %v4087, %v4311
    %v4313 = vpop.f32.mrf.mxu0
    %4314 = vmatprep.mubr.bf16.mxu0 %v2179
    %4315 = vmatmul.mubr.bf16.gmra.mxu0 %v2178
    %v4316 = vpop.f32.mrf.mxu0
    %v4317 = vadd.f32 %v4092, %v4316
    %v4318 = vpop.f32.mrf.mxu0
    %v4319 = vpop.f32.mrf.mxu0
    %v4320 = vadd.f32 %v4095, %v4319
    %v4321 = vpop.f32.mrf.mxu0
    %4322 = vmatprep.mubr.bf16.mxu0 %v2197
    %4323 = vmatmul.mubr.bf16.gmra.mxu0 %v2196
    %v4324 = vpop.f32.mrf.mxu0
    %v4325 = vadd.f32 %v4100, %v4324
    %v4326 = vpop.f32.mrf.mxu0
    %v4327 = vpop.f32.mrf.mxu0
    %v4328 = vadd.f32 %v4103, %v4327
    %v4329 = vpop.f32.mrf.mxu0
    %4330 = vmatprep.mubr.bf16.mxu0 %v2215
    %4331 = vmatmul.mubr.bf16.gmra.mxu0 %v2214
    %v4332 = vpop.f32.mrf.mxu0
    %v4333 = vadd.f32 %v4108, %v4332
    %v4334 = vpop.f32.mrf.mxu0
    %v4335 = vpop.f32.mrf.mxu0
    %v4336 = vadd.f32 %v4111, %v4335
    %v4337 = vpop.f32.mrf.mxu0
    %4338 = vmatprep.mubr.bf16.mxu0 %v2233
    %4339 = vmatmul.mubr.bf16.gmra.mxu0 %v2232
    %v4340 = vpop.f32.mrf.mxu0
    %v4341 = vadd.f32 %v4116, %v4340
    %v4342 = vpop.f32.mrf.mxu0
    %v4343 = vpop.f32.mrf.mxu0
    %v4344 = vadd.f32 %v4119, %v4343
    %v4345 = vpop.f32.mrf.mxu0
    %4346 = vmatprep.mubr.bf16.mxu0 %v2251
    %4347 = vmatmul.mubr.bf16.gmra.mxu0 %v2250
    %v4348 = vpop.f32.mrf.mxu0
    %v4349 = vadd.f32 %v4124, %v4348
    %v4350 = vpop.f32.mrf.mxu0
    %v4351 = vpop.f32.mrf.mxu0
    %v4352 = vadd.f32 %v4127, %v4351
    %v4353 = vpop.f32.mrf.mxu0
    %4354 = vmatprep.mubr.bf16.mxu0 %v2269
    %4355 = vmatmul.mubr.bf16.gmra.mxu0 %v2268
    %v4356 = vpop.f32.mrf.mxu0
    %v4357 = vadd.f32 %v4132, %v4356
    %v4358 = vpop.f32.mrf.mxu0
    %v4359 = vpop.f32.mrf.mxu0
    %v4360 = vadd.f32 %v4135, %v4359
    %v4361 = vpop.f32.mrf.mxu0
    %4362 = vmatprep.mubr.bf16.mxu0 %v2287
    %4363 = vmatmul.mubr.bf16.gmra.mxu0 %v2286
    %v4364 = vpop.f32.mrf.mxu0
    %v4365 = vadd.f32 %v4140, %v4364
    %v4366 = vpop.f32.mrf.mxu0
    %v4367 = vpop.f32.mrf.mxu0
    %v4368 = vadd.f32 %v4143, %v4367
    %v4369 = vpop.f32.mrf.mxu0
    %4370 = vmatprep.mubr.bf16.mxu0 %v2305
    %4371 = vmatmul.mubr.bf16.gmra.mxu0 %v2304
    %v4372 = vpop.f32.mrf.mxu0
    %v4373 = vadd.f32 %v4148, %v4372
    %v4374 = vpop.f32.mrf.mxu0
    %v4375 = vpop.f32.mrf.mxu0
    %v4376 = vadd.f32 %v4151, %v4375
    %v4377 = vpop.f32.mrf.mxu0
    %4378 = vmatprep.mubr.bf16.mxu0 %v2323
    %4379 = vmatmul.mubr.bf16.gmra.mxu0 %v2322
    %v4380 = vpop.f32.mrf.mxu0
    %v4381 = vadd.f32 %v4156, %v4380
    %v4382 = vpop.f32.mrf.mxu0
    %v4383 = vpop.f32.mrf.mxu0
    %v4384 = vadd.f32 %v4159, %v4383
    %v4385 = vpop.f32.mrf.mxu0
    %4386 = vmatprep.mubr.bf16.mxu0 %v2341
    %4387 = vmatmul.mubr.bf16.gmra.mxu0 %v2340
    %v4388 = vpop.f32.mrf.mxu0
    %v4389 = vadd.f32 %v4164, %v4388
    %v4390 = vpop.f32.mrf.mxu0
    %v4391 = vpop.f32.mrf.mxu0
    %v4392 = vadd.f32 %v4167, %v4391
    %v4393 = vpop.f32.mrf.mxu0
    %4394 = vmatprep.mubr.bf16.mxu0 %v2359
    %4395 = vmatmul.mubr.bf16.gmra.mxu0 %v2358
    %v4396 = vpop.f32.mrf.mxu0
    %v4397 = vadd.f32 %v4172, %v4396
    %v4398 = vpop.f32.mrf.mxu0
    %v4399 = vpop.f32.mrf.mxu0
    %v4400 = vadd.f32 %v4175, %v4399
    %v4401 = vpop.f32.mrf.mxu0
    %4402 = vmatprep.mubr.bf16.mxu0 %v2377
    %4403 = vmatmul.mubr.bf16.gmra.mxu0 %v2376
    %v4404 = vpop.f32.mrf.mxu0
    %v4405 = vadd.f32 %v4180, %v4404
    %v4406 = vpop.f32.mrf.mxu0
    %v4407 = vpop.f32.mrf.mxu0
    %v4408 = vadd.f32 %v4183, %v4407
    %v4409 = vpop.f32.mrf.mxu0
    %4410 = vmatprep.mubr.bf16.mxu0 %v2395
    %4411 = vmatmul.mubr.bf16.gmra.mxu0 %v2394
    %v4412 = vpop.f32.mrf.mxu0
    %v4413 = vadd.f32 %v4188, %v4412
    %v4414 = vpop.f32.mrf.mxu0
    %v4415 = vpop.f32.mrf.mxu0
    %v4416 = vadd.f32 %v4191, %v4415
    %v4417 = vpop.f32.mrf.mxu0
    %4418 = vmatprep.mubr.bf16.mxu0 %v2413
    %4419 = vmatmul.mubr.bf16.gmra.mxu0 %v2412
    %v4420 = vpop.f32.mrf.mxu0
    %v4421 = vadd.f32 %v4196, %v4420
    %v4422 = vpop.f32.mrf.mxu0
    %v4423 = vpop.f32.mrf.mxu0
    %v4424 = vadd.f32 %v4199, %v4423
    %v4425 = vpop.f32.mrf.mxu0
    %4426 = vmatprep.mubr.bf16.mxu0 %v2431
    %4427 = vmatmul.mubr.bf16.gmra.mxu0 %v2430
    %v4428 = vpop.f32.mrf.mxu0
    %v4429 = vadd.f32 %v4204, %v4428
    %v4430 = vpop.f32.mrf.mxu0
    %v4431 = vpop.f32.mrf.mxu0
    %v4432 = vadd.f32 %v4207, %v4431
    %v4433 = vpop.f32.mrf.mxu0
    %4434 = vmatprep.mubr.bf16.mxu0 %v2449
    %4435 = vmatmul.mubr.bf16.gmra.mxu0 %v2448
    %v4436 = vpop.f32.mrf.mxu0
    %v4437 = vadd.f32 %v4212, %v4436
    %v4438 = vpop.f32.mrf.mxu0
    %v4439 = vpop.f32.mrf.mxu0
    %v4440 = vadd.f32 %v4215, %v4439
    %v4441 = vpop.f32.mrf.mxu0
    %4442 = vmatprep.mubr.bf16.mxu0 %v2467
    %4443 = vmatmul.mubr.bf16.gmra.mxu0 %v2466
    %v4444 = vpop.f32.mrf.mxu0
    %v4445 = vadd.f32 %v4220, %v4444
    %v4446 = vpop.f32.mrf.mxu0
    %v4447 = vpop.f32.mrf.mxu0
    %v4448 = vadd.f32 %v4223, %v4447
    %v4449 = vpop.f32.mrf.mxu0
    %4450 = vdwg.mxu0
    %4451 = vmatprep.subr.bf16.mxu0 0
    %4452 = vmatpush1.bf16.msra.mxu0 %v3543
    %4453 = vmatprep.subr.bf16.mxu0 0
    %4454 = vmatpush1.bf16.msra.mxu0 %v3542
    %4455 = vmatprep.subr.bf16.mxu0 0
    %4456 = vmatpush1.bf16.msra.mxu0 %v3541
    %4457 = vmatprep.subr.bf16.mxu0 0
    %4458 = vmatpush1.bf16.msra.mxu0 %v3540
    %4459 = vmatprep.subr.bf16.mxu0 0
    %4460 = vmatpush1.bf16.msra.mxu0 %v3539
    %4461 = vmatprep.subr.bf16.mxu0 0
    %4462 = vmatpush1.bf16.msra.mxu0 %v3538
    %4463 = vmatprep.subr.bf16.mxu0 0
    %4464 = vmatpush1.bf16.msra.mxu0 %v3537
    %4465 = vmatprep.subr.bf16.mxu0 0
    %4466 = vmatpush1.bf16.msra.mxu0 %v3536
    %4467 = vmatprep.subr.bf16.mxu0 0
    %4468 = vmatpush2.bf16.msra.mxu0 %v3551
    %4469 = vmatprep.subr.bf16.mxu0 0
    %4470 = vmatpush2.bf16.msra.mxu0 %v3550
    %4471 = vmatprep.subr.bf16.mxu0 0
    %4472 = vmatpush2.bf16.msra.mxu0 %v3549
    %4473 = vmatprep.subr.bf16.mxu0 0
    %4474 = vmatpush2.bf16.msra.mxu0 %v3548
    %4475 = vmatprep.subr.bf16.mxu0 0
    %4476 = vmatpush2.bf16.msra.mxu0 %v3547
    %4477 = vmatprep.subr.bf16.mxu0 0
    %4478 = vmatpush2.bf16.msra.mxu0 %v3546
    %4479 = vmatprep.subr.bf16.mxu0 0
    %4480 = vmatpush2.bf16.msra.mxu0 %v3545
    %4481 = vmatprep.subr.bf16.mxu0 0
    %4482 = vmatpush2.bf16.msra.mxu0 %v3544
    %4483 = vmatprep.mubr.bf16.mxu0 %v2055
    %4484 = vmatmul.mubr.bf16.gmra.mxu0 %v2054
    %v4485 = vpop.f32.mrf.mxu0
    %v4486 = vadd.f32 %v4261, %v4485
    %v4487 = vpop.f32.mrf.mxu0
    %v4488 = vpop.f32.mrf.mxu0
    %v4489 = vadd.f32 %v4264, %v4488
    %v4490 = vpop.f32.mrf.mxu0
    %4491 = vmatprep.mubr.bf16.mxu0 %v2073
    %4492 = vmatmul.mubr.bf16.gmra.mxu0 %v2072
    %v4493 = vpop.f32.mrf.mxu0
    %v4494 = vadd.f32 %v4269, %v4493
    %v4495 = vpop.f32.mrf.mxu0
    %v4496 = vpop.f32.mrf.mxu0
    %v4497 = vadd.f32 %v4272, %v4496
    %v4498 = vpop.f32.mrf.mxu0
    %4499 = vmatprep.mubr.bf16.mxu0 %v2091
    %4500 = vmatmul.mubr.bf16.gmra.mxu0 %v2090
    %v4501 = vpop.f32.mrf.mxu0
    %v4502 = vadd.f32 %v4277, %v4501
    %v4503 = vpop.f32.mrf.mxu0
    %v4504 = vpop.f32.mrf.mxu0
    %v4505 = vadd.f32 %v4280, %v4504
    %v4506 = vpop.f32.mrf.mxu0
    %4507 = vmatprep.mubr.bf16.mxu0 %v2109
    %4508 = vmatmul.mubr.bf16.gmra.mxu0 %v2108
    %v4509 = vpop.f32.mrf.mxu0
    %v4510 = vadd.f32 %v4285, %v4509
    %v4511 = vpop.f32.mrf.mxu0
    %v4512 = vpop.f32.mrf.mxu0
    %v4513 = vadd.f32 %v4288, %v4512
    %v4514 = vpop.f32.mrf.mxu0
    %4515 = vmatprep.mubr.bf16.mxu0 %v2127
    %4516 = vmatmul.mubr.bf16.gmra.mxu0 %v2126
    %v4517 = vpop.f32.mrf.mxu0
    %v4518 = vadd.f32 %v4293, %v4517
    %v4519 = vpop.f32.mrf.mxu0
    %v4520 = vpop.f32.mrf.mxu0
    %v4521 = vadd.f32 %v4296, %v4520
    %v4522 = vpop.f32.mrf.mxu0
    %4523 = vmatprep.mubr.bf16.mxu0 %v2145
    %4524 = vmatmul.mubr.bf16.gmra.mxu0 %v2144
    %v4525 = vpop.f32.mrf.mxu0
    %v4526 = vadd.f32 %v4301, %v4525
    %v4527 = vpop.f32.mrf.mxu0
    %v4528 = vpop.f32.mrf.mxu0
    %v4529 = vadd.f32 %v4304, %v4528
    %v4530 = vpop.f32.mrf.mxu0
    %4531 = vmatprep.mubr.bf16.mxu0 %v2163
    %4532 = vmatmul.mubr.bf16.gmra.mxu0 %v2162
    %v4533 = vpop.f32.mrf.mxu0
    %v4534 = vadd.f32 %v4309, %v4533
    %v4535 = vpop.f32.mrf.mxu0
    %v4536 = vpop.f32.mrf.mxu0
    %v4537 = vadd.f32 %v4312, %v4536
    %v4538 = vpop.f32.mrf.mxu0
    %4539 = vmatprep.mubr.bf16.mxu0 %v2181
    %4540 = vmatmul.mubr.bf16.gmra.mxu0 %v2180
    %v4541 = vpop.f32.mrf.mxu0
    %v4542 = vadd.f32 %v4317, %v4541
    %v4543 = vpop.f32.mrf.mxu0
    %v4544 = vpop.f32.mrf.mxu0
    %v4545 = vadd.f32 %v4320, %v4544
    %v4546 = vpop.f32.mrf.mxu0
    %4547 = vmatprep.mubr.bf16.mxu0 %v2199
    %4548 = vmatmul.mubr.bf16.gmra.mxu0 %v2198
    %v4549 = vpop.f32.mrf.mxu0
    %v4550 = vadd.f32 %v4325, %v4549
    %v4551 = vpop.f32.mrf.mxu0
    %v4552 = vpop.f32.mrf.mxu0
    %v4553 = vadd.f32 %v4328, %v4552
    %v4554 = vpop.f32.mrf.mxu0
    %4555 = vmatprep.mubr.bf16.mxu0 %v2217
    %4556 = vmatmul.mubr.bf16.gmra.mxu0 %v2216
    %v4557 = vpop.f32.mrf.mxu0
    %v4558 = vadd.f32 %v4333, %v4557
    %v4559 = vpop.f32.mrf.mxu0
    %v4560 = vpop.f32.mrf.mxu0
    %v4561 = vadd.f32 %v4336, %v4560
    %v4562 = vpop.f32.mrf.mxu0
    %4563 = vmatprep.mubr.bf16.mxu0 %v2235
    %4564 = vmatmul.mubr.bf16.gmra.mxu0 %v2234
    %v4565 = vpop.f32.mrf.mxu0
    %v4566 = vadd.f32 %v4341, %v4565
    %v4567 = vpop.f32.mrf.mxu0
    %v4568 = vpop.f32.mrf.mxu0
    %v4569 = vadd.f32 %v4344, %v4568
    %v4570 = vpop.f32.mrf.mxu0
    %4571 = vmatprep.mubr.bf16.mxu0 %v2253
    %4572 = vmatmul.mubr.bf16.gmra.mxu0 %v2252
    %v4573 = vpop.f32.mrf.mxu0
    %v4574 = vadd.f32 %v4349, %v4573
    %v4575 = vpop.f32.mrf.mxu0
    %v4576 = vpop.f32.mrf.mxu0
    %v4577 = vadd.f32 %v4352, %v4576
    %v4578 = vpop.f32.mrf.mxu0
    %4579 = vmatprep.mubr.bf16.mxu0 %v2271
    %4580 = vmatmul.mubr.bf16.gmra.mxu0 %v2270
    %v4581 = vpop.f32.mrf.mxu0
    %v4582 = vadd.f32 %v4357, %v4581
    %v4583 = vpop.f32.mrf.mxu0
    %v4584 = vpop.f32.mrf.mxu0
    %v4585 = vadd.f32 %v4360, %v4584
    %v4586 = vpop.f32.mrf.mxu0
    %4587 = vmatprep.mubr.bf16.mxu0 %v2289
    %4588 = vmatmul.mubr.bf16.gmra.mxu0 %v2288
    %v4589 = vpop.f32.mrf.mxu0
    %v4590 = vadd.f32 %v4365, %v4589
    %v4591 = vpop.f32.mrf.mxu0
    %v4592 = vpop.f32.mrf.mxu0
    %v4593 = vadd.f32 %v4368, %v4592
    %v4594 = vpop.f32.mrf.mxu0
    %4595 = vmatprep.mubr.bf16.mxu0 %v2307
    %4596 = vmatmul.mubr.bf16.gmra.mxu0 %v2306
    %v4597 = vpop.f32.mrf.mxu0
    %v4598 = vadd.f32 %v4373, %v4597
    %v4599 = vpop.f32.mrf.mxu0
    %v4600 = vpop.f32.mrf.mxu0
    %v4601 = vadd.f32 %v4376, %v4600
    %v4602 = vpop.f32.mrf.mxu0
    %4603 = vmatprep.mubr.bf16.mxu0 %v2325
    %4604 = vmatmul.mubr.bf16.gmra.mxu0 %v2324
    %v4605 = vpop.f32.mrf.mxu0
    %v4606 = vadd.f32 %v4381, %v4605
    %v4607 = vpop.f32.mrf.mxu0
    %v4608 = vpop.f32.mrf.mxu0
    %v4609 = vadd.f32 %v4384, %v4608
    %v4610 = vpop.f32.mrf.mxu0
    %4611 = vmatprep.mubr.bf16.mxu0 %v2343
    %4612 = vmatmul.mubr.bf16.gmra.mxu0 %v2342
    %v4613 = vpop.f32.mrf.mxu0
    %v4614 = vadd.f32 %v4389, %v4613
    %v4615 = vpop.f32.mrf.mxu0
    %v4616 = vpop.f32.mrf.mxu0
    %v4617 = vadd.f32 %v4392, %v4616
    %v4618 = vpop.f32.mrf.mxu0
    %4619 = vmatprep.mubr.bf16.mxu0 %v2361
    %4620 = vmatmul.mubr.bf16.gmra.mxu0 %v2360
    %v4621 = vpop.f32.mrf.mxu0
    %v4622 = vadd.f32 %v4397, %v4621
    %v4623 = vpop.f32.mrf.mxu0
    %v4624 = vpop.f32.mrf.mxu0
    %v4625 = vadd.f32 %v4400, %v4624
    %v4626 = vpop.f32.mrf.mxu0
    %4627 = vmatprep.mubr.bf16.mxu0 %v2379
    %4628 = vmatmul.mubr.bf16.gmra.mxu0 %v2378
    %v4629 = vpop.f32.mrf.mxu0
    %v4630 = vadd.f32 %v4405, %v4629
    %v4631 = vpop.f32.mrf.mxu0
    %v4632 = vpop.f32.mrf.mxu0
    %v4633 = vadd.f32 %v4408, %v4632
    %v4634 = vpop.f32.mrf.mxu0
    %4635 = vmatprep.mubr.bf16.mxu0 %v2397
    %4636 = vmatmul.mubr.bf16.gmra.mxu0 %v2396
    %v4637 = vpop.f32.mrf.mxu0
    %v4638 = vadd.f32 %v4413, %v4637
    %v4639 = vpop.f32.mrf.mxu0
    %v4640 = vpop.f32.mrf.mxu0
    %v4641 = vadd.f32 %v4416, %v4640
    %v4642 = vpop.f32.mrf.mxu0
    %4643 = vmatprep.mubr.bf16.mxu0 %v2415
    %4644 = vmatmul.mubr.bf16.gmra.mxu0 %v2414
    %v4645 = vpop.f32.mrf.mxu0
    %v4646 = vadd.f32 %v4421, %v4645
    %v4647 = vpop.f32.mrf.mxu0
    %v4648 = vpop.f32.mrf.mxu0
    %v4649 = vadd.f32 %v4424, %v4648
    %v4650 = vpop.f32.mrf.mxu0
    %4651 = vmatprep.mubr.bf16.mxu0 %v2433
    %4652 = vmatmul.mubr.bf16.gmra.mxu0 %v2432
    %v4653 = vpop.f32.mrf.mxu0
    %v4654 = vadd.f32 %v4429, %v4653
    %v4655 = vpop.f32.mrf.mxu0
    %v4656 = vpop.f32.mrf.mxu0
    %v4657 = vadd.f32 %v4432, %v4656
    %v4658 = vpop.f32.mrf.mxu0
    %4659 = vmatprep.mubr.bf16.mxu0 %v2451
    %4660 = vmatmul.mubr.bf16.gmra.mxu0 %v2450
    %v4661 = vpop.f32.mrf.mxu0
    %v4662 = vadd.f32 %v4437, %v4661
    %v4663 = vpop.f32.mrf.mxu0
    %v4664 = vpop.f32.mrf.mxu0
    %v4665 = vadd.f32 %v4440, %v4664
    %v4666 = vpop.f32.mrf.mxu0
    %4667 = vmatprep.mubr.bf16.mxu0 %v2469
    %4668 = vmatmul.mubr.bf16.gmra.mxu0 %v2468
    %v4669 = vpop.f32.mrf.mxu0
    %v4670 = vadd.f32 %v4445, %v4669
    %v4671 = vpop.f32.mrf.mxu0
    %v4672 = vpop.f32.mrf.mxu0
    %v4673 = vadd.f32 %v4448, %v4672
    %v4674 = vpop.f32.mrf.mxu0
    %4675 = vdwg.mxu0
    %4676 = vmatprep.subr.bf16.mxu0 0
    %4677 = vmatpush1.bf16.msra.mxu0 %v3559
    %4678 = vmatprep.subr.bf16.mxu0 0
    %4679 = vmatpush1.bf16.msra.mxu0 %v3558
    %4680 = vmatprep.subr.bf16.mxu0 0
    %4681 = vmatpush1.bf16.msra.mxu0 %v3557
    %4682 = vmatprep.subr.bf16.mxu0 0
    %4683 = vmatpush1.bf16.msra.mxu0 %v3556
    %4684 = vmatprep.subr.bf16.mxu0 0
    %4685 = vmatpush1.bf16.msra.mxu0 %v3555
    %4686 = vmatprep.subr.bf16.mxu0 0
    %4687 = vmatpush1.bf16.msra.mxu0 %v3554
    %4688 = vmatprep.subr.bf16.mxu0 0
    %4689 = vmatpush1.bf16.msra.mxu0 %v3553
    %4690 = vmatprep.subr.bf16.mxu0 0
    %4691 = vmatpush1.bf16.msra.mxu0 %v3552
    %4692 = vmatprep.subr.bf16.mxu0 0
    %4693 = vmatpush2.bf16.msra.mxu0 %v3567
    %4694 = vmatprep.subr.bf16.mxu0 0
    %4695 = vmatpush2.bf16.msra.mxu0 %v3566
    %4696 = vmatprep.subr.bf16.mxu0 0
    %4697 = vmatpush2.bf16.msra.mxu0 %v3565
    %4698 = vmatprep.subr.bf16.mxu0 0
    %4699 = vmatpush2.bf16.msra.mxu0 %v3564
    %4700 = vmatprep.subr.bf16.mxu0 0
    %4701 = vmatpush2.bf16.msra.mxu0 %v3563
    %4702 = vmatprep.subr.bf16.mxu0 0
    %4703 = vmatpush2.bf16.msra.mxu0 %v3562
    %4704 = vmatprep.subr.bf16.mxu0 0
    %4705 = vmatpush2.bf16.msra.mxu0 %v3561
    %4706 = vmatprep.subr.bf16.mxu0 0
    %4707 = vmatpush2.bf16.msra.mxu0 %v3560
    %4708 = vmatprep.mubr.bf16.mxu0 %v2057
    %4709 = vmatmul.mubr.bf16.gmra.mxu0 %v2056
    %v4710 = vpop.f32.mrf.mxu0
    %v4711 = vadd.f32 %v4486, %v4710
    %v4712 = vpop.f32.mrf.mxu0
    %v4713 = vpop.f32.mrf.mxu0
    %v4714 = vadd.f32 %v4489, %v4713
    %v4715 = vpop.f32.mrf.mxu0
    %4716 = vmatprep.mubr.bf16.mxu0 %v2075
    %4717 = vmatmul.mubr.bf16.gmra.mxu0 %v2074
    %v4718 = vpop.f32.mrf.mxu0
    %v4719 = vadd.f32 %v4494, %v4718
    %v4720 = vpop.f32.mrf.mxu0
    %v4721 = vpop.f32.mrf.mxu0
    %v4722 = vadd.f32 %v4497, %v4721
    %v4723 = vpop.f32.mrf.mxu0
    %4724 = vmatprep.mubr.bf16.mxu0 %v2093
    %4725 = vmatmul.mubr.bf16.gmra.mxu0 %v2092
    %v4726 = vpop.f32.mrf.mxu0
    %v4727 = vadd.f32 %v4502, %v4726
    %v4728 = vpop.f32.mrf.mxu0
    %v4729 = vpop.f32.mrf.mxu0
    %v4730 = vadd.f32 %v4505, %v4729
    %v4731 = vpop.f32.mrf.mxu0
    %4732 = vmatprep.mubr.bf16.mxu0 %v2111
    %4733 = vmatmul.mubr.bf16.gmra.mxu0 %v2110
    %v4734 = vpop.f32.mrf.mxu0
    %v4735 = vadd.f32 %v4510, %v4734
    %v4736 = vpop.f32.mrf.mxu0
    %v4737 = vpop.f32.mrf.mxu0
    %v4738 = vadd.f32 %v4513, %v4737
    %v4739 = vpop.f32.mrf.mxu0
    %4740 = vmatprep.mubr.bf16.mxu0 %v2129
    %4741 = vmatmul.mubr.bf16.gmra.mxu0 %v2128
    %v4742 = vpop.f32.mrf.mxu0
    %v4743 = vadd.f32 %v4518, %v4742
    %v4744 = vpop.f32.mrf.mxu0
    %v4745 = vpop.f32.mrf.mxu0
    %v4746 = vadd.f32 %v4521, %v4745
    %v4747 = vpop.f32.mrf.mxu0
    %4748 = vmatprep.mubr.bf16.mxu0 %v2147
    %4749 = vmatmul.mubr.bf16.gmra.mxu0 %v2146
    %v4750 = vpop.f32.mrf.mxu0
    %v4751 = vadd.f32 %v4526, %v4750
    %v4752 = vpop.f32.mrf.mxu0
    %v4753 = vpop.f32.mrf.mxu0
    %v4754 = vadd.f32 %v4529, %v4753
    %v4755 = vpop.f32.mrf.mxu0
    %4756 = vmatprep.mubr.bf16.mxu0 %v2165
    %4757 = vmatmul.mubr.bf16.gmra.mxu0 %v2164
    %v4758 = vpop.f32.mrf.mxu0
    %v4759 = vadd.f32 %v4534, %v4758
    %v4760 = vpop.f32.mrf.mxu0
    %v4761 = vpop.f32.mrf.mxu0
    %v4762 = vadd.f32 %v4537, %v4761
    %v4763 = vpop.f32.mrf.mxu0
    %4764 = vmatprep.mubr.bf16.mxu0 %v2183
    %4765 = vmatmul.mubr.bf16.gmra.mxu0 %v2182
    %v4766 = vpop.f32.mrf.mxu0
    %v4767 = vadd.f32 %v4542, %v4766
    %v4768 = vpop.f32.mrf.mxu0
    %v4769 = vpop.f32.mrf.mxu0
    %v4770 = vadd.f32 %v4545, %v4769
    %v4771 = vpop.f32.mrf.mxu0
    %4772 = vmatprep.mubr.bf16.mxu0 %v2201
    %4773 = vmatmul.mubr.bf16.gmra.mxu0 %v2200
    %v4774 = vpop.f32.mrf.mxu0
    %v4775 = vadd.f32 %v4550, %v4774
    %v4776 = vpop.f32.mrf.mxu0
    %v4777 = vpop.f32.mrf.mxu0
    %v4778 = vadd.f32 %v4553, %v4777
    %v4779 = vpop.f32.mrf.mxu0
    %4780 = vmatprep.mubr.bf16.mxu0 %v2219
    %4781 = vmatmul.mubr.bf16.gmra.mxu0 %v2218
    %v4782 = vpop.f32.mrf.mxu0
    %v4783 = vadd.f32 %v4558, %v4782
    %v4784 = vpop.f32.mrf.mxu0
    %v4785 = vpop.f32.mrf.mxu0
    %v4786 = vadd.f32 %v4561, %v4785
    %v4787 = vpop.f32.mrf.mxu0
    %4788 = vmatprep.mubr.bf16.mxu0 %v2237
    %4789 = vmatmul.mubr.bf16.gmra.mxu0 %v2236
    %v4790 = vpop.f32.mrf.mxu0
    %v4791 = vadd.f32 %v4566, %v4790
    %v4792 = vpop.f32.mrf.mxu0
    %v4793 = vpop.f32.mrf.mxu0
    %v4794 = vadd.f32 %v4569, %v4793
    %v4795 = vpop.f32.mrf.mxu0
    %4796 = vmatprep.mubr.bf16.mxu0 %v2255
    %4797 = vmatmul.mubr.bf16.gmra.mxu0 %v2254
    %v4798 = vpop.f32.mrf.mxu0
    %v4799 = vadd.f32 %v4574, %v4798
    %v4800 = vpop.f32.mrf.mxu0
    %v4801 = vpop.f32.mrf.mxu0
    %v4802 = vadd.f32 %v4577, %v4801
    %v4803 = vpop.f32.mrf.mxu0
    %4804 = vmatprep.mubr.bf16.mxu0 %v2273
    %4805 = vmatmul.mubr.bf16.gmra.mxu0 %v2272
    %v4806 = vpop.f32.mrf.mxu0
    %v4807 = vadd.f32 %v4582, %v4806
    %v4808 = vpop.f32.mrf.mxu0
    %v4809 = vpop.f32.mrf.mxu0
    %v4810 = vadd.f32 %v4585, %v4809
    %v4811 = vpop.f32.mrf.mxu0
    %4812 = vmatprep.mubr.bf16.mxu0 %v2291
    %4813 = vmatmul.mubr.bf16.gmra.mxu0 %v2290
    %v4814 = vpop.f32.mrf.mxu0
    %v4815 = vadd.f32 %v4590, %v4814
    %v4816 = vpop.f32.mrf.mxu0
    %v4817 = vpop.f32.mrf.mxu0
    %v4818 = vadd.f32 %v4593, %v4817
    %v4819 = vpop.f32.mrf.mxu0
    %4820 = vmatprep.mubr.bf16.mxu0 %v2309
    %4821 = vmatmul.mubr.bf16.gmra.mxu0 %v2308
    %v4822 = vpop.f32.mrf.mxu0
    %v4823 = vadd.f32 %v4598, %v4822
    %v4824 = vpop.f32.mrf.mxu0
    %v4825 = vpop.f32.mrf.mxu0
    %v4826 = vadd.f32 %v4601, %v4825
    %v4827 = vpop.f32.mrf.mxu0
    %4828 = vmatprep.mubr.bf16.mxu0 %v2327
    %4829 = vmatmul.mubr.bf16.gmra.mxu0 %v2326
    %v4830 = vpop.f32.mrf.mxu0
    %v4831 = vadd.f32 %v4606, %v4830
    %v4832 = vpop.f32.mrf.mxu0
    %v4833 = vpop.f32.mrf.mxu0
    %v4834 = vadd.f32 %v4609, %v4833
    %v4835 = vpop.f32.mrf.mxu0
    %4836 = vmatprep.mubr.bf16.mxu0 %v2345
    %4837 = vmatmul.mubr.bf16.gmra.mxu0 %v2344
    %v4838 = vpop.f32.mrf.mxu0
    %v4839 = vadd.f32 %v4614, %v4838
    %v4840 = vpop.f32.mrf.mxu0
    %v4841 = vpop.f32.mrf.mxu0
    %v4842 = vadd.f32 %v4617, %v4841
    %v4843 = vpop.f32.mrf.mxu0
    %4844 = vmatprep.mubr.bf16.mxu0 %v2363
    %4845 = vmatmul.mubr.bf16.gmra.mxu0 %v2362
    %v4846 = vpop.f32.mrf.mxu0
    %v4847 = vadd.f32 %v4622, %v4846
    %v4848 = vpop.f32.mrf.mxu0
    %v4849 = vpop.f32.mrf.mxu0
    %v4850 = vadd.f32 %v4625, %v4849
    %v4851 = vpop.f32.mrf.mxu0
    %4852 = vmatprep.mubr.bf16.mxu0 %v2381
    %4853 = vmatmul.mubr.bf16.gmra.mxu0 %v2380
    %v4854 = vpop.f32.mrf.mxu0
    %v4855 = vadd.f32 %v4630, %v4854
    %v4856 = vpop.f32.mrf.mxu0
    %v4857 = vpop.f32.mrf.mxu0
    %v4858 = vadd.f32 %v4633, %v4857
    %v4859 = vpop.f32.mrf.mxu0
    %4860 = vmatprep.mubr.bf16.mxu0 %v2399
    %4861 = vmatmul.mubr.bf16.gmra.mxu0 %v2398
    %v4862 = vpop.f32.mrf.mxu0
    %v4863 = vadd.f32 %v4638, %v4862
    %v4864 = vpop.f32.mrf.mxu0
    %v4865 = vpop.f32.mrf.mxu0
    %v4866 = vadd.f32 %v4641, %v4865
    %v4867 = vpop.f32.mrf.mxu0
    %4868 = vmatprep.mubr.bf16.mxu0 %v2417
    %4869 = vmatmul.mubr.bf16.gmra.mxu0 %v2416
    %v4870 = vpop.f32.mrf.mxu0
    %v4871 = vadd.f32 %v4646, %v4870
    %v4872 = vpop.f32.mrf.mxu0
    %v4873 = vpop.f32.mrf.mxu0
    %v4874 = vadd.f32 %v4649, %v4873
    %v4875 = vpop.f32.mrf.mxu0
    %4876 = vmatprep.mubr.bf16.mxu0 %v2435
    %4877 = vmatmul.mubr.bf16.gmra.mxu0 %v2434
    %v4878 = vpop.f32.mrf.mxu0
    %v4879 = vadd.f32 %v4654, %v4878
    %v4880 = vpop.f32.mrf.mxu0
    %v4881 = vpop.f32.mrf.mxu0
    %v4882 = vadd.f32 %v4657, %v4881
    %v4883 = vpop.f32.mrf.mxu0
    %4884 = vmatprep.mubr.bf16.mxu0 %v2453
    %4885 = vmatmul.mubr.bf16.gmra.mxu0 %v2452
    %v4886 = vpop.f32.mrf.mxu0
    %v4887 = vadd.f32 %v4662, %v4886
    %v4888 = vpop.f32.mrf.mxu0
    %v4889 = vpop.f32.mrf.mxu0
    %v4890 = vadd.f32 %v4665, %v4889
    %v4891 = vpop.f32.mrf.mxu0
    %4892 = vmatprep.mubr.bf16.mxu0 %v2471
    %4893 = vmatmul.mubr.bf16.gmra.mxu0 %v2470
    %v4894 = vpop.f32.mrf.mxu0
    %v4895 = vadd.f32 %v4670, %v4894
    %v4896 = vpop.f32.mrf.mxu0
    %v4897 = vpop.f32.mrf.mxu0
    %v4898 = vadd.f32 %v4673, %v4897
    %v4899 = vpop.f32.mrf.mxu0
    %4900 = vdwg.mxu0
    %4901 = vmatprep.subr.bf16.mxu0 0
    %4902 = vmatpush1.bf16.msra.mxu0 %v3575
    %4903 = vmatprep.subr.bf16.mxu0 0
    %4904 = vmatpush1.bf16.msra.mxu0 %v3574
    %4905 = vmatprep.subr.bf16.mxu0 0
    %4906 = vmatpush1.bf16.msra.mxu0 %v3573
    %4907 = vmatprep.subr.bf16.mxu0 0
    %4908 = vmatpush1.bf16.msra.mxu0 %v3572
    %4909 = vmatprep.subr.bf16.mxu0 0
    %4910 = vmatpush1.bf16.msra.mxu0 %v3571
    %4911 = vmatprep.subr.bf16.mxu0 0
    %4912 = vmatpush1.bf16.msra.mxu0 %v3570
    %4913 = vmatprep.subr.bf16.mxu0 0
    %4914 = vmatpush1.bf16.msra.mxu0 %v3569
    %4915 = vmatprep.subr.bf16.mxu0 0
    %4916 = vmatpush1.bf16.msra.mxu0 %v3568
    %4917 = vmatprep.subr.bf16.mxu0 0
    %4918 = vmatpush2.bf16.msra.mxu0 %v3583
    %4919 = vmatprep.subr.bf16.mxu0 0
    %4920 = vmatpush2.bf16.msra.mxu0 %v3582
    %4921 = vmatprep.subr.bf16.mxu0 0
    %4922 = vmatpush2.bf16.msra.mxu0 %v3581
    %4923 = vmatprep.subr.bf16.mxu0 0
    %4924 = vmatpush2.bf16.msra.mxu0 %v3580
    %4925 = vmatprep.subr.bf16.mxu0 0
    %4926 = vmatpush2.bf16.msra.mxu0 %v3579
    %4927 = vmatprep.subr.bf16.mxu0 0
    %4928 = vmatpush2.bf16.msra.mxu0 %v3578
    %4929 = vmatprep.subr.bf16.mxu0 0
    %4930 = vmatpush2.bf16.msra.mxu0 %v3577
    %4931 = vmatprep.subr.bf16.mxu0 0
    %4932 = vmatpush2.bf16.msra.mxu0 %v3576
    %4933 = vmatprep.mubr.bf16.mxu0 %v2059
    %4934 = vmatmul.mubr.bf16.gmra.mxu0 %v2058
    %v4935 = vpop.f32.mrf.mxu0
    %v4936 = vadd.f32 %v4711, %v4935
    %v4937 = vpop.f32.mrf.mxu0
    %v4938 = vpop.f32.mrf.mxu0
    %v4939 = vadd.f32 %v4714, %v4938
    %v4940 = vpop.f32.mrf.mxu0
    %4941 = vmatprep.mubr.bf16.mxu0 %v2077
    %4942 = vmatmul.mubr.bf16.gmra.mxu0 %v2076
    %v4943 = vpop.f32.mrf.mxu0
    %v4944 = vadd.f32 %v4719, %v4943
    %v4945 = vpop.f32.mrf.mxu0
    %v4946 = vpop.f32.mrf.mxu0
    %v4947 = vadd.f32 %v4722, %v4946
    %v4948 = vpop.f32.mrf.mxu0
    %4949 = vmatprep.mubr.bf16.mxu0 %v2095
    %4950 = vmatmul.mubr.bf16.gmra.mxu0 %v2094
    %v4951 = vpop.f32.mrf.mxu0
    %v4952 = vadd.f32 %v4727, %v4951
    %v4953 = vpop.f32.mrf.mxu0
    %v4954 = vpop.f32.mrf.mxu0
    %v4955 = vadd.f32 %v4730, %v4954
    %v4956 = vpop.f32.mrf.mxu0
    %4957 = vmatprep.mubr.bf16.mxu0 %v2113
    %4958 = vmatmul.mubr.bf16.gmra.mxu0 %v2112
    %v4959 = vpop.f32.mrf.mxu0
    %v4960 = vadd.f32 %v4735, %v4959
    %v4961 = vpop.f32.mrf.mxu0
    %v4962 = vpop.f32.mrf.mxu0
    %v4963 = vadd.f32 %v4738, %v4962
    %v4964 = vpop.f32.mrf.mxu0
    %4965 = vmatprep.mubr.bf16.mxu0 %v2131
    %4966 = vmatmul.mubr.bf16.gmra.mxu0 %v2130
    %v4967 = vpop.f32.mrf.mxu0
    %v4968 = vadd.f32 %v4743, %v4967
    %v4969 = vpop.f32.mrf.mxu0
    %v4970 = vpop.f32.mrf.mxu0
    %v4971 = vadd.f32 %v4746, %v4970
    %v4972 = vpop.f32.mrf.mxu0
    %4973 = vmatprep.mubr.bf16.mxu0 %v2149
    %4974 = vmatmul.mubr.bf16.gmra.mxu0 %v2148
    %v4975 = vpop.f32.mrf.mxu0
    %v4976 = vadd.f32 %v4751, %v4975
    %v4977 = vpop.f32.mrf.mxu0
    %v4978 = vpop.f32.mrf.mxu0
    %v4979 = vadd.f32 %v4754, %v4978
    %v4980 = vpop.f32.mrf.mxu0
    %4981 = vmatprep.mubr.bf16.mxu0 %v2167
    %4982 = vmatmul.mubr.bf16.gmra.mxu0 %v2166
    %v4983 = vpop.f32.mrf.mxu0
    %v4984 = vadd.f32 %v4759, %v4983
    %v4985 = vpop.f32.mrf.mxu0
    %v4986 = vpop.f32.mrf.mxu0
    %v4987 = vadd.f32 %v4762, %v4986
    %v4988 = vpop.f32.mrf.mxu0
    %4989 = vmatprep.mubr.bf16.mxu0 %v2185
    %4990 = vmatmul.mubr.bf16.gmra.mxu0 %v2184
    %v4991 = vpop.f32.mrf.mxu0
    %v4992 = vadd.f32 %v4767, %v4991
    %v4993 = vpop.f32.mrf.mxu0
    %v4994 = vpop.f32.mrf.mxu0
    %v4995 = vadd.f32 %v4770, %v4994
    %v4996 = vpop.f32.mrf.mxu0
    %4997 = vmatprep.mubr.bf16.mxu0 %v2203
    %4998 = vmatmul.mubr.bf16.gmra.mxu0 %v2202
    %v4999 = vpop.f32.mrf.mxu0
    %v5000 = vadd.f32 %v4775, %v4999
    %v5001 = vpop.f32.mrf.mxu0
    %v5002 = vpop.f32.mrf.mxu0
    %v5003 = vadd.f32 %v4778, %v5002
    %v5004 = vpop.f32.mrf.mxu0
    %5005 = vmatprep.mubr.bf16.mxu0 %v2221
    %5006 = vmatmul.mubr.bf16.gmra.mxu0 %v2220
    %v5007 = vpop.f32.mrf.mxu0
    %v5008 = vadd.f32 %v4783, %v5007
    %v5009 = vpop.f32.mrf.mxu0
    %v5010 = vpop.f32.mrf.mxu0
    %v5011 = vadd.f32 %v4786, %v5010
    %v5012 = vpop.f32.mrf.mxu0
    %5013 = vmatprep.mubr.bf16.mxu0 %v2239
    %5014 = vmatmul.mubr.bf16.gmra.mxu0 %v2238
    %v5015 = vpop.f32.mrf.mxu0
    %v5016 = vadd.f32 %v4791, %v5015
    %v5017 = vpop.f32.mrf.mxu0
    %v5018 = vpop.f32.mrf.mxu0
    %v5019 = vadd.f32 %v4794, %v5018
    %v5020 = vpop.f32.mrf.mxu0
    %5021 = vmatprep.mubr.bf16.mxu0 %v2257
    %5022 = vmatmul.mubr.bf16.gmra.mxu0 %v2256
    %v5023 = vpop.f32.mrf.mxu0
    %v5024 = vadd.f32 %v4799, %v5023
    %v5025 = vpop.f32.mrf.mxu0
    %v5026 = vpop.f32.mrf.mxu0
    %v5027 = vadd.f32 %v4802, %v5026
    %v5028 = vpop.f32.mrf.mxu0
    %5029 = vmatprep.mubr.bf16.mxu0 %v2275
    %5030 = vmatmul.mubr.bf16.gmra.mxu0 %v2274
    %v5031 = vpop.f32.mrf.mxu0
    %v5032 = vadd.f32 %v4807, %v5031
    %v5033 = vpop.f32.mrf.mxu0
    %v5034 = vpop.f32.mrf.mxu0
    %v5035 = vadd.f32 %v4810, %v5034
    %v5036 = vpop.f32.mrf.mxu0
    %5037 = vmatprep.mubr.bf16.mxu0 %v2293
    %5038 = vmatmul.mubr.bf16.gmra.mxu0 %v2292
    %v5039 = vpop.f32.mrf.mxu0
    %v5040 = vadd.f32 %v4815, %v5039
    %v5041 = vpop.f32.mrf.mxu0
    %v5042 = vpop.f32.mrf.mxu0
    %v5043 = vadd.f32 %v4818, %v5042
    %v5044 = vpop.f32.mrf.mxu0
    %5045 = vmatprep.mubr.bf16.mxu0 %v2311
    %5046 = vmatmul.mubr.bf16.gmra.mxu0 %v2310
    %v5047 = vpop.f32.mrf.mxu0
    %v5048 = vadd.f32 %v4823, %v5047
    %v5049 = vpop.f32.mrf.mxu0
    %v5050 = vpop.f32.mrf.mxu0
    %v5051 = vadd.f32 %v4826, %v5050
    %v5052 = vpop.f32.mrf.mxu0
    %5053 = vmatprep.mubr.bf16.mxu0 %v2329
    %5054 = vmatmul.mubr.bf16.gmra.mxu0 %v2328
    %v5055 = vpop.f32.mrf.mxu0
    %v5056 = vadd.f32 %v4831, %v5055
    %v5057 = vpop.f32.mrf.mxu0
    %v5058 = vpop.f32.mrf.mxu0
    %v5059 = vadd.f32 %v4834, %v5058
    %v5060 = vpop.f32.mrf.mxu0
    %5061 = vmatprep.mubr.bf16.mxu0 %v2347
    %5062 = vmatmul.mubr.bf16.gmra.mxu0 %v2346
    %v5063 = vpop.f32.mrf.mxu0
    %v5064 = vadd.f32 %v4839, %v5063
    %v5065 = vpop.f32.mrf.mxu0
    %v5066 = vpop.f32.mrf.mxu0
    %v5067 = vadd.f32 %v4842, %v5066
    %v5068 = vpop.f32.mrf.mxu0
    %5069 = vmatprep.mubr.bf16.mxu0 %v2365
    %5070 = vmatmul.mubr.bf16.gmra.mxu0 %v2364
    %v5071 = vpop.f32.mrf.mxu0
    %v5072 = vadd.f32 %v4847, %v5071
    %v5073 = vpop.f32.mrf.mxu0
    %v5074 = vpop.f32.mrf.mxu0
    %v5075 = vadd.f32 %v4850, %v5074
    %v5076 = vpop.f32.mrf.mxu0
    %5077 = vmatprep.mubr.bf16.mxu0 %v2383
    %5078 = vmatmul.mubr.bf16.gmra.mxu0 %v2382
    %v5079 = vpop.f32.mrf.mxu0
    %v5080 = vadd.f32 %v4855, %v5079
    %v5081 = vpop.f32.mrf.mxu0
    %v5082 = vpop.f32.mrf.mxu0
    %v5083 = vadd.f32 %v4858, %v5082
    %v5084 = vpop.f32.mrf.mxu0
    %5085 = vmatprep.mubr.bf16.mxu0 %v2401
    %5086 = vmatmul.mubr.bf16.gmra.mxu0 %v2400
    %v5087 = vpop.f32.mrf.mxu0
    %v5088 = vadd.f32 %v4863, %v5087
    %v5089 = vpop.f32.mrf.mxu0
    %v5090 = vpop.f32.mrf.mxu0
    %v5091 = vadd.f32 %v4866, %v5090
    %v5092 = vpop.f32.mrf.mxu0
    %5093 = vmatprep.mubr.bf16.mxu0 %v2419
    %5094 = vmatmul.mubr.bf16.gmra.mxu0 %v2418
    %v5095 = vpop.f32.mrf.mxu0
    %v5096 = vadd.f32 %v4871, %v5095
    %v5097 = vpop.f32.mrf.mxu0
    %v5098 = vpop.f32.mrf.mxu0
    %v5099 = vadd.f32 %v4874, %v5098
    %v5100 = vpop.f32.mrf.mxu0
    %5101 = vmatprep.mubr.bf16.mxu0 %v2437
    %5102 = vmatmul.mubr.bf16.gmra.mxu0 %v2436
    %v5103 = vpop.f32.mrf.mxu0
    %v5104 = vadd.f32 %v4879, %v5103
    %v5105 = vpop.f32.mrf.mxu0
    %v5106 = vpop.f32.mrf.mxu0
    %v5107 = vadd.f32 %v4882, %v5106
    %v5108 = vpop.f32.mrf.mxu0
    %5109 = vmatprep.mubr.bf16.mxu0 %v2455
    %5110 = vmatmul.mubr.bf16.gmra.mxu0 %v2454
    %v5111 = vpop.f32.mrf.mxu0
    %v5112 = vadd.f32 %v4887, %v5111
    %v5113 = vpop.f32.mrf.mxu0
    %v5114 = vpop.f32.mrf.mxu0
    %v5115 = vadd.f32 %v4890, %v5114
    %v5116 = vpop.f32.mrf.mxu0
    %5117 = vmatprep.mubr.bf16.mxu0 %v2473
    %5118 = vmatmul.mubr.bf16.gmra.mxu0 %v2472
    %v5119 = vpop.f32.mrf.mxu0
    %v5120 = vadd.f32 %v4895, %v5119
    %v5121 = vpop.f32.mrf.mxu0
    %v5122 = vpop.f32.mrf.mxu0
    %v5123 = vadd.f32 %v4898, %v5122
    %v5124 = vpop.f32.mrf.mxu0
    %5125 = vdwg.mxu0
    %5126 = vmatprep.subr.bf16.mxu0 0
    %5127 = vmatpush1.bf16.msra.mxu0 %v3591
    %5128 = vmatprep.subr.bf16.mxu0 0
    %5129 = vmatpush1.bf16.msra.mxu0 %v3590
    %5130 = vmatprep.subr.bf16.mxu0 0
    %5131 = vmatpush1.bf16.msra.mxu0 %v3589
    %5132 = vmatprep.subr.bf16.mxu0 0
    %5133 = vmatpush1.bf16.msra.mxu0 %v3588
    %5134 = vmatprep.subr.bf16.mxu0 0
    %5135 = vmatpush1.bf16.msra.mxu0 %v3587
    %5136 = vmatprep.subr.bf16.mxu0 0
    %5137 = vmatpush1.bf16.msra.mxu0 %v3586
    %5138 = vmatprep.subr.bf16.mxu0 0
    %5139 = vmatpush1.bf16.msra.mxu0 %v3585
    %5140 = vmatprep.subr.bf16.mxu0 0
    %5141 = vmatpush1.bf16.msra.mxu0 %v3584
    %5142 = vmatprep.subr.bf16.mxu0 0
    %5143 = vmatpush2.bf16.msra.mxu0 %v3599
    %5144 = vmatprep.subr.bf16.mxu0 0
    %5145 = vmatpush2.bf16.msra.mxu0 %v3598
    %5146 = vmatprep.subr.bf16.mxu0 0
    %5147 = vmatpush2.bf16.msra.mxu0 %v3597
    %5148 = vmatprep.subr.bf16.mxu0 0
    %5149 = vmatpush2.bf16.msra.mxu0 %v3596
    %5150 = vmatprep.subr.bf16.mxu0 0
    %5151 = vmatpush2.bf16.msra.mxu0 %v3595
    %5152 = vmatprep.subr.bf16.mxu0 0
    %5153 = vmatpush2.bf16.msra.mxu0 %v3594
    %5154 = vmatprep.subr.bf16.mxu0 0
    %5155 = vmatpush2.bf16.msra.mxu0 %v3593
    %5156 = vmatprep.subr.bf16.mxu0 0
    %5157 = vmatpush2.bf16.msra.mxu0 %v3592
    %5158 = vmatprep.mubr.bf16.mxu0 %v2061
    %5159 = vmatmul.mubr.bf16.gmra.mxu0 %v2060
    %v5160 = vpop.f32.mrf.mxu0
    %v5161 = vadd.f32 %v4936, %v5160
    %v5162 = vpop.f32.mrf.mxu0
    %v5163 = vpop.f32.mrf.mxu0
    %v5164 = vadd.f32 %v4939, %v5163
    %v5165 = vpop.f32.mrf.mxu0
    %5166 = vmatprep.mubr.bf16.mxu0 %v2079
    %5167 = vmatmul.mubr.bf16.gmra.mxu0 %v2078
    %v5168 = vpop.f32.mrf.mxu0
    %v5169 = vadd.f32 %v4944, %v5168
    %v5170 = vpop.f32.mrf.mxu0
    %v5171 = vpop.f32.mrf.mxu0
    %v5172 = vadd.f32 %v4947, %v5171
    %v5173 = vpop.f32.mrf.mxu0
    %5174 = vmatprep.mubr.bf16.mxu0 %v2097
    %5175 = vmatmul.mubr.bf16.gmra.mxu0 %v2096
    %v5176 = vpop.f32.mrf.mxu0
    %v5177 = vadd.f32 %v4952, %v5176
    %v5178 = vpop.f32.mrf.mxu0
    %v5179 = vpop.f32.mrf.mxu0
    %v5180 = vadd.f32 %v4955, %v5179
    %v5181 = vpop.f32.mrf.mxu0
    %5182 = vmatprep.mubr.bf16.mxu0 %v2115
    %5183 = vmatmul.mubr.bf16.gmra.mxu0 %v2114
    %v5184 = vpop.f32.mrf.mxu0
    %v5185 = vadd.f32 %v4960, %v5184
    %v5186 = vpop.f32.mrf.mxu0
    %v5187 = vpop.f32.mrf.mxu0
    %v5188 = vadd.f32 %v4963, %v5187
    %v5189 = vpop.f32.mrf.mxu0
    %5190 = vmatprep.mubr.bf16.mxu0 %v2133
    %5191 = vmatmul.mubr.bf16.gmra.mxu0 %v2132
    %v5192 = vpop.f32.mrf.mxu0
    %v5193 = vadd.f32 %v4968, %v5192
    %v5194 = vpop.f32.mrf.mxu0
    %v5195 = vpop.f32.mrf.mxu0
    %v5196 = vadd.f32 %v4971, %v5195
    %v5197 = vpop.f32.mrf.mxu0
    %5198 = vmatprep.mubr.bf16.mxu0 %v2151
    %5199 = vmatmul.mubr.bf16.gmra.mxu0 %v2150
    %v5200 = vpop.f32.mrf.mxu0
    %v5201 = vadd.f32 %v4976, %v5200
    %v5202 = vpop.f32.mrf.mxu0
    %v5203 = vpop.f32.mrf.mxu0
    %v5204 = vadd.f32 %v4979, %v5203
    %v5205 = vpop.f32.mrf.mxu0
    %5206 = vmatprep.mubr.bf16.mxu0 %v2169
    %5207 = vmatmul.mubr.bf16.gmra.mxu0 %v2168
    %v5208 = vpop.f32.mrf.mxu0
    %v5209 = vadd.f32 %v4984, %v5208
    %v5210 = vpop.f32.mrf.mxu0
    %v5211 = vpop.f32.mrf.mxu0
    %v5212 = vadd.f32 %v4987, %v5211
    %v5213 = vpop.f32.mrf.mxu0
    %5214 = vmatprep.mubr.bf16.mxu0 %v2187
    %5215 = vmatmul.mubr.bf16.gmra.mxu0 %v2186
    %v5216 = vpop.f32.mrf.mxu0
    %v5217 = vadd.f32 %v4992, %v5216
    %v5218 = vpop.f32.mrf.mxu0
    %v5219 = vpop.f32.mrf.mxu0
    %v5220 = vadd.f32 %v4995, %v5219
    %v5221 = vpop.f32.mrf.mxu0
    %5222 = vmatprep.mubr.bf16.mxu0 %v2205
    %5223 = vmatmul.mubr.bf16.gmra.mxu0 %v2204
    %v5224 = vpop.f32.mrf.mxu0
    %v5225 = vadd.f32 %v5000, %v5224
    %v5226 = vpop.f32.mrf.mxu0
    %v5227 = vpop.f32.mrf.mxu0
    %v5228 = vadd.f32 %v5003, %v5227
    %v5229 = vpop.f32.mrf.mxu0
    %5230 = vmatprep.mubr.bf16.mxu0 %v2223
    %5231 = vmatmul.mubr.bf16.gmra.mxu0 %v2222
    %v5232 = vpop.f32.mrf.mxu0
    %v5233 = vadd.f32 %v5008, %v5232
    %v5234 = vpop.f32.mrf.mxu0
    %v5235 = vpop.f32.mrf.mxu0
    %v5236 = vadd.f32 %v5011, %v5235
    %v5237 = vpop.f32.mrf.mxu0
    %5238 = vmatprep.mubr.bf16.mxu0 %v2241
    %5239 = vmatmul.mubr.bf16.gmra.mxu0 %v2240
    %v5240 = vpop.f32.mrf.mxu0
    %v5241 = vadd.f32 %v5016, %v5240
    %v5242 = vpop.f32.mrf.mxu0
    %v5243 = vpop.f32.mrf.mxu0
    %v5244 = vadd.f32 %v5019, %v5243
    %v5245 = vpop.f32.mrf.mxu0
    %5246 = vmatprep.mubr.bf16.mxu0 %v2259
    %5247 = vmatmul.mubr.bf16.gmra.mxu0 %v2258
    %v5248 = vpop.f32.mrf.mxu0
    %v5249 = vadd.f32 %v5024, %v5248
    %v5250 = vpop.f32.mrf.mxu0
    %v5251 = vpop.f32.mrf.mxu0
    %v5252 = vadd.f32 %v5027, %v5251
    %v5253 = vpop.f32.mrf.mxu0
    %5254 = vmatprep.mubr.bf16.mxu0 %v2277
    %5255 = vmatmul.mubr.bf16.gmra.mxu0 %v2276
    %v5256 = vpop.f32.mrf.mxu0
    %v5257 = vadd.f32 %v5032, %v5256
    %v5258 = vpop.f32.mrf.mxu0
    %v5259 = vpop.f32.mrf.mxu0
    %v5260 = vadd.f32 %v5035, %v5259
    %v5261 = vpop.f32.mrf.mxu0
    %5262 = vmatprep.mubr.bf16.mxu0 %v2295
    %5263 = vmatmul.mubr.bf16.gmra.mxu0 %v2294
    %v5264 = vpop.f32.mrf.mxu0
    %v5265 = vadd.f32 %v5040, %v5264
    %v5266 = vpop.f32.mrf.mxu0
    %v5267 = vpop.f32.mrf.mxu0
    %v5268 = vadd.f32 %v5043, %v5267
    %v5269 = vpop.f32.mrf.mxu0
    %5270 = vmatprep.mubr.bf16.mxu0 %v2313
    %5271 = vmatmul.mubr.bf16.gmra.mxu0 %v2312
    %v5272 = vpop.f32.mrf.mxu0
    %v5273 = vadd.f32 %v5048, %v5272
    %v5274 = vpop.f32.mrf.mxu0
    %v5275 = vpop.f32.mrf.mxu0
    %v5276 = vadd.f32 %v5051, %v5275
    %v5277 = vpop.f32.mrf.mxu0
    %5278 = vmatprep.mubr.bf16.mxu0 %v2331
    %5279 = vmatmul.mubr.bf16.gmra.mxu0 %v2330
    %v5280 = vpop.f32.mrf.mxu0
    %v5281 = vadd.f32 %v5056, %v5280
    %v5282 = vpop.f32.mrf.mxu0
    %v5283 = vpop.f32.mrf.mxu0
    %v5284 = vadd.f32 %v5059, %v5283
    %v5285 = vpop.f32.mrf.mxu0
    %5286 = vmatprep.mubr.bf16.mxu0 %v2349
    %5287 = vmatmul.mubr.bf16.gmra.mxu0 %v2348
    %v5288 = vpop.f32.mrf.mxu0
    %v5289 = vadd.f32 %v5064, %v5288
    %v5290 = vpop.f32.mrf.mxu0
    %v5291 = vpop.f32.mrf.mxu0
    %v5292 = vadd.f32 %v5067, %v5291
    %v5293 = vpop.f32.mrf.mxu0
    %5294 = vmatprep.mubr.bf16.mxu0 %v2367
    %5295 = vmatmul.mubr.bf16.gmra.mxu0 %v2366
    %v5296 = vpop.f32.mrf.mxu0
    %v5297 = vadd.f32 %v5072, %v5296
    %v5298 = vpop.f32.mrf.mxu0
    %v5299 = vpop.f32.mrf.mxu0
    %v5300 = vadd.f32 %v5075, %v5299
    %v5301 = vpop.f32.mrf.mxu0
    %5302 = vmatprep.mubr.bf16.mxu0 %v2385
    %5303 = vmatmul.mubr.bf16.gmra.mxu0 %v2384
    %v5304 = vpop.f32.mrf.mxu0
    %v5305 = vadd.f32 %v5080, %v5304
    %v5306 = vpop.f32.mrf.mxu0
    %v5307 = vpop.f32.mrf.mxu0
    %v5308 = vadd.f32 %v5083, %v5307
    %v5309 = vpop.f32.mrf.mxu0
    %5310 = vmatprep.mubr.bf16.mxu0 %v2403
    %5311 = vmatmul.mubr.bf16.gmra.mxu0 %v2402
    %v5312 = vpop.f32.mrf.mxu0
    %v5313 = vadd.f32 %v5088, %v5312
    %v5314 = vpop.f32.mrf.mxu0
    %v5315 = vpop.f32.mrf.mxu0
    %v5316 = vadd.f32 %v5091, %v5315
    %v5317 = vpop.f32.mrf.mxu0
    %5318 = vmatprep.mubr.bf16.mxu0 %v2421
    %5319 = vmatmul.mubr.bf16.gmra.mxu0 %v2420
    %v5320 = vpop.f32.mrf.mxu0
    %v5321 = vadd.f32 %v5096, %v5320
    %v5322 = vpop.f32.mrf.mxu0
    %v5323 = vpop.f32.mrf.mxu0
    %v5324 = vadd.f32 %v5099, %v5323
    %v5325 = vpop.f32.mrf.mxu0
    %5326 = vmatprep.mubr.bf16.mxu0 %v2439
    %5327 = vmatmul.mubr.bf16.gmra.mxu0 %v2438
    %v5328 = vpop.f32.mrf.mxu0
    %v5329 = vadd.f32 %v5104, %v5328
    %v5330 = vpop.f32.mrf.mxu0
    %v5331 = vpop.f32.mrf.mxu0
    %v5332 = vadd.f32 %v5107, %v5331
    %v5333 = vpop.f32.mrf.mxu0
    %5334 = vmatprep.mubr.bf16.mxu0 %v2457
    %5335 = vmatmul.mubr.bf16.gmra.mxu0 %v2456
    %v5336 = vpop.f32.mrf.mxu0
    %v5337 = vadd.f32 %v5112, %v5336
    %v5338 = vpop.f32.mrf.mxu0
    %v5339 = vpop.f32.mrf.mxu0
    %v5340 = vadd.f32 %v5115, %v5339
    %v5341 = vpop.f32.mrf.mxu0
    %5342 = vmatprep.mubr.bf16.mxu0 %v2475
    %5343 = vmatmul.mubr.bf16.gmra.mxu0 %v2474
    %v5344 = vpop.f32.mrf.mxu0
    %v5345 = vadd.f32 %v5120, %v5344
    %v5346 = vpop.f32.mrf.mxu0
    %v5347 = vpop.f32.mrf.mxu0
    %v5348 = vadd.f32 %v5123, %v5347
    %v5349 = vpop.f32.mrf.mxu0
    %5350 = vdwg.mxu0
    %5351 = vmatprep.subr.bf16.mxu0 0
    %5352 = vmatpush1.bf16.msra.mxu0 %v3607
    %5353 = vmatprep.subr.bf16.mxu0 0
    %5354 = vmatpush1.bf16.msra.mxu0 %v3606
    %5355 = vmatprep.subr.bf16.mxu0 0
    %5356 = vmatpush1.bf16.msra.mxu0 %v3605
    %5357 = vmatprep.subr.bf16.mxu0 0
    %5358 = vmatpush1.bf16.msra.mxu0 %v3604
    %5359 = vmatprep.subr.bf16.mxu0 0
    %5360 = vmatpush1.bf16.msra.mxu0 %v3603
    %5361 = vmatprep.subr.bf16.mxu0 0
    %5362 = vmatpush1.bf16.msra.mxu0 %v3602
    %5363 = vmatprep.subr.bf16.mxu0 0
    %5364 = vmatpush1.bf16.msra.mxu0 %v3601
    %5365 = vmatprep.subr.bf16.mxu0 0
    %5366 = vmatpush1.bf16.msra.mxu0 %v3600
    %5367 = vmatprep.subr.bf16.mxu0 0
    %5368 = vmatpush2.bf16.msra.mxu0 %v3615
    %5369 = vmatprep.subr.bf16.mxu0 0
    %5370 = vmatpush2.bf16.msra.mxu0 %v3614
    %5371 = vmatprep.subr.bf16.mxu0 0
    %5372 = vmatpush2.bf16.msra.mxu0 %v3613
    %5373 = vmatprep.subr.bf16.mxu0 0
    %5374 = vmatpush2.bf16.msra.mxu0 %v3612
    %5375 = vmatprep.subr.bf16.mxu0 0
    %5376 = vmatpush2.bf16.msra.mxu0 %v3611
    %5377 = vmatprep.subr.bf16.mxu0 0
    %5378 = vmatpush2.bf16.msra.mxu0 %v3610
    %5379 = vmatprep.subr.bf16.mxu0 0
    %5380 = vmatpush2.bf16.msra.mxu0 %v3609
    %5381 = vmatprep.subr.bf16.mxu0 0
    %5382 = vmatpush2.bf16.msra.mxu0 %v3608
    %5383 = vmatprep.mubr.bf16.mxu0 %v2063
    %5384 = vmatmul.mubr.bf16.gmra.mxu0 %v2062
    %v5385 = vpop.f32.mrf.mxu0
    %v5386 = vadd.f32 %v5161, %v5385
    %v5387 = vpop.f32.mrf.mxu0
    %v5388 = vpop.f32.mrf.mxu0
    %v5389 = vadd.f32 %v5164, %v5388
    %v5390 = vpop.f32.mrf.mxu0
    %5391 = vmatprep.mubr.bf16.mxu0 %v2081
    %5392 = vmatmul.mubr.bf16.gmra.mxu0 %v2080
    %v5393 = vpop.f32.mrf.mxu0
    %v5394 = vadd.f32 %v5169, %v5393
    %v5395 = vpop.f32.mrf.mxu0
    %v5396 = vpop.f32.mrf.mxu0
    %v5397 = vadd.f32 %v5172, %v5396
    %v5398 = vpop.f32.mrf.mxu0
    %5399 = vmatprep.mubr.bf16.mxu0 %v2099
    %5400 = vmatmul.mubr.bf16.gmra.mxu0 %v2098
    %v5401 = vpop.f32.mrf.mxu0
    %v5402 = vadd.f32 %v5177, %v5401
    %v5403 = vpop.f32.mrf.mxu0
    %v5404 = vpop.f32.mrf.mxu0
    %v5405 = vadd.f32 %v5180, %v5404
    %v5406 = vpop.f32.mrf.mxu0
    %5407 = vmatprep.mubr.bf16.mxu0 %v2117
    %5408 = vmatmul.mubr.bf16.gmra.mxu0 %v2116
    %v5409 = vpop.f32.mrf.mxu0
    %v5410 = vadd.f32 %v5185, %v5409
    %v5411 = vpop.f32.mrf.mxu0
    %v5412 = vpop.f32.mrf.mxu0
    %v5413 = vadd.f32 %v5188, %v5412
    %v5414 = vpop.f32.mrf.mxu0
    %5415 = vmatprep.mubr.bf16.mxu0 %v2135
    %5416 = vmatmul.mubr.bf16.gmra.mxu0 %v2134
    %v5417 = vpop.f32.mrf.mxu0
    %v5418 = vadd.f32 %v5193, %v5417
    %v5419 = vpop.f32.mrf.mxu0
    %v5420 = vpop.f32.mrf.mxu0
    %v5421 = vadd.f32 %v5196, %v5420
    %v5422 = vpop.f32.mrf.mxu0
    %5423 = vmatprep.mubr.bf16.mxu0 %v2153
    %5424 = vmatmul.mubr.bf16.gmra.mxu0 %v2152
    %v5425 = vpop.f32.mrf.mxu0
    %v5426 = vadd.f32 %v5201, %v5425
    %v5427 = vpop.f32.mrf.mxu0
    %v5428 = vpop.f32.mrf.mxu0
    %v5429 = vadd.f32 %v5204, %v5428
    %v5430 = vpop.f32.mrf.mxu0
    %5431 = vmatprep.mubr.bf16.mxu0 %v2171
    %5432 = vmatmul.mubr.bf16.gmra.mxu0 %v2170
    %v5433 = vpop.f32.mrf.mxu0
    %v5434 = vadd.f32 %v5209, %v5433
    %v5435 = vpop.f32.mrf.mxu0
    %v5436 = vpop.f32.mrf.mxu0
    %v5437 = vadd.f32 %v5212, %v5436
    %v5438 = vpop.f32.mrf.mxu0
    %5439 = vmatprep.mubr.bf16.mxu0 %v2189
    %5440 = vmatmul.mubr.bf16.gmra.mxu0 %v2188
    %v5441 = vpop.f32.mrf.mxu0
    %v5442 = vadd.f32 %v5217, %v5441
    %v5443 = vpop.f32.mrf.mxu0
    %v5444 = vpop.f32.mrf.mxu0
    %v5445 = vadd.f32 %v5220, %v5444
    %v5446 = vpop.f32.mrf.mxu0
    %5447 = vmatprep.mubr.bf16.mxu0 %v2207
    %5448 = vmatmul.mubr.bf16.gmra.mxu0 %v2206
    %v5449 = vpop.f32.mrf.mxu0
    %v5450 = vadd.f32 %v5225, %v5449
    %v5451 = vpop.f32.mrf.mxu0
    %v5452 = vpop.f32.mrf.mxu0
    %v5453 = vadd.f32 %v5228, %v5452
    %v5454 = vpop.f32.mrf.mxu0
    %5455 = vmatprep.mubr.bf16.mxu0 %v2225
    %5456 = vmatmul.mubr.bf16.gmra.mxu0 %v2224
    %v5457 = vpop.f32.mrf.mxu0
    %v5458 = vadd.f32 %v5233, %v5457
    %v5459 = vpop.f32.mrf.mxu0
    %v5460 = vpop.f32.mrf.mxu0
    %v5461 = vadd.f32 %v5236, %v5460
    %v5462 = vpop.f32.mrf.mxu0
    %5463 = vmatprep.mubr.bf16.mxu0 %v2243
    %5464 = vmatmul.mubr.bf16.gmra.mxu0 %v2242
    %v5465 = vpop.f32.mrf.mxu0
    %v5466 = vadd.f32 %v5241, %v5465
    %v5467 = vpop.f32.mrf.mxu0
    %v5468 = vpop.f32.mrf.mxu0
    %v5469 = vadd.f32 %v5244, %v5468
    %v5470 = vpop.f32.mrf.mxu0
    %5471 = vmatprep.mubr.bf16.mxu0 %v2261
    %5472 = vmatmul.mubr.bf16.gmra.mxu0 %v2260
    %v5473 = vpop.f32.mrf.mxu0
    %v5474 = vadd.f32 %v5249, %v5473
    %v5475 = vpop.f32.mrf.mxu0
    %v5476 = vpop.f32.mrf.mxu0
    %v5477 = vadd.f32 %v5252, %v5476
    %v5478 = vpop.f32.mrf.mxu0
    %5479 = vmatprep.mubr.bf16.mxu0 %v2279
    %5480 = vmatmul.mubr.bf16.gmra.mxu0 %v2278
    %v5481 = vpop.f32.mrf.mxu0
    %v5482 = vadd.f32 %v5257, %v5481
    %v5483 = vpop.f32.mrf.mxu0
    %v5484 = vpop.f32.mrf.mxu0
    %v5485 = vadd.f32 %v5260, %v5484
    %v5486 = vpop.f32.mrf.mxu0
    %5487 = vmatprep.mubr.bf16.mxu0 %v2297
    %5488 = vmatmul.mubr.bf16.gmra.mxu0 %v2296
    %v5489 = vpop.f32.mrf.mxu0
    %v5490 = vadd.f32 %v5265, %v5489
    %v5491 = vpop.f32.mrf.mxu0
    %v5492 = vpop.f32.mrf.mxu0
    %v5493 = vadd.f32 %v5268, %v5492
    %v5494 = vpop.f32.mrf.mxu0
    %5495 = vmatprep.mubr.bf16.mxu0 %v2315
    %5496 = vmatmul.mubr.bf16.gmra.mxu0 %v2314
    %v5497 = vpop.f32.mrf.mxu0
    %v5498 = vadd.f32 %v5273, %v5497
    %v5499 = vpop.f32.mrf.mxu0
    %v5500 = vpop.f32.mrf.mxu0
    %v5501 = vadd.f32 %v5276, %v5500
    %v5502 = vpop.f32.mrf.mxu0
    %5503 = vmatprep.mubr.bf16.mxu0 %v2333
    %5504 = vmatmul.mubr.bf16.gmra.mxu0 %v2332
    %v5505 = vpop.f32.mrf.mxu0
    %v5506 = vadd.f32 %v5281, %v5505
    %v5507 = vpop.f32.mrf.mxu0
    %v5508 = vpop.f32.mrf.mxu0
    %v5509 = vadd.f32 %v5284, %v5508
    %v5510 = vpop.f32.mrf.mxu0
    %5511 = vmatprep.mubr.bf16.mxu0 %v2351
    %5512 = vmatmul.mubr.bf16.gmra.mxu0 %v2350
    %v5513 = vpop.f32.mrf.mxu0
    %v5514 = vadd.f32 %v5289, %v5513
    %v5515 = vpop.f32.mrf.mxu0
    %v5516 = vpop.f32.mrf.mxu0
    %v5517 = vadd.f32 %v5292, %v5516
    %v5518 = vpop.f32.mrf.mxu0
    %5519 = vmatprep.mubr.bf16.mxu0 %v2369
    %5520 = vmatmul.mubr.bf16.gmra.mxu0 %v2368
    %v5521 = vpop.f32.mrf.mxu0
    %v5522 = vadd.f32 %v5297, %v5521
    %v5523 = vpop.f32.mrf.mxu0
    %v5524 = vpop.f32.mrf.mxu0
    %v5525 = vadd.f32 %v5300, %v5524
    %v5526 = vpop.f32.mrf.mxu0
    %5527 = vmatprep.mubr.bf16.mxu0 %v2387
    %5528 = vmatmul.mubr.bf16.gmra.mxu0 %v2386
    %v5529 = vpop.f32.mrf.mxu0
    %v5530 = vadd.f32 %v5305, %v5529
    %v5531 = vpop.f32.mrf.mxu0
    %v5532 = vpop.f32.mrf.mxu0
    %v5533 = vadd.f32 %v5308, %v5532
    %v5534 = vpop.f32.mrf.mxu0
    %5535 = vmatprep.mubr.bf16.mxu0 %v2405
    %5536 = vmatmul.mubr.bf16.gmra.mxu0 %v2404
    %v5537 = vpop.f32.mrf.mxu0
    %v5538 = vadd.f32 %v5313, %v5537
    %v5539 = vpop.f32.mrf.mxu0
    %v5540 = vpop.f32.mrf.mxu0
    %v5541 = vadd.f32 %v5316, %v5540
    %v5542 = vpop.f32.mrf.mxu0
    %5543 = vmatprep.mubr.bf16.mxu0 %v2423
    %5544 = vmatmul.mubr.bf16.gmra.mxu0 %v2422
    %v5545 = vpop.f32.mrf.mxu0
    %v5546 = vadd.f32 %v5321, %v5545
    %v5547 = vpop.f32.mrf.mxu0
    %v5548 = vpop.f32.mrf.mxu0
    %v5549 = vadd.f32 %v5324, %v5548
    %v5550 = vpop.f32.mrf.mxu0
    %5551 = vmatprep.mubr.bf16.mxu0 %v2441
    %5552 = vmatmul.mubr.bf16.gmra.mxu0 %v2440
    %v5553 = vpop.f32.mrf.mxu0
    %v5554 = vadd.f32 %v5329, %v5553
    %v5555 = vpop.f32.mrf.mxu0
    %v5556 = vpop.f32.mrf.mxu0
    %v5557 = vadd.f32 %v5332, %v5556
    %v5558 = vpop.f32.mrf.mxu0
    %5559 = vmatprep.mubr.bf16.mxu0 %v2459
    %5560 = vmatmul.mubr.bf16.gmra.mxu0 %v2458
    %v5561 = vpop.f32.mrf.mxu0
    %v5562 = vadd.f32 %v5337, %v5561
    %v5563 = vpop.f32.mrf.mxu0
    %v5564 = vpop.f32.mrf.mxu0
    %v5565 = vadd.f32 %v5340, %v5564
    %v5566 = vpop.f32.mrf.mxu0
    %5567 = vmatprep.mubr.bf16.mxu0 %v2477
    %5568 = vmatmul.mubr.bf16.gmra.mxu0 %v2476
    %v5569 = vpop.f32.mrf.mxu0
    %v5570 = vadd.f32 %v5345, %v5569
    %v5571 = vpop.f32.mrf.mxu0
    %v5572 = vpop.f32.mrf.mxu0
    %v5573 = vadd.f32 %v5348, %v5572
    %v5574 = vpop.f32.mrf.mxu0
    %5575 = vdwg.mxu0
    %5576 = vmatprep.subr.bf16.mxu0 0
    %5577 = vmatpush1.bf16.msra.mxu0 %v3623
    %5578 = vmatprep.subr.bf16.mxu0 0
    %5579 = vmatpush1.bf16.msra.mxu0 %v3622
    %5580 = vmatprep.subr.bf16.mxu0 0
    %5581 = vmatpush1.bf16.msra.mxu0 %v3621
    %5582 = vmatprep.subr.bf16.mxu0 0
    %5583 = vmatpush1.bf16.msra.mxu0 %v3620
    %5584 = vmatprep.subr.bf16.mxu0 0
    %5585 = vmatpush1.bf16.msra.mxu0 %v3619
    %5586 = vmatprep.subr.bf16.mxu0 0
    %5587 = vmatpush1.bf16.msra.mxu0 %v3618
    %5588 = vmatprep.subr.bf16.mxu0 0
    %5589 = vmatpush1.bf16.msra.mxu0 %v3617
    %5590 = vmatprep.subr.bf16.mxu0 0
    %5591 = vmatpush1.bf16.msra.mxu0 %v3616
    %5592 = vmatprep.subr.bf16.mxu0 0
    %5593 = vmatpush2.bf16.msra.mxu0 %v3631
    %5594 = vmatprep.subr.bf16.mxu0 0
    %5595 = vmatpush2.bf16.msra.mxu0 %v3630
    %5596 = vmatprep.subr.bf16.mxu0 0
    %5597 = vmatpush2.bf16.msra.mxu0 %v3629
    %5598 = vmatprep.subr.bf16.mxu0 0
    %5599 = vmatpush2.bf16.msra.mxu0 %v3628
    %5600 = vmatprep.subr.bf16.mxu0 0
    %5601 = vmatpush2.bf16.msra.mxu0 %v3627
    %5602 = vmatprep.subr.bf16.mxu0 0
    %5603 = vmatpush2.bf16.msra.mxu0 %v3626
    %5604 = vmatprep.subr.bf16.mxu0 0
    %5605 = vmatpush2.bf16.msra.mxu0 %v3625
    %5606 = vmatprep.subr.bf16.mxu0 0
    %5607 = vmatpush2.bf16.msra.mxu0 %v3624
    %5608 = vmatprep.mubr.bf16.mxu0 %v2065
    %5609 = vmatmul.mubr.bf16.gmra.mxu0 %v2064
    %v5610 = vpop.f32.mrf.mxu0
    %v5611 = vadd.f32 %v5386, %v5610
    %v5612 = vpop.f32.mrf.mxu0
    %v5613 = vpop.f32.mrf.mxu0
    %v5614 = vadd.f32 %v5389, %v5613
    %v5615 = vpop.f32.mrf.mxu0
    %5616 = vmatprep.mubr.bf16.mxu0 %v2083
    %5617 = vmatmul.mubr.bf16.gmra.mxu0 %v2082
    %v5618 = vpop.f32.mrf.mxu0
    %v5619 = vadd.f32 %v5394, %v5618
    %v5620 = vpop.f32.mrf.mxu0
    %v5621 = vpop.f32.mrf.mxu0
    %v5622 = vadd.f32 %v5397, %v5621
    %v5623 = vpop.f32.mrf.mxu0
    %5624 = vmatprep.mubr.bf16.mxu0 %v2101
    %5625 = vmatmul.mubr.bf16.gmra.mxu0 %v2100
    %v5626 = vpop.f32.mrf.mxu0
    %v5627 = vadd.f32 %v5402, %v5626
    %v5628 = vpop.f32.mrf.mxu0
    %v5629 = vpop.f32.mrf.mxu0
    %v5630 = vadd.f32 %v5405, %v5629
    %v5631 = vpop.f32.mrf.mxu0
    %5632 = vmatprep.mubr.bf16.mxu0 %v2119
    %5633 = vmatmul.mubr.bf16.gmra.mxu0 %v2118
    %v5634 = vpop.f32.mrf.mxu0
    %v5635 = vadd.f32 %v5410, %v5634
    %v5636 = vpop.f32.mrf.mxu0
    %v5637 = vpop.f32.mrf.mxu0
    %v5638 = vadd.f32 %v5413, %v5637
    %v5639 = vpop.f32.mrf.mxu0
    %5640 = vmatprep.mubr.bf16.mxu0 %v2137
    %5641 = vmatmul.mubr.bf16.gmra.mxu0 %v2136
    %v5642 = vpop.f32.mrf.mxu0
    %v5643 = vadd.f32 %v5418, %v5642
    %v5644 = vpop.f32.mrf.mxu0
    %v5645 = vpop.f32.mrf.mxu0
    %v5646 = vadd.f32 %v5421, %v5645
    %v5647 = vpop.f32.mrf.mxu0
    %5648 = vmatprep.mubr.bf16.mxu0 %v2155
    %5649 = vmatmul.mubr.bf16.gmra.mxu0 %v2154
    %v5650 = vpop.f32.mrf.mxu0
    %v5651 = vadd.f32 %v5426, %v5650
    %v5652 = vpop.f32.mrf.mxu0
    %v5653 = vpop.f32.mrf.mxu0
    %v5654 = vadd.f32 %v5429, %v5653
    %v5655 = vpop.f32.mrf.mxu0
    %5656 = vmatprep.mubr.bf16.mxu0 %v2173
    %5657 = vmatmul.mubr.bf16.gmra.mxu0 %v2172
    %v5658 = vpop.f32.mrf.mxu0
    %v5659 = vadd.f32 %v5434, %v5658
    %v5660 = vpop.f32.mrf.mxu0
    %v5661 = vpop.f32.mrf.mxu0
    %v5662 = vadd.f32 %v5437, %v5661
    %v5663 = vpop.f32.mrf.mxu0
    %5664 = vmatprep.mubr.bf16.mxu0 %v2191
    %5665 = vmatmul.mubr.bf16.gmra.mxu0 %v2190
    %v5666 = vpop.f32.mrf.mxu0
    %v5667 = vadd.f32 %v5442, %v5666
    %v5668 = vpop.f32.mrf.mxu0
    %v5669 = vpop.f32.mrf.mxu0
    %v5670 = vadd.f32 %v5445, %v5669
    %v5671 = vpop.f32.mrf.mxu0
    %5672 = vmatprep.mubr.bf16.mxu0 %v2209
    %5673 = vmatmul.mubr.bf16.gmra.mxu0 %v2208
    %v5674 = vpop.f32.mrf.mxu0
    %v5675 = vadd.f32 %v5450, %v5674
    %v5676 = vpop.f32.mrf.mxu0
    %v5677 = vpop.f32.mrf.mxu0
    %v5678 = vadd.f32 %v5453, %v5677
    %v5679 = vpop.f32.mrf.mxu0
    %5680 = vmatprep.mubr.bf16.mxu0 %v2227
    %5681 = vmatmul.mubr.bf16.gmra.mxu0 %v2226
    %v5682 = vpop.f32.mrf.mxu0
    %v5683 = vadd.f32 %v5458, %v5682
    %v5684 = vpop.f32.mrf.mxu0
    %v5685 = vpop.f32.mrf.mxu0
    %v5686 = vadd.f32 %v5461, %v5685
    %v5687 = vpop.f32.mrf.mxu0
    %5688 = vmatprep.mubr.bf16.mxu0 %v2245
    %5689 = vmatmul.mubr.bf16.gmra.mxu0 %v2244
    %v5690 = vpop.f32.mrf.mxu0
    %v5691 = vadd.f32 %v5466, %v5690
    %v5692 = vpop.f32.mrf.mxu0
    %v5693 = vpop.f32.mrf.mxu0
    %v5694 = vadd.f32 %v5469, %v5693
    %v5695 = vpop.f32.mrf.mxu0
    %5696 = vmatprep.mubr.bf16.mxu0 %v2263
    %5697 = vmatmul.mubr.bf16.gmra.mxu0 %v2262
    %v5698 = vpop.f32.mrf.mxu0
    %v5699 = vadd.f32 %v5474, %v5698
    %v5700 = vpop.f32.mrf.mxu0
    %v5701 = vpop.f32.mrf.mxu0
    %v5702 = vadd.f32 %v5477, %v5701
    %v5703 = vpop.f32.mrf.mxu0
    %5704 = vmatprep.mubr.bf16.mxu0 %v2281
    %5705 = vmatmul.mubr.bf16.gmra.mxu0 %v2280
    %v5706 = vpop.f32.mrf.mxu0
    %v5707 = vadd.f32 %v5482, %v5706
    %v5708 = vpop.f32.mrf.mxu0
    %v5709 = vpop.f32.mrf.mxu0
    %v5710 = vadd.f32 %v5485, %v5709
    %v5711 = vpop.f32.mrf.mxu0
    %5712 = vmatprep.mubr.bf16.mxu0 %v2299
    %5713 = vmatmul.mubr.bf16.gmra.mxu0 %v2298
    %v5714 = vpop.f32.mrf.mxu0
    %v5715 = vadd.f32 %v5490, %v5714
    %v5716 = vpop.f32.mrf.mxu0
    %v5717 = vpop.f32.mrf.mxu0
    %v5718 = vadd.f32 %v5493, %v5717
    %v5719 = vpop.f32.mrf.mxu0
    %5720 = vmatprep.mubr.bf16.mxu0 %v2317
    %5721 = vmatmul.mubr.bf16.gmra.mxu0 %v2316
    %v5722 = vpop.f32.mrf.mxu0
    %v5723 = vadd.f32 %v5498, %v5722
    %v5724 = vpop.f32.mrf.mxu0
    %v5725 = vpop.f32.mrf.mxu0
    %v5726 = vadd.f32 %v5501, %v5725
    %v5727 = vpop.f32.mrf.mxu0
    %5728 = vmatprep.mubr.bf16.mxu0 %v2335
    %5729 = vmatmul.mubr.bf16.gmra.mxu0 %v2334
    %v5730 = vpop.f32.mrf.mxu0
    %v5731 = vadd.f32 %v5506, %v5730
    %v5732 = vpop.f32.mrf.mxu0
    %v5733 = vpop.f32.mrf.mxu0
    %v5734 = vadd.f32 %v5509, %v5733
    %v5735 = vpop.f32.mrf.mxu0
    %5736 = vmatprep.mubr.bf16.mxu0 %v2353
    %5737 = vmatmul.mubr.bf16.gmra.mxu0 %v2352
    %v5738 = vpop.f32.mrf.mxu0
    %v5739 = vadd.f32 %v5514, %v5738
    %v5740 = vpop.f32.mrf.mxu0
    %v5741 = vpop.f32.mrf.mxu0
    %v5742 = vadd.f32 %v5517, %v5741
    %v5743 = vpop.f32.mrf.mxu0
    %5744 = vmatprep.mubr.bf16.mxu0 %v2371
    %5745 = vmatmul.mubr.bf16.gmra.mxu0 %v2370
    %v5746 = vpop.f32.mrf.mxu0
    %v5747 = vadd.f32 %v5522, %v5746
    %v5748 = vpop.f32.mrf.mxu0
    %v5749 = vpop.f32.mrf.mxu0
    %v5750 = vadd.f32 %v5525, %v5749
    %v5751 = vpop.f32.mrf.mxu0
    %5752 = vmatprep.mubr.bf16.mxu0 %v2389
    %5753 = vmatmul.mubr.bf16.gmra.mxu0 %v2388
    %v5754 = vpop.f32.mrf.mxu0
    %v5755 = vadd.f32 %v5530, %v5754
    %v5756 = vpop.f32.mrf.mxu0
    %v5757 = vpop.f32.mrf.mxu0
    %v5758 = vadd.f32 %v5533, %v5757
    %v5759 = vpop.f32.mrf.mxu0
    %5760 = vmatprep.mubr.bf16.mxu0 %v2407
    %5761 = vmatmul.mubr.bf16.gmra.mxu0 %v2406
    %v5762 = vpop.f32.mrf.mxu0
    %v5763 = vadd.f32 %v5538, %v5762
    %v5764 = vpop.f32.mrf.mxu0
    %v5765 = vpop.f32.mrf.mxu0
    %v5766 = vadd.f32 %v5541, %v5765
    %v5767 = vpop.f32.mrf.mxu0
    %5768 = vmatprep.mubr.bf16.mxu0 %v2425
    %5769 = vmatmul.mubr.bf16.gmra.mxu0 %v2424
    %v5770 = vpop.f32.mrf.mxu0
    %v5771 = vadd.f32 %v5546, %v5770
    %v5772 = vpop.f32.mrf.mxu0
    %v5773 = vpop.f32.mrf.mxu0
    %v5774 = vadd.f32 %v5549, %v5773
    %v5775 = vpop.f32.mrf.mxu0
    %5776 = vmatprep.mubr.bf16.mxu0 %v2443
    %5777 = vmatmul.mubr.bf16.gmra.mxu0 %v2442
    %v5778 = vpop.f32.mrf.mxu0
    %v5779 = vadd.f32 %v5554, %v5778
    %v5780 = vpop.f32.mrf.mxu0
    %v5781 = vpop.f32.mrf.mxu0
    %v5782 = vadd.f32 %v5557, %v5781
    %v5783 = vpop.f32.mrf.mxu0
    %5784 = vmatprep.mubr.bf16.mxu0 %v2461
    %5785 = vmatmul.mubr.bf16.gmra.mxu0 %v2460
    %v5786 = vpop.f32.mrf.mxu0
    %v5787 = vadd.f32 %v5562, %v5786
    %v5788 = vpop.f32.mrf.mxu0
    %v5789 = vpop.f32.mrf.mxu0
    %v5790 = vadd.f32 %v5565, %v5789
    %v5791 = vpop.f32.mrf.mxu0
    %5792 = vmatprep.mubr.bf16.mxu0 %v2479
    %5793 = vmatmul.mubr.bf16.gmra.mxu0 %v2478
    %v5794 = vpop.f32.mrf.mxu0
    %v5795 = vadd.f32 %v5570, %v5794
    %v5796 = vpop.f32.mrf.mxu0
    %v5797 = vpop.f32.mrf.mxu0
    %v5798 = vadd.f32 %v5573, %v5797
    %v5799 = vpop.f32.mrf.mxu0
    %5800 = vdwg.mxu0
    %vm5801 = vcmask 400384
    %v5802 = vsel %vm5801, %v5611, 0.0
    %5803 = vadd.xlane.f32.xlu0 %v5802
    %v5804 = vpop.xlane.xlu0 %5803
    %v5805 = vsel %vm5801, %v5614, 0.0
    %5806 = vadd.xlane.f32.xlu0 %v5805
    %v5807 = vpop.xlane.xlu0 %5806
    %v5808 = vsel %vm5801, %v5619, 0.0
    %5809 = vadd.xlane.f32.xlu0 %v5808
    %v5810 = vpop.xlane.xlu0 %5809
    %v5811 = vsel %vm5801, %v5622, 0.0
    %5812 = vadd.xlane.f32.xlu0 %v5811
    %v5813 = vpop.xlane.xlu0 %5812
    %v5814 = vsel %vm5801, %v5627, 0.0
    %5815 = vadd.xlane.f32.xlu0 %v5814
    %v5816 = vpop.xlane.xlu0 %5815
    %v5817 = vsel %vm5801, %v5630, 0.0
    %5818 = vadd.xlane.f32.xlu0 %v5817
    %v5819 = vpop.xlane.xlu0 %5818
    %v5820 = vsel %vm5801, %v5635, 0.0
    %5821 = vadd.xlane.f32.xlu0 %v5820
    %v5822 = vpop.xlane.xlu0 %5821
    %v5823 = vsel %vm5801, %v5638, 0.0
    %5824 = vadd.xlane.f32.xlu0 %v5823
    %v5825 = vpop.xlane.xlu0 %5824
    %v5826 = vsel %vm5801, %v5643, 0.0
    %5827 = vadd.xlane.f32.xlu0 %v5826
    %v5828 = vpop.xlane.xlu0 %5827
    %v5829 = vsel %vm5801, %v5646, 0.0
    %5830 = vadd.xlane.f32.xlu0 %v5829
    %v5831 = vpop.xlane.xlu0 %5830
    %v5832 = vsel %vm5801, %v5651, 0.0
    %5833 = vadd.xlane.f32.xlu0 %v5832
    %v5834 = vpop.xlane.xlu0 %5833
    %v5835 = vsel %vm5801, %v5654, 0.0
    %5836 = vadd.xlane.f32.xlu0 %v5835
    %v5837 = vpop.xlane.xlu0 %5836
    %v5838 = vsel %vm5801, %v5659, 0.0
    %5839 = vadd.xlane.f32.xlu0 %v5838
    %v5840 = vpop.xlane.xlu0 %5839
    %v5841 = vsel %vm5801, %v5662, 0.0
    %5842 = vadd.xlane.f32.xlu0 %v5841
    %v5843 = vpop.xlane.xlu0 %5842
    %v5844 = vsel %vm5801, %v5667, 0.0
    %5845 = vadd.xlane.f32.xlu0 %v5844
    %v5846 = vpop.xlane.xlu0 %5845
    %v5847 = vsel %vm5801, %v5670, 0.0
    %5848 = vadd.xlane.f32.xlu0 %v5847
    %v5849 = vpop.xlane.xlu0 %5848
    %v5850 = vsel %vm5801, %v5675, 0.0
    %5851 = vadd.xlane.f32.xlu0 %v5850
    %v5852 = vpop.xlane.xlu0 %5851
    %v5853 = vsel %vm5801, %v5678, 0.0
    %5854 = vadd.xlane.f32.xlu0 %v5853
    %v5855 = vpop.xlane.xlu0 %5854
    %v5856 = vsel %vm5801, %v5683, 0.0
    %5857 = vadd.xlane.f32.xlu0 %v5856
    %v5858 = vpop.xlane.xlu0 %5857
    %v5859 = vsel %vm5801, %v5686, 0.0
    %5860 = vadd.xlane.f32.xlu0 %v5859
    %v5861 = vpop.xlane.xlu0 %5860
    %v5862 = vsel %vm5801, %v5691, 0.0
    %5863 = vadd.xlane.f32.xlu0 %v5862
    %v5864 = vpop.xlane.xlu0 %5863
    %v5865 = vsel %vm5801, %v5694, 0.0
    %5866 = vadd.xlane.f32.xlu0 %v5865
    %v5867 = vpop.xlane.xlu0 %5866
    %v5868 = vsel %vm5801, %v5699, 0.0
    %5869 = vadd.xlane.f32.xlu0 %v5868
    %v5870 = vpop.xlane.xlu0 %5869
    %v5871 = vsel %vm5801, %v5702, 0.0
    %5872 = vadd.xlane.f32.xlu0 %v5871
    %v5873 = vpop.xlane.xlu0 %5872
    %v5874 = vsel %vm5801, %v5707, 0.0
    %5875 = vadd.xlane.f32.xlu0 %v5874
    %v5876 = vpop.xlane.xlu0 %5875
    %v5877 = vsel %vm5801, %v5710, 0.0
    %5878 = vadd.xlane.f32.xlu0 %v5877
    %v5879 = vpop.xlane.xlu0 %5878
    %v5880 = vsel %vm5801, %v5715, 0.0
    %5881 = vadd.xlane.f32.xlu0 %v5880
    %v5882 = vpop.xlane.xlu0 %5881
    %v5883 = vsel %vm5801, %v5718, 0.0
    %5884 = vadd.xlane.f32.xlu0 %v5883
    %v5885 = vpop.xlane.xlu0 %5884
    %v5886 = vsel %vm5801, %v5723, 0.0
    %5887 = vadd.xlane.f32.xlu0 %v5886
    %v5888 = vpop.xlane.xlu0 %5887
    %v5889 = vsel %vm5801, %v5726, 0.0
    %5890 = vadd.xlane.f32.xlu0 %v5889
    %v5891 = vpop.xlane.xlu0 %5890
    %v5892 = vsel %vm5801, %v5731, 0.0
    %5893 = vadd.xlane.f32.xlu0 %v5892
    %v5894 = vpop.xlane.xlu0 %5893
    %v5895 = vsel %vm5801, %v5734, 0.0
    %5896 = vadd.xlane.f32.xlu0 %v5895
    %v5897 = vpop.xlane.xlu0 %5896
    %v5898 = vsel %vm5801, %v5739, 0.0
    %5899 = vadd.xlane.f32.xlu0 %v5898
    %v5900 = vpop.xlane.xlu0 %5899
    %v5901 = vsel %vm5801, %v5742, 0.0
    %5902 = vadd.xlane.f32.xlu0 %v5901
    %v5903 = vpop.xlane.xlu0 %5902
    %v5904 = vsel %vm5801, %v5747, 0.0
    %5905 = vadd.xlane.f32.xlu0 %v5904
    %v5906 = vpop.xlane.xlu0 %5905
    %v5907 = vsel %vm5801, %v5750, 0.0
    %5908 = vadd.xlane.f32.xlu0 %v5907
    %v5909 = vpop.xlane.xlu0 %5908
    %v5910 = vsel %vm5801, %v5755, 0.0
    %5911 = vadd.xlane.f32.xlu0 %v5910
    %v5912 = vpop.xlane.xlu0 %5911
    %v5913 = vsel %vm5801, %v5758, 0.0
    %5914 = vadd.xlane.f32.xlu0 %v5913
    %v5915 = vpop.xlane.xlu0 %5914
    %v5916 = vsel %vm5801, %v5763, 0.0
    %5917 = vadd.xlane.f32.xlu0 %v5916
    %v5918 = vpop.xlane.xlu0 %5917
    %v5919 = vsel %vm5801, %v5766, 0.0
    %5920 = vadd.xlane.f32.xlu0 %v5919
    %v5921 = vpop.xlane.xlu0 %5920
    %v5922 = vsel %vm5801, %v5771, 0.0
    %5923 = vadd.xlane.f32.xlu0 %v5922
    %v5924 = vpop.xlane.xlu0 %5923
    %v5925 = vsel %vm5801, %v5774, 0.0
    %5926 = vadd.xlane.f32.xlu0 %v5925
    %v5927 = vpop.xlane.xlu0 %5926
    %v5928 = vsel %vm5801, %v5779, 0.0
    %5929 = vadd.xlane.f32.xlu0 %v5928
    %v5930 = vpop.xlane.xlu0 %5929
    %v5931 = vsel %vm5801, %v5782, 0.0
    %5932 = vadd.xlane.f32.xlu0 %v5931
    %v5933 = vpop.xlane.xlu0 %5932
    %v5934 = vsel %vm5801, %v5787, 0.0
    %5935 = vadd.xlane.f32.xlu0 %v5934
    %v5936 = vpop.xlane.xlu0 %5935
    %v5937 = vsel %vm5801, %v5790, 0.0
    %5938 = vadd.xlane.f32.xlu0 %v5937
    %v5939 = vpop.xlane.xlu0 %5938
    %v5940 = vsel %vm5801, %v5795, 0.0
    %5941 = vadd.xlane.f32.xlu0 %v5940
    %v5942 = vpop.xlane.xlu0 %5941
    %v5943 = vsel %vm5801, %v5798, 0.0
    %5944 = vadd.xlane.f32.xlu0 %v5943
    %v5945 = vpop.xlane.xlu0 %5944
    %v5946 = vrcp.pop 49.0
    %v5947 = vmul.f32 %v5804, %v5946
    %v5948 = vmul.f32 %v5807, %v5946
    %v5949 = vmul.f32 %v5810, %v5946
    %v5950 = vmul.f32 %v5813, %v5946
    %v5951 = vmul.f32 %v5816, %v5946
    %v5952 = vmul.f32 %v5819, %v5946
    %v5953 = vmul.f32 %v5822, %v5946
    %v5954 = vmul.f32 %v5825, %v5946
    %v5955 = vmul.f32 %v5828, %v5946
    %v5956 = vmul.f32 %v5831, %v5946
    %v5957 = vmul.f32 %v5834, %v5946
    %v5958 = vmul.f32 %v5837, %v5946
    %v5959 = vmul.f32 %v5840, %v5946
    %v5960 = vmul.f32 %v5843, %v5946
    %v5961 = vmul.f32 %v5846, %v5946
    %v5962 = vmul.f32 %v5849, %v5946
    %v5963 = vmul.f32 %v5852, %v5946
    %v5964 = vmul.f32 %v5855, %v5946
    %v5965 = vmul.f32 %v5858, %v5946
    %v5966 = vmul.f32 %v5861, %v5946
    %v5967 = vmul.f32 %v5864, %v5946
    %v5968 = vmul.f32 %v5867, %v5946
    %v5969 = vmul.f32 %v5870, %v5946
    %v5970 = vmul.f32 %v5873, %v5946
    %v5971 = vmul.f32 %v5876, %v5946
    %v5972 = vmul.f32 %v5879, %v5946
    %v5973 = vmul.f32 %v5882, %v5946
    %v5974 = vmul.f32 %v5885, %v5946
    %v5975 = vmul.f32 %v5888, %v5946
    %v5976 = vmul.f32 %v5891, %v5946
    %v5977 = vmul.f32 %v5894, %v5946
    %v5978 = vmul.f32 %v5897, %v5946
    %v5979 = vmul.f32 %v5900, %v5946
    %v5980 = vmul.f32 %v5903, %v5946
    %v5981 = vmul.f32 %v5906, %v5946
    %v5982 = vmul.f32 %v5909, %v5946
    %v5983 = vmul.f32 %v5912, %v5946
    %v5984 = vmul.f32 %v5915, %v5946
    %v5985 = vmul.f32 %v5918, %v5946
    %v5986 = vmul.f32 %v5921, %v5946
    %v5987 = vmul.f32 %v5924, %v5946
    %v5988 = vmul.f32 %v5927, %v5946
    %v5989 = vmul.f32 %v5930, %v5946
    %v5990 = vmul.f32 %v5933, %v5946
    %v5991 = vmul.f32 %v5936, %v5946
    %v5992 = vmul.f32 %v5939, %v5946
    %v5993 = vmul.f32 %v5942, %v5946
    %v5994 = vmul.f32 %v5945, %v5946
    %v5995 = vsub.f32 %v5611, %v5947
    %v5996 = vsub.f32 %v5614, %v5948
    %v5997 = vsub.f32 %v5619, %v5949
    %v5998 = vsub.f32 %v5622, %v5950
    %v5999 = vsub.f32 %v5627, %v5951
    %v6000 = vsub.f32 %v5630, %v5952
    %v6001 = vsub.f32 %v5635, %v5953
    %v6002 = vsub.f32 %v5638, %v5954
    %v6003 = vsub.f32 %v5643, %v5955
    %v6004 = vsub.f32 %v5646, %v5956
    %v6005 = vsub.f32 %v5651, %v5957
    %v6006 = vsub.f32 %v5654, %v5958
    %v6007 = vsub.f32 %v5659, %v5959
    %v6008 = vsub.f32 %v5662, %v5960
    %v6009 = vsub.f32 %v5667, %v5961
    %v6010 = vsub.f32 %v5670, %v5962
    %v6011 = vsub.f32 %v5675, %v5963
    %v6012 = vsub.f32 %v5678, %v5964
    %v6013 = vsub.f32 %v5683, %v5965
    %v6014 = vsub.f32 %v5686, %v5966
    %v6015 = vsub.f32 %v5691, %v5967
    %v6016 = vsub.f32 %v5694, %v5968
    %v6017 = vsub.f32 %v5699, %v5969
    %v6018 = vsub.f32 %v5702, %v5970
    %v6019 = vsub.f32 %v5707, %v5971
    %v6020 = vsub.f32 %v5710, %v5972
    %v6021 = vsub.f32 %v5715, %v5973
    %v6022 = vsub.f32 %v5718, %v5974
    %v6023 = vsub.f32 %v5723, %v5975
    %v6024 = vsub.f32 %v5726, %v5976
    %v6025 = vsub.f32 %v5731, %v5977
    %v6026 = vsub.f32 %v5734, %v5978
    %v6027 = vsub.f32 %v5739, %v5979
    %v6028 = vsub.f32 %v5742, %v5980
    %v6029 = vsub.f32 %v5747, %v5981
    %v6030 = vsub.f32 %v5750, %v5982
    %v6031 = vsub.f32 %v5755, %v5983
    %v6032 = vsub.f32 %v5758, %v5984
    %v6033 = vsub.f32 %v5763, %v5985
    %v6034 = vsub.f32 %v5766, %v5986
    %v6035 = vsub.f32 %v5771, %v5987
    %v6036 = vsub.f32 %v5774, %v5988
    %v6037 = vsub.f32 %v5779, %v5989
    %v6038 = vsub.f32 %v5782, %v5990
    %v6039 = vsub.f32 %v5787, %v5991
    %v6040 = vsub.f32 %v5790, %v5992
    %v6041 = vsub.f32 %v5795, %v5993
    %v6042 = vsub.f32 %v5798, %v5994
    %v6043 = vmul.f32 %v5995, %v5995
    %v6044 = vmul.f32 %v5996, %v5996
    %v6045 = vmul.f32 %v5997, %v5997
    %v6046 = vmul.f32 %v5998, %v5998
    %v6047 = vmul.f32 %v5999, %v5999
    %v6048 = vmul.f32 %v6000, %v6000
    %v6049 = vmul.f32 %v6001, %v6001
    %v6050 = vmul.f32 %v6002, %v6002
    %v6051 = vmul.f32 %v6003, %v6003
    %v6052 = vmul.f32 %v6004, %v6004
    %v6053 = vmul.f32 %v6005, %v6005
    %v6054 = vmul.f32 %v6006, %v6006
    %v6055 = vmul.f32 %v6007, %v6007
    %v6056 = vmul.f32 %v6008, %v6008
    %v6057 = vmul.f32 %v6009, %v6009
    %v6058 = vmul.f32 %v6010, %v6010
    %v6059 = vmul.f32 %v6011, %v6011
    %v6060 = vmul.f32 %v6012, %v6012
    %v6061 = vmul.f32 %v6013, %v6013
    %v6062 = vmul.f32 %v6014, %v6014
    %v6063 = vmul.f32 %v6015, %v6015
    %v6064 = vmul.f32 %v6016, %v6016
    %v6065 = vmul.f32 %v6017, %v6017
    %v6066 = vmul.f32 %v6018, %v6018
    %v6067 = vmul.f32 %v6019, %v6019
    %v6068 = vmul.f32 %v6020, %v6020
    %v6069 = vmul.f32 %v6021, %v6021
    %v6070 = vmul.f32 %v6022, %v6022
    %v6071 = vmul.f32 %v6023, %v6023
    %v6072 = vmul.f32 %v6024, %v6024
    %v6073 = vmul.f32 %v6025, %v6025
    %v6074 = vmul.f32 %v6026, %v6026
    %v6075 = vmul.f32 %v6027, %v6027
    %v6076 = vmul.f32 %v6028, %v6028
    %v6077 = vmul.f32 %v6029, %v6029
    %v6078 = vmul.f32 %v6030, %v6030
    %v6079 = vmul.f32 %v6031, %v6031
    %v6080 = vmul.f32 %v6032, %v6032
    %v6081 = vmul.f32 %v6033, %v6033
    %v6082 = vmul.f32 %v6034, %v6034
    %v6083 = vmul.f32 %v6035, %v6035
    %v6084 = vmul.f32 %v6036, %v6036
    %v6085 = vmul.f32 %v6037, %v6037
    %v6086 = vmul.f32 %v6038, %v6038
    %v6087 = vmul.f32 %v6039, %v6039
    %v6088 = vmul.f32 %v6040, %v6040
    %v6089 = vmul.f32 %v6041, %v6041
    %v6090 = vmul.f32 %v6042, %v6042
    %v6091 = vsel %vm5801, %v6043, 0.0
    %6092 = vadd.xlane.f32.xlu0 %v6091
    %v6093 = vpop.xlane.xlu0 %6092
    %v6094 = vsel %vm5801, %v6044, 0.0
    %6095 = vadd.xlane.f32.xlu0 %v6094
    %v6096 = vpop.xlane.xlu0 %6095
    %v6097 = vsel %vm5801, %v6045, 0.0
    %6098 = vadd.xlane.f32.xlu0 %v6097
    %v6099 = vpop.xlane.xlu0 %6098
    %v6100 = vsel %vm5801, %v6046, 0.0
    %6101 = vadd.xlane.f32.xlu0 %v6100
    %v6102 = vpop.xlane.xlu0 %6101
    %v6103 = vsel %vm5801, %v6047, 0.0
    %6104 = vadd.xlane.f32.xlu0 %v6103
    %v6105 = vpop.xlane.xlu0 %6104
    %v6106 = vsel %vm5801, %v6048, 0.0
    %6107 = vadd.xlane.f32.xlu0 %v6106
    %v6108 = vpop.xlane.xlu0 %6107
    %v6109 = vsel %vm5801, %v6049, 0.0
    %6110 = vadd.xlane.f32.xlu0 %v6109
    %v6111 = vpop.xlane.xlu0 %6110
    %v6112 = vsel %vm5801, %v6050, 0.0
    %6113 = vadd.xlane.f32.xlu0 %v6112
    %v6114 = vpop.xlane.xlu0 %6113
    %v6115 = vsel %vm5801, %v6051, 0.0
    %6116 = vadd.xlane.f32.xlu0 %v6115
    %v6117 = vpop.xlane.xlu0 %6116
    %v6118 = vsel %vm5801, %v6052, 0.0
    %6119 = vadd.xlane.f32.xlu0 %v6118
    %v6120 = vpop.xlane.xlu0 %6119
    %v6121 = vsel %vm5801, %v6053, 0.0
    %6122 = vadd.xlane.f32.xlu0 %v6121
    %v6123 = vpop.xlane.xlu0 %6122
    %v6124 = vsel %vm5801, %v6054, 0.0
    %6125 = vadd.xlane.f32.xlu0 %v6124
    %v6126 = vpop.xlane.xlu0 %6125
    %v6127 = vsel %vm5801, %v6055, 0.0
    %6128 = vadd.xlane.f32.xlu0 %v6127
    %v6129 = vpop.xlane.xlu0 %6128
    %v6130 = vsel %vm5801, %v6056, 0.0
    %6131 = vadd.xlane.f32.xlu0 %v6130
    %v6132 = vpop.xlane.xlu0 %6131
    %v6133 = vsel %vm5801, %v6057, 0.0
    %6134 = vadd.xlane.f32.xlu0 %v6133
    %v6135 = vpop.xlane.xlu0 %6134
    %v6136 = vsel %vm5801, %v6058, 0.0
    %6137 = vadd.xlane.f32.xlu0 %v6136
    %v6138 = vpop.xlane.xlu0 %6137
    %v6139 = vsel %vm5801, %v6059, 0.0
    %6140 = vadd.xlane.f32.xlu0 %v6139
    %v6141 = vpop.xlane.xlu0 %6140
    %v6142 = vsel %vm5801, %v6060, 0.0
    %6143 = vadd.xlane.f32.xlu0 %v6142
    %v6144 = vpop.xlane.xlu0 %6143
    %v6145 = vsel %vm5801, %v6061, 0.0
    %6146 = vadd.xlane.f32.xlu0 %v6145
    %v6147 = vpop.xlane.xlu0 %6146
    %v6148 = vsel %vm5801, %v6062, 0.0
    %6149 = vadd.xlane.f32.xlu0 %v6148
    %v6150 = vpop.xlane.xlu0 %6149
    %v6151 = vsel %vm5801, %v6063, 0.0
    %6152 = vadd.xlane.f32.xlu0 %v6151
    %v6153 = vpop.xlane.xlu0 %6152
    %v6154 = vsel %vm5801, %v6064, 0.0
    %6155 = vadd.xlane.f32.xlu0 %v6154
    %v6156 = vpop.xlane.xlu0 %6155
    %v6157 = vsel %vm5801, %v6065, 0.0
    %6158 = vadd.xlane.f32.xlu0 %v6157
    %v6159 = vpop.xlane.xlu0 %6158
    %v6160 = vsel %vm5801, %v6066, 0.0
    %6161 = vadd.xlane.f32.xlu0 %v6160
    %v6162 = vpop.xlane.xlu0 %6161
    %v6163 = vsel %vm5801, %v6067, 0.0
    %6164 = vadd.xlane.f32.xlu0 %v6163
    %v6165 = vpop.xlane.xlu0 %6164
    %v6166 = vsel %vm5801, %v6068, 0.0
    %6167 = vadd.xlane.f32.xlu0 %v6166
    %v6168 = vpop.xlane.xlu0 %6167
    %v6169 = vsel %vm5801, %v6069, 0.0
    %6170 = vadd.xlane.f32.xlu0 %v6169
    %v6171 = vpop.xlane.xlu0 %6170
    %v6172 = vsel %vm5801, %v6070, 0.0
    %6173 = vadd.xlane.f32.xlu0 %v6172
    %v6174 = vpop.xlane.xlu0 %6173
    %v6175 = vsel %vm5801, %v6071, 0.0
    %6176 = vadd.xlane.f32.xlu0 %v6175
    %v6177 = vpop.xlane.xlu0 %6176
    %v6178 = vsel %vm5801, %v6072, 0.0
    %6179 = vadd.xlane.f32.xlu0 %v6178
    %v6180 = vpop.xlane.xlu0 %6179
    %v6181 = vsel %vm5801, %v6073, 0.0
    %6182 = vadd.xlane.f32.xlu0 %v6181
    %v6183 = vpop.xlane.xlu0 %6182
    %v6184 = vsel %vm5801, %v6074, 0.0
    %6185 = vadd.xlane.f32.xlu0 %v6184
    %v6186 = vpop.xlane.xlu0 %6185
    %v6187 = vsel %vm5801, %v6075, 0.0
    %6188 = vadd.xlane.f32.xlu0 %v6187
    %v6189 = vpop.xlane.xlu0 %6188
    %v6190 = vsel %vm5801, %v6076, 0.0
    %6191 = vadd.xlane.f32.xlu0 %v6190
    %v6192 = vpop.xlane.xlu0 %6191
    %v6193 = vsel %vm5801, %v6077, 0.0
    %6194 = vadd.xlane.f32.xlu0 %v6193
    %v6195 = vpop.xlane.xlu0 %6194
    %v6196 = vsel %vm5801, %v6078, 0.0
    %6197 = vadd.xlane.f32.xlu0 %v6196
    %v6198 = vpop.xlane.xlu0 %6197
    %v6199 = vsel %vm5801, %v6079, 0.0
    %6200 = vadd.xlane.f32.xlu0 %v6199
    %v6201 = vpop.xlane.xlu0 %6200
    %v6202 = vsel %vm5801, %v6080, 0.0
    %6203 = vadd.xlane.f32.xlu0 %v6202
    %v6204 = vpop.xlane.xlu0 %6203
    %v6205 = vsel %vm5801, %v6081, 0.0
    %6206 = vadd.xlane.f32.xlu0 %v6205
    %v6207 = vpop.xlane.xlu0 %6206
    %v6208 = vsel %vm5801, %v6082, 0.0
    %6209 = vadd.xlane.f32.xlu0 %v6208
    %v6210 = vpop.xlane.xlu0 %6209
    %v6211 = vsel %vm5801, %v6083, 0.0
    %6212 = vadd.xlane.f32.xlu0 %v6211
    %v6213 = vpop.xlane.xlu0 %6212
    %v6214 = vsel %vm5801, %v6084, 0.0
    %6215 = vadd.xlane.f32.xlu0 %v6214
    %v6216 = vpop.xlane.xlu0 %6215
    %v6217 = vsel %vm5801, %v6085, 0.0
    %6218 = vadd.xlane.f32.xlu0 %v6217
    %v6219 = vpop.xlane.xlu0 %6218
    %v6220 = vsel %vm5801, %v6086, 0.0
    %6221 = vadd.xlane.f32.xlu0 %v6220
    %v6222 = vpop.xlane.xlu0 %6221
    %v6223 = vsel %vm5801, %v6087, 0.0
    %6224 = vadd.xlane.f32.xlu0 %v6223
    %v6225 = vpop.xlane.xlu0 %6224
    %v6226 = vsel %vm5801, %v6088, 0.0
    %6227 = vadd.xlane.f32.xlu0 %v6226
    %v6228 = vpop.xlane.xlu0 %6227
    %v6229 = vsel %vm5801, %v6089, 0.0
    %6230 = vadd.xlane.f32.xlu0 %v6229
    %v6231 = vpop.xlane.xlu0 %6230
    %v6232 = vsel %vm5801, %v6090, 0.0
    %6233 = vadd.xlane.f32.xlu0 %v6232
    %v6234 = vpop.xlane.xlu0 %6233
    %v6235 = vmul.f32 %v6093, %v5946
    %v6236 = vmul.f32 %v6096, %v5946
    %v6237 = vmul.f32 %v6099, %v5946
    %v6238 = vmul.f32 %v6102, %v5946
    %v6239 = vmul.f32 %v6105, %v5946
    %v6240 = vmul.f32 %v6108, %v5946
    %v6241 = vmul.f32 %v6111, %v5946
    %v6242 = vmul.f32 %v6114, %v5946
    %v6243 = vmul.f32 %v6117, %v5946
    %v6244 = vmul.f32 %v6120, %v5946
    %v6245 = vmul.f32 %v6123, %v5946
    %v6246 = vmul.f32 %v6126, %v5946
    %v6247 = vmul.f32 %v6129, %v5946
    %v6248 = vmul.f32 %v6132, %v5946
    %v6249 = vmul.f32 %v6135, %v5946
    %v6250 = vmul.f32 %v6138, %v5946
    %v6251 = vmul.f32 %v6141, %v5946
    %v6252 = vmul.f32 %v6144, %v5946
    %v6253 = vmul.f32 %v6147, %v5946
    %v6254 = vmul.f32 %v6150, %v5946
    %v6255 = vmul.f32 %v6153, %v5946
    %v6256 = vmul.f32 %v6156, %v5946
    %v6257 = vmul.f32 %v6159, %v5946
    %v6258 = vmul.f32 %v6162, %v5946
    %v6259 = vmul.f32 %v6165, %v5946
    %v6260 = vmul.f32 %v6168, %v5946
    %v6261 = vmul.f32 %v6171, %v5946
    %v6262 = vmul.f32 %v6174, %v5946
    %v6263 = vmul.f32 %v6177, %v5946
    %v6264 = vmul.f32 %v6180, %v5946
    %v6265 = vmul.f32 %v6183, %v5946
    %v6266 = vmul.f32 %v6186, %v5946
    %v6267 = vmul.f32 %v6189, %v5946
    %v6268 = vmul.f32 %v6192, %v5946
    %v6269 = vmul.f32 %v6195, %v5946
    %v6270 = vmul.f32 %v6198, %v5946
    %v6271 = vmul.f32 %v6201, %v5946
    %v6272 = vmul.f32 %v6204, %v5946
    %v6273 = vmul.f32 %v6207, %v5946
    %v6274 = vmul.f32 %v6210, %v5946
    %v6275 = vmul.f32 %v6213, %v5946
    %v6276 = vmul.f32 %v6216, %v5946
    %v6277 = vmul.f32 %v6219, %v5946
    %v6278 = vmul.f32 %v6222, %v5946
    %v6279 = vmul.f32 %v6225, %v5946
    %v6280 = vmul.f32 %v6228, %v5946
    %v6281 = vmul.f32 %v6231, %v5946
    %v6282 = vmul.f32 %v6234, %v5946
    %v6283 = vadd.f32 %v6235, 0.001
    %v6284 = vadd.f32 %v6236, 0.001
    %v6285 = vadd.f32 %v6237, 0.001
    %v6286 = vadd.f32 %v6238, 0.001
    %v6287 = vadd.f32 %v6239, 0.001
    %v6288 = vadd.f32 %v6240, 0.001
    %v6289 = vadd.f32 %v6241, 0.001
    %v6290 = vadd.f32 %v6242, 0.001
    %v6291 = vadd.f32 %v6243, 0.001
    %v6292 = vadd.f32 %v6244, 0.001
    %v6293 = vadd.f32 %v6245, 0.001
    %v6294 = vadd.f32 %v6246, 0.001
    %v6295 = vadd.f32 %v6247, 0.001
    %v6296 = vadd.f32 %v6248, 0.001
    %v6297 = vadd.f32 %v6249, 0.001
    %v6298 = vadd.f32 %v6250, 0.001
    %v6299 = vadd.f32 %v6251, 0.001
    %v6300 = vadd.f32 %v6252, 0.001
    %v6301 = vadd.f32 %v6253, 0.001
    %v6302 = vadd.f32 %v6254, 0.001
    %v6303 = vadd.f32 %v6255, 0.001
    %v6304 = vadd.f32 %v6256, 0.001
    %v6305 = vadd.f32 %v6257, 0.001
    %v6306 = vadd.f32 %v6258, 0.001
    %v6307 = vadd.f32 %v6259, 0.001
    %v6308 = vadd.f32 %v6260, 0.001
    %v6309 = vadd.f32 %v6261, 0.001
    %v6310 = vadd.f32 %v6262, 0.001
    %v6311 = vadd.f32 %v6263, 0.001
    %v6312 = vadd.f32 %v6264, 0.001
    %v6313 = vadd.f32 %v6265, 0.001
    %v6314 = vadd.f32 %v6266, 0.001
    %v6315 = vadd.f32 %v6267, 0.001
    %v6316 = vadd.f32 %v6268, 0.001
    %v6317 = vadd.f32 %v6269, 0.001
    %v6318 = vadd.f32 %v6270, 0.001
    %v6319 = vadd.f32 %v6271, 0.001
    %v6320 = vadd.f32 %v6272, 0.001
    %v6321 = vadd.f32 %v6273, 0.001
    %v6322 = vadd.f32 %v6274, 0.001
    %v6323 = vadd.f32 %v6275, 0.001
    %v6324 = vadd.f32 %v6276, 0.001
    %v6325 = vadd.f32 %v6277, 0.001
    %v6326 = vadd.f32 %v6278, 0.001
    %v6327 = vadd.f32 %v6279, 0.001
    %v6328 = vadd.f32 %v6280, 0.001
    %v6329 = vadd.f32 %v6281, 0.001
    %v6330 = vadd.f32 %v6282, 0.001
    %v6331 = vrsqrt.pop %v6283
    %v6332 = vrsqrt.pop %v6284
    %v6333 = vrsqrt.pop %v6285
    %v6334 = vrsqrt.pop %v6286
    %v6335 = vrsqrt.pop %v6287
    %v6336 = vrsqrt.pop %v6288
    %v6337 = vrsqrt.pop %v6289
    %v6338 = vrsqrt.pop %v6290
    %v6339 = vrsqrt.pop %v6291
    %v6340 = vrsqrt.pop %v6292
    %v6341 = vrsqrt.pop %v6293
    %v6342 = vrsqrt.pop %v6294
    %v6343 = vrsqrt.pop %v6295
    %v6344 = vrsqrt.pop %v6296
    %v6345 = vrsqrt.pop %v6297
    %v6346 = vrsqrt.pop %v6298
    %v6347 = vrsqrt.pop %v6299
    %v6348 = vrsqrt.pop %v6300
    %v6349 = vrsqrt.pop %v6301
    %v6350 = vrsqrt.pop %v6302
    %v6351 = vrsqrt.pop %v6303
    %v6352 = vrsqrt.pop %v6304
    %v6353 = vrsqrt.pop %v6305
    %v6354 = vrsqrt.pop %v6306
    %v6355 = vrsqrt.pop %v6307
    %v6356 = vrsqrt.pop %v6308
    %v6357 = vrsqrt.pop %v6309
    %v6358 = vrsqrt.pop %v6310
    %v6359 = vrsqrt.pop %v6311
    %v6360 = vrsqrt.pop %v6312
    %v6361 = vrsqrt.pop %v6313
    %v6362 = vrsqrt.pop %v6314
    %v6363 = vrsqrt.pop %v6315
    %v6364 = vrsqrt.pop %v6316
    %v6365 = vrsqrt.pop %v6317
    %v6366 = vrsqrt.pop %v6318
    %v6367 = vrsqrt.pop %v6319
    %v6368 = vrsqrt.pop %v6320
    %v6369 = vrsqrt.pop %v6321
    %v6370 = vrsqrt.pop %v6322
    %v6371 = vrsqrt.pop %v6323
    %v6372 = vrsqrt.pop %v6324
    %v6373 = vrsqrt.pop %v6325
    %v6374 = vrsqrt.pop %v6326
    %v6375 = vrsqrt.pop %v6327
    %v6376 = vrsqrt.pop %v6328
    %v6377 = vrsqrt.pop %v6329
    %v6378 = vrsqrt.pop %v6330
    %v6379 = vmul.f32 %v5995, %v6331
    %v6380 = vmul.f32 %v5996, %v6332
    %v6381 = vmul.f32 %v5997, %v6333
    %v6382 = vmul.f32 %v5998, %v6334
    %v6383 = vmul.f32 %v5999, %v6335
    %v6384 = vmul.f32 %v6000, %v6336
    %v6385 = vmul.f32 %v6001, %v6337
    %v6386 = vmul.f32 %v6002, %v6338
    %v6387 = vmul.f32 %v6003, %v6339
    %v6388 = vmul.f32 %v6004, %v6340
    %v6389 = vmul.f32 %v6005, %v6341
    %v6390 = vmul.f32 %v6006, %v6342
    %v6391 = vmul.f32 %v6007, %v6343
    %v6392 = vmul.f32 %v6008, %v6344
    %v6393 = vmul.f32 %v6009, %v6345
    %v6394 = vmul.f32 %v6010, %v6346
    %v6395 = vmul.f32 %v6011, %v6347
    %v6396 = vmul.f32 %v6012, %v6348
    %v6397 = vmul.f32 %v6013, %v6349
    %v6398 = vmul.f32 %v6014, %v6350
    %v6399 = vmul.f32 %v6015, %v6351
    %v6400 = vmul.f32 %v6016, %v6352
    %v6401 = vmul.f32 %v6017, %v6353
    %v6402 = vmul.f32 %v6018, %v6354
    %v6403 = vmul.f32 %v6019, %v6355
    %v6404 = vmul.f32 %v6020, %v6356
    %v6405 = vmul.f32 %v6021, %v6357
    %v6406 = vmul.f32 %v6022, %v6358
    %v6407 = vmul.f32 %v6023, %v6359
    %v6408 = vmul.f32 %v6024, %v6360
    %v6409 = vmul.f32 %v6025, %v6361
    %v6410 = vmul.f32 %v6026, %v6362
    %v6411 = vmul.f32 %v6027, %v6363
    %v6412 = vmul.f32 %v6028, %v6364
    %v6413 = vmul.f32 %v6029, %v6365
    %v6414 = vmul.f32 %v6030, %v6366
    %v6415 = vmul.f32 %v6031, %v6367
    %v6416 = vmul.f32 %v6032, %v6368
    %v6417 = vmul.f32 %v6033, %v6369
    %v6418 = vmul.f32 %v6034, %v6370
    %v6419 = vmul.f32 %v6035, %v6371
    %v6420 = vmul.f32 %v6036, %v6372
    %v6421 = vmul.f32 %v6037, %v6373
    %v6422 = vmul.f32 %v6038, %v6374
    %v6423 = vmul.f32 %v6039, %v6375
    %v6424 = vmul.f32 %v6040, %v6376
    %v6425 = vmul.f32 %v6041, %v6377
    %v6426 = vmul.f32 %v6042, %v6378
    %v6427 = vld [vmem:[%s2] sm:$0xff]
    %v6428 = vld [vmem:[%s2 + $0x8] sm:$0xff]
    %v6429 = vld [vmem:[%s2 + $0x10] sm:$0xff]
    %v6430 = vld [vmem:[%s2 + $0x18] sm:$0xff]
    %v6431 = vld [vmem:[%s2 + $0x20] sm:$0xff]
    %v6432 = vld [vmem:[%s2 + $0x28] sm:$0xff]
    %v6433 = vld [vmem:[%s2 + $0x30] sm:$0xff]
    %v6434 = vld [vmem:[%s2 + $0x38] sm:$0xff]
    %v6435 = vld [vmem:[%s2 + $0x40] sm:$0xff]
    %v6436 = vld [vmem:[%s2 + $0x48] sm:$0xff]
    %v6437 = vld [vmem:[%s2 + $0x50] sm:$0xff]
    %v6438 = vld [vmem:[%s2 + $0x58] sm:$0xff]
    %v6439 = vld [vmem:[%s2 + $0x60] sm:$0xff]
    %v6440 = vld [vmem:[%s2 + $0x68] sm:$0xff]
    %v6441 = vld [vmem:[%s2 + $0x70] sm:$0xff]
    %v6442 = vld [vmem:[%s2 + $0x78] sm:$0xff]
    %v6443 = vld [vmem:[%s2 + $0x80] sm:$0xff]
    %v6444 = vld [vmem:[%s2 + $0x88] sm:$0xff]
    %v6445 = vld [vmem:[%s2 + $0x90] sm:$0xff]
    %v6446 = vld [vmem:[%s2 + $0x98] sm:$0xff]
    %v6447 = vld [vmem:[%s2 + $0xa0] sm:$0xff]
    %v6448 = vld [vmem:[%s2 + $0xa8] sm:$0xff]
    %v6449 = vld [vmem:[%s2 + $0xb0] sm:$0xff]
    %v6450 = vld [vmem:[%s2 + $0xb8] sm:$0xff]
    %v6451 = vld [vmem:[%s2 + $0xc0] sm:$0xff]
    %v6452 = vld [vmem:[%s2 + $0xc8] sm:$0xff]
    %v6453 = vld [vmem:[%s2 + $0xd0] sm:$0xff]
    %v6454 = vld [vmem:[%s2 + $0xd8] sm:$0xff]
    %v6455 = vld [vmem:[%s2 + $0xe0] sm:$0xff]
    %v6456 = vld [vmem:[%s2 + $0xe8] sm:$0xff]
    %v6457 = vld [vmem:[%s2 + $0xf0] sm:$0xff]
    %v6458 = vld [vmem:[%s2 + $0xf8] sm:$0xff]
    %v6459 = vld [vmem:[%s2 + $0x100] sm:$0xff]
    %v6460 = vld [vmem:[%s2 + $0x108] sm:$0xff]
    %v6461 = vld [vmem:[%s2 + $0x110] sm:$0xff]
    %v6462 = vld [vmem:[%s2 + $0x118] sm:$0xff]
    %v6463 = vld [vmem:[%s2 + $0x120] sm:$0xff]
    %v6464 = vld [vmem:[%s2 + $0x128] sm:$0xff]
    %v6465 = vld [vmem:[%s2 + $0x130] sm:$0xff]
    %v6466 = vld [vmem:[%s2 + $0x138] sm:$0xff]
    %v6467 = vld [vmem:[%s2 + $0x140] sm:$0xff]
    %v6468 = vld [vmem:[%s2 + $0x148] sm:$0xff]
    %v6469 = vld [vmem:[%s2 + $0x150] sm:$0xff]
    %v6470 = vld [vmem:[%s2 + $0x158] sm:$0xff]
    %v6471 = vld [vmem:[%s2 + $0x160] sm:$0xff]
    %v6472 = vld [vmem:[%s2 + $0x168] sm:$0xff]
    %v6473 = vld [vmem:[%s2 + $0x170] sm:$0xff]
    %v6474 = vld [vmem:[%s2 + $0x178] sm:$0xff]
    %6476 = vset.pattern.permute.xlu0 0
    %6477 = vperm.xlu0 %6476, %v6427
    %v6478 = vpop.permute.xlu0 %6477
    %6481 = vset.pattern.permute.xlu0 0
    %6482 = vperm.xlu0 %6481, %v6428
    %v6483 = vpop.permute.xlu0 %6482
    %6486 = vset.pattern.permute.xlu0 0
    %6487 = vperm.xlu0 %6486, %v6429
    %v6488 = vpop.permute.xlu0 %6487
    %6491 = vset.pattern.permute.xlu0 0
    %6492 = vperm.xlu0 %6491, %v6430
    %v6493 = vpop.permute.xlu0 %6492
    %6496 = vset.pattern.permute.xlu0 0
    %6497 = vperm.xlu0 %6496, %v6431
    %v6498 = vpop.permute.xlu0 %6497
    %6501 = vset.pattern.permute.xlu0 0
    %6502 = vperm.xlu0 %6501, %v6432
    %v6503 = vpop.permute.xlu0 %6502
    %6506 = vset.pattern.permute.xlu0 0
    %6507 = vperm.xlu0 %6506, %v6433
    %v6508 = vpop.permute.xlu0 %6507
    %6511 = vset.pattern.permute.xlu0 0
    %6512 = vperm.xlu0 %6511, %v6434
    %v6513 = vpop.permute.xlu0 %6512
    %6516 = vset.pattern.permute.xlu0 0
    %6517 = vperm.xlu0 %6516, %v6435
    %v6518 = vpop.permute.xlu0 %6517
    %6521 = vset.pattern.permute.xlu0 0
    %6522 = vperm.xlu0 %6521, %v6436
    %v6523 = vpop.permute.xlu0 %6522
    %6526 = vset.pattern.permute.xlu0 0
    %6527 = vperm.xlu0 %6526, %v6437
    %v6528 = vpop.permute.xlu0 %6527
    %6531 = vset.pattern.permute.xlu0 0
    %6532 = vperm.xlu0 %6531, %v6438
    %v6533 = vpop.permute.xlu0 %6532
    %6536 = vset.pattern.permute.xlu0 0
    %6537 = vperm.xlu0 %6536, %v6439
    %v6538 = vpop.permute.xlu0 %6537
    %6541 = vset.pattern.permute.xlu0 0
    %6542 = vperm.xlu0 %6541, %v6440
    %v6543 = vpop.permute.xlu0 %6542
    %6546 = vset.pattern.permute.xlu0 0
    %6547 = vperm.xlu0 %6546, %v6441
    %v6548 = vpop.permute.xlu0 %6547
    %6551 = vset.pattern.permute.xlu0 0
    %6552 = vperm.xlu0 %6551, %v6442
    %v6553 = vpop.permute.xlu0 %6552
    %6556 = vset.pattern.permute.xlu0 0
    %6557 = vperm.xlu0 %6556, %v6443
    %v6558 = vpop.permute.xlu0 %6557
    %6561 = vset.pattern.permute.xlu0 0
    %6562 = vperm.xlu0 %6561, %v6444
    %v6563 = vpop.permute.xlu0 %6562
    %6566 = vset.pattern.permute.xlu0 0
    %6567 = vperm.xlu0 %6566, %v6445
    %v6568 = vpop.permute.xlu0 %6567
    %6571 = vset.pattern.permute.xlu0 0
    %6572 = vperm.xlu0 %6571, %v6446
    %v6573 = vpop.permute.xlu0 %6572
    %6576 = vset.pattern.permute.xlu0 0
    %6577 = vperm.xlu0 %6576, %v6447
    %v6578 = vpop.permute.xlu0 %6577
    %6581 = vset.pattern.permute.xlu0 0
    %6582 = vperm.xlu0 %6581, %v6448
    %v6583 = vpop.permute.xlu0 %6582
    %6586 = vset.pattern.permute.xlu0 0
    %6587 = vperm.xlu0 %6586, %v6449
    %v6588 = vpop.permute.xlu0 %6587
    %6591 = vset.pattern.permute.xlu0 0
    %6592 = vperm.xlu0 %6591, %v6450
    %v6593 = vpop.permute.xlu0 %6592
    %6596 = vset.pattern.permute.xlu0 0
    %6597 = vperm.xlu0 %6596, %v6451
    %v6598 = vpop.permute.xlu0 %6597
    %6601 = vset.pattern.permute.xlu0 0
    %6602 = vperm.xlu0 %6601, %v6452
    %v6603 = vpop.permute.xlu0 %6602
    %6606 = vset.pattern.permute.xlu0 0
    %6607 = vperm.xlu0 %6606, %v6453
    %v6608 = vpop.permute.xlu0 %6607
    %6611 = vset.pattern.permute.xlu0 0
    %6612 = vperm.xlu0 %6611, %v6454
    %v6613 = vpop.permute.xlu0 %6612
    %6616 = vset.pattern.permute.xlu0 0
    %6617 = vperm.xlu0 %6616, %v6455
    %v6618 = vpop.permute.xlu0 %6617
    %6621 = vset.pattern.permute.xlu0 0
    %6622 = vperm.xlu0 %6621, %v6456
    %v6623 = vpop.permute.xlu0 %6622
    %6626 = vset.pattern.permute.xlu0 0
    %6627 = vperm.xlu0 %6626, %v6457
    %v6628 = vpop.permute.xlu0 %6627
    %6631 = vset.pattern.permute.xlu0 0
    %6632 = vperm.xlu0 %6631, %v6458
    %v6633 = vpop.permute.xlu0 %6632
    %6636 = vset.pattern.permute.xlu0 0
    %6637 = vperm.xlu0 %6636, %v6459
    %v6638 = vpop.permute.xlu0 %6637
    %6641 = vset.pattern.permute.xlu0 0
    %6642 = vperm.xlu0 %6641, %v6460
    %v6643 = vpop.permute.xlu0 %6642
    %6646 = vset.pattern.permute.xlu0 0
    %6647 = vperm.xlu0 %6646, %v6461
    %v6648 = vpop.permute.xlu0 %6647
    %6651 = vset.pattern.permute.xlu0 0
    %6652 = vperm.xlu0 %6651, %v6462
    %v6653 = vpop.permute.xlu0 %6652
    %6656 = vset.pattern.permute.xlu0 0
    %6657 = vperm.xlu0 %6656, %v6463
    %v6658 = vpop.permute.xlu0 %6657
    %6661 = vset.pattern.permute.xlu0 0
    %6662 = vperm.xlu0 %6661, %v6464
    %v6663 = vpop.permute.xlu0 %6662
    %6666 = vset.pattern.permute.xlu0 0
    %6667 = vperm.xlu0 %6666, %v6465
    %v6668 = vpop.permute.xlu0 %6667
    %6671 = vset.pattern.permute.xlu0 0
    %6672 = vperm.xlu0 %6671, %v6466
    %v6673 = vpop.permute.xlu0 %6672
    %6676 = vset.pattern.permute.xlu0 0
    %6677 = vperm.xlu0 %6676, %v6467
    %v6678 = vpop.permute.xlu0 %6677
    %6681 = vset.pattern.permute.xlu0 0
    %6682 = vperm.xlu0 %6681, %v6468
    %v6683 = vpop.permute.xlu0 %6682
    %6686 = vset.pattern.permute.xlu0 0
    %6687 = vperm.xlu0 %6686, %v6469
    %v6688 = vpop.permute.xlu0 %6687
    %6691 = vset.pattern.permute.xlu0 0
    %6692 = vperm.xlu0 %6691, %v6470
    %v6693 = vpop.permute.xlu0 %6692
    %6696 = vset.pattern.permute.xlu0 0
    %6697 = vperm.xlu0 %6696, %v6471
    %v6698 = vpop.permute.xlu0 %6697
    %6701 = vset.pattern.permute.xlu0 0
    %6702 = vperm.xlu0 %6701, %v6472
    %v6703 = vpop.permute.xlu0 %6702
    %6706 = vset.pattern.permute.xlu0 0
    %6707 = vperm.xlu0 %6706, %v6473
    %v6708 = vpop.permute.xlu0 %6707
    %6711 = vset.pattern.permute.xlu0 0
    %6712 = vperm.xlu0 %6711, %v6474
    %v6713 = vpop.permute.xlu0 %6712
    %v6715 = vmul.f32 %v6379, %v6478
    %v6716 = vmul.f32 %v6380, %v6483
    %v6717 = vmul.f32 %v6381, %v6488
    %v6718 = vmul.f32 %v6382, %v6493
    %v6719 = vmul.f32 %v6383, %v6498
    %v6720 = vmul.f32 %v6384, %v6503
    %v6721 = vmul.f32 %v6385, %v6508
    %v6722 = vmul.f32 %v6386, %v6513
    %v6723 = vmul.f32 %v6387, %v6518
    %v6724 = vmul.f32 %v6388, %v6523
    %v6725 = vmul.f32 %v6389, %v6528
    %v6726 = vmul.f32 %v6390, %v6533
    %v6727 = vmul.f32 %v6391, %v6538
    %v6728 = vmul.f32 %v6392, %v6543
    %v6729 = vmul.f32 %v6393, %v6548
    %v6730 = vmul.f32 %v6394, %v6553
    %v6731 = vmul.f32 %v6395, %v6558
    %v6732 = vmul.f32 %v6396, %v6563
    %v6733 = vmul.f32 %v6397, %v6568
    %v6734 = vmul.f32 %v6398, %v6573
    %v6735 = vmul.f32 %v6399, %v6578
    %v6736 = vmul.f32 %v6400, %v6583
    %v6737 = vmul.f32 %v6401, %v6588
    %v6738 = vmul.f32 %v6402, %v6593
    %v6739 = vmul.f32 %v6403, %v6598
    %v6740 = vmul.f32 %v6404, %v6603
    %v6741 = vmul.f32 %v6405, %v6608
    %v6742 = vmul.f32 %v6406, %v6613
    %v6743 = vmul.f32 %v6407, %v6618
    %v6744 = vmul.f32 %v6408, %v6623
    %v6745 = vmul.f32 %v6409, %v6628
    %v6746 = vmul.f32 %v6410, %v6633
    %v6747 = vmul.f32 %v6411, %v6638
    %v6748 = vmul.f32 %v6412, %v6643
    %v6749 = vmul.f32 %v6413, %v6648
    %v6750 = vmul.f32 %v6414, %v6653
    %v6751 = vmul.f32 %v6415, %v6658
    %v6752 = vmul.f32 %v6416, %v6663
    %v6753 = vmul.f32 %v6417, %v6668
    %v6754 = vmul.f32 %v6418, %v6673
    %v6755 = vmul.f32 %v6419, %v6678
    %v6756 = vmul.f32 %v6420, %v6683
    %v6757 = vmul.f32 %v6421, %v6688
    %v6758 = vmul.f32 %v6422, %v6693
    %v6759 = vmul.f32 %v6423, %v6698
    %v6760 = vmul.f32 %v6424, %v6703
    %v6761 = vmul.f32 %v6425, %v6708
    %v6762 = vmul.f32 %v6426, %v6713
    %v6763 = vld [vmem:[%s3] sm:$0xff]
    %v6764 = vld [vmem:[%s3 + $0x8] sm:$0xff]
    %v6765 = vld [vmem:[%s3 + $0x10] sm:$0xff]
    %v6766 = vld [vmem:[%s3 + $0x18] sm:$0xff]
    %v6767 = vld [vmem:[%s3 + $0x20] sm:$0xff]
    %v6768 = vld [vmem:[%s3 + $0x28] sm:$0xff]
    %v6769 = vld [vmem:[%s3 + $0x30] sm:$0xff]
    %v6770 = vld [vmem:[%s3 + $0x38] sm:$0xff]
    %v6771 = vld [vmem:[%s3 + $0x40] sm:$0xff]
    %v6772 = vld [vmem:[%s3 + $0x48] sm:$0xff]
    %v6773 = vld [vmem:[%s3 + $0x50] sm:$0xff]
    %v6774 = vld [vmem:[%s3 + $0x58] sm:$0xff]
    %v6775 = vld [vmem:[%s3 + $0x60] sm:$0xff]
    %v6776 = vld [vmem:[%s3 + $0x68] sm:$0xff]
    %v6777 = vld [vmem:[%s3 + $0x70] sm:$0xff]
    %v6778 = vld [vmem:[%s3 + $0x78] sm:$0xff]
    %v6779 = vld [vmem:[%s3 + $0x80] sm:$0xff]
    %v6780 = vld [vmem:[%s3 + $0x88] sm:$0xff]
    %v6781 = vld [vmem:[%s3 + $0x90] sm:$0xff]
    %v6782 = vld [vmem:[%s3 + $0x98] sm:$0xff]
    %v6783 = vld [vmem:[%s3 + $0xa0] sm:$0xff]
    %v6784 = vld [vmem:[%s3 + $0xa8] sm:$0xff]
    %v6785 = vld [vmem:[%s3 + $0xb0] sm:$0xff]
    %v6786 = vld [vmem:[%s3 + $0xb8] sm:$0xff]
    %v6787 = vld [vmem:[%s3 + $0xc0] sm:$0xff]
    %v6788 = vld [vmem:[%s3 + $0xc8] sm:$0xff]
    %v6789 = vld [vmem:[%s3 + $0xd0] sm:$0xff]
    %v6790 = vld [vmem:[%s3 + $0xd8] sm:$0xff]
    %v6791 = vld [vmem:[%s3 + $0xe0] sm:$0xff]
    %v6792 = vld [vmem:[%s3 + $0xe8] sm:$0xff]
    %v6793 = vld [vmem:[%s3 + $0xf0] sm:$0xff]
    %v6794 = vld [vmem:[%s3 + $0xf8] sm:$0xff]
    %v6795 = vld [vmem:[%s3 + $0x100] sm:$0xff]
    %v6796 = vld [vmem:[%s3 + $0x108] sm:$0xff]
    %v6797 = vld [vmem:[%s3 + $0x110] sm:$0xff]
    %v6798 = vld [vmem:[%s3 + $0x118] sm:$0xff]
    %v6799 = vld [vmem:[%s3 + $0x120] sm:$0xff]
    %v6800 = vld [vmem:[%s3 + $0x128] sm:$0xff]
    %v6801 = vld [vmem:[%s3 + $0x130] sm:$0xff]
    %v6802 = vld [vmem:[%s3 + $0x138] sm:$0xff]
    %v6803 = vld [vmem:[%s3 + $0x140] sm:$0xff]
    %v6804 = vld [vmem:[%s3 + $0x148] sm:$0xff]
    %v6805 = vld [vmem:[%s3 + $0x150] sm:$0xff]
    %v6806 = vld [vmem:[%s3 + $0x158] sm:$0xff]
    %v6807 = vld [vmem:[%s3 + $0x160] sm:$0xff]
    %v6808 = vld [vmem:[%s3 + $0x168] sm:$0xff]
    %v6809 = vld [vmem:[%s3 + $0x170] sm:$0xff]
    %v6810 = vld [vmem:[%s3 + $0x178] sm:$0xff]
    %6812 = vset.pattern.permute.xlu0 0
    %6813 = vperm.xlu0 %6812, %v6763
    %v6814 = vpop.permute.xlu0 %6813
    %6817 = vset.pattern.permute.xlu0 0
    %6818 = vperm.xlu0 %6817, %v6764
    %v6819 = vpop.permute.xlu0 %6818
    %6822 = vset.pattern.permute.xlu0 0
    %6823 = vperm.xlu0 %6822, %v6765
    %v6824 = vpop.permute.xlu0 %6823
    %6827 = vset.pattern.permute.xlu0 0
    %6828 = vperm.xlu0 %6827, %v6766
    %v6829 = vpop.permute.xlu0 %6828
    %6832 = vset.pattern.permute.xlu0 0
    %6833 = vperm.xlu0 %6832, %v6767
    %v6834 = vpop.permute.xlu0 %6833
    %6837 = vset.pattern.permute.xlu0 0
    %6838 = vperm.xlu0 %6837, %v6768
    %v6839 = vpop.permute.xlu0 %6838
    %6842 = vset.pattern.permute.xlu0 0
    %6843 = vperm.xlu0 %6842, %v6769
    %v6844 = vpop.permute.xlu0 %6843
    %6847 = vset.pattern.permute.xlu0 0
    %6848 = vperm.xlu0 %6847, %v6770
    %v6849 = vpop.permute.xlu0 %6848
    %6852 = vset.pattern.permute.xlu0 0
    %6853 = vperm.xlu0 %6852, %v6771
    %v6854 = vpop.permute.xlu0 %6853
    %6857 = vset.pattern.permute.xlu0 0
    %6858 = vperm.xlu0 %6857, %v6772
    %v6859 = vpop.permute.xlu0 %6858
    %6862 = vset.pattern.permute.xlu0 0
    %6863 = vperm.xlu0 %6862, %v6773
    %v6864 = vpop.permute.xlu0 %6863
    %6867 = vset.pattern.permute.xlu0 0
    %6868 = vperm.xlu0 %6867, %v6774
    %v6869 = vpop.permute.xlu0 %6868
    %6872 = vset.pattern.permute.xlu0 0
    %6873 = vperm.xlu0 %6872, %v6775
    %v6874 = vpop.permute.xlu0 %6873
    %6877 = vset.pattern.permute.xlu0 0
    %6878 = vperm.xlu0 %6877, %v6776
    %v6879 = vpop.permute.xlu0 %6878
    %6882 = vset.pattern.permute.xlu0 0
    %6883 = vperm.xlu0 %6882, %v6777
    %v6884 = vpop.permute.xlu0 %6883
    %6887 = vset.pattern.permute.xlu0 0
    %6888 = vperm.xlu0 %6887, %v6778
    %v6889 = vpop.permute.xlu0 %6888
    %6892 = vset.pattern.permute.xlu0 0
    %6893 = vperm.xlu0 %6892, %v6779
    %v6894 = vpop.permute.xlu0 %6893
    %6897 = vset.pattern.permute.xlu0 0
    %6898 = vperm.xlu0 %6897, %v6780
    %v6899 = vpop.permute.xlu0 %6898
    %6902 = vset.pattern.permute.xlu0 0
    %6903 = vperm.xlu0 %6902, %v6781
    %v6904 = vpop.permute.xlu0 %6903
    %6907 = vset.pattern.permute.xlu0 0
    %6908 = vperm.xlu0 %6907, %v6782
    %v6909 = vpop.permute.xlu0 %6908
    %6912 = vset.pattern.permute.xlu0 0
    %6913 = vperm.xlu0 %6912, %v6783
    %v6914 = vpop.permute.xlu0 %6913
    %6917 = vset.pattern.permute.xlu0 0
    %6918 = vperm.xlu0 %6917, %v6784
    %v6919 = vpop.permute.xlu0 %6918
    %6922 = vset.pattern.permute.xlu0 0
    %6923 = vperm.xlu0 %6922, %v6785
    %v6924 = vpop.permute.xlu0 %6923
    %6927 = vset.pattern.permute.xlu0 0
    %6928 = vperm.xlu0 %6927, %v6786
    %v6929 = vpop.permute.xlu0 %6928
    %6932 = vset.pattern.permute.xlu0 0
    %6933 = vperm.xlu0 %6932, %v6787
    %v6934 = vpop.permute.xlu0 %6933
    %6937 = vset.pattern.permute.xlu0 0
    %6938 = vperm.xlu0 %6937, %v6788
    %v6939 = vpop.permute.xlu0 %6938
    %6942 = vset.pattern.permute.xlu0 0
    %6943 = vperm.xlu0 %6942, %v6789
    %v6944 = vpop.permute.xlu0 %6943
    %6947 = vset.pattern.permute.xlu0 0
    %6948 = vperm.xlu0 %6947, %v6790
    %v6949 = vpop.permute.xlu0 %6948
    %6952 = vset.pattern.permute.xlu0 0
    %6953 = vperm.xlu0 %6952, %v6791
    %v6954 = vpop.permute.xlu0 %6953
    %6957 = vset.pattern.permute.xlu0 0
    %6958 = vperm.xlu0 %6957, %v6792
    %v6959 = vpop.permute.xlu0 %6958
    %6962 = vset.pattern.permute.xlu0 0
    %6963 = vperm.xlu0 %6962, %v6793
    %v6964 = vpop.permute.xlu0 %6963
    %6967 = vset.pattern.permute.xlu0 0
    %6968 = vperm.xlu0 %6967, %v6794
    %v6969 = vpop.permute.xlu0 %6968
    %6972 = vset.pattern.permute.xlu0 0
    %6973 = vperm.xlu0 %6972, %v6795
    %v6974 = vpop.permute.xlu0 %6973
    %6977 = vset.pattern.permute.xlu0 0
    %6978 = vperm.xlu0 %6977, %v6796
    %v6979 = vpop.permute.xlu0 %6978
    %6982 = vset.pattern.permute.xlu0 0
    %6983 = vperm.xlu0 %6982, %v6797
    %v6984 = vpop.permute.xlu0 %6983
    %6987 = vset.pattern.permute.xlu0 0
    %6988 = vperm.xlu0 %6987, %v6798
    %v6989 = vpop.permute.xlu0 %6988
    %6992 = vset.pattern.permute.xlu0 0
    %6993 = vperm.xlu0 %6992, %v6799
    %v6994 = vpop.permute.xlu0 %6993
    %6997 = vset.pattern.permute.xlu0 0
    %6998 = vperm.xlu0 %6997, %v6800
    %v6999 = vpop.permute.xlu0 %6998
    %7002 = vset.pattern.permute.xlu0 0
    %7003 = vperm.xlu0 %7002, %v6801
    %v7004 = vpop.permute.xlu0 %7003
    %7007 = vset.pattern.permute.xlu0 0
    %7008 = vperm.xlu0 %7007, %v6802
    %v7009 = vpop.permute.xlu0 %7008
    %7012 = vset.pattern.permute.xlu0 0
    %7013 = vperm.xlu0 %7012, %v6803
    %v7014 = vpop.permute.xlu0 %7013
    %7017 = vset.pattern.permute.xlu0 0
    %7018 = vperm.xlu0 %7017, %v6804
    %v7019 = vpop.permute.xlu0 %7018
    %7022 = vset.pattern.permute.xlu0 0
    %7023 = vperm.xlu0 %7022, %v6805
    %v7024 = vpop.permute.xlu0 %7023
    %7027 = vset.pattern.permute.xlu0 0
    %7028 = vperm.xlu0 %7027, %v6806
    %v7029 = vpop.permute.xlu0 %7028
    %7032 = vset.pattern.permute.xlu0 0
    %7033 = vperm.xlu0 %7032, %v6807
    %v7034 = vpop.permute.xlu0 %7033
    %7037 = vset.pattern.permute.xlu0 0
    %7038 = vperm.xlu0 %7037, %v6808
    %v7039 = vpop.permute.xlu0 %7038
    %7042 = vset.pattern.permute.xlu0 0
    %7043 = vperm.xlu0 %7042, %v6809
    %v7044 = vpop.permute.xlu0 %7043
    %7047 = vset.pattern.permute.xlu0 0
    %7048 = vperm.xlu0 %7047, %v6810
    %v7049 = vpop.permute.xlu0 %7048
    %v7051 = vadd.f32 %v6715, %v6814
    %v7052 = vadd.f32 %v6716, %v6819
    %v7053 = vadd.f32 %v6717, %v6824
    %v7054 = vadd.f32 %v6718, %v6829
    %v7055 = vadd.f32 %v6719, %v6834
    %v7056 = vadd.f32 %v6720, %v6839
    %v7057 = vadd.f32 %v6721, %v6844
    %v7058 = vadd.f32 %v6722, %v6849
    %v7059 = vadd.f32 %v6723, %v6854
    %v7060 = vadd.f32 %v6724, %v6859
    %v7061 = vadd.f32 %v6725, %v6864
    %v7062 = vadd.f32 %v6726, %v6869
    %v7063 = vadd.f32 %v6727, %v6874
    %v7064 = vadd.f32 %v6728, %v6879
    %v7065 = vadd.f32 %v6729, %v6884
    %v7066 = vadd.f32 %v6730, %v6889
    %v7067 = vadd.f32 %v6731, %v6894
    %v7068 = vadd.f32 %v6732, %v6899
    %v7069 = vadd.f32 %v6733, %v6904
    %v7070 = vadd.f32 %v6734, %v6909
    %v7071 = vadd.f32 %v6735, %v6914
    %v7072 = vadd.f32 %v6736, %v6919
    %v7073 = vadd.f32 %v6737, %v6924
    %v7074 = vadd.f32 %v6738, %v6929
    %v7075 = vadd.f32 %v6739, %v6934
    %v7076 = vadd.f32 %v6740, %v6939
    %v7077 = vadd.f32 %v6741, %v6944
    %v7078 = vadd.f32 %v6742, %v6949
    %v7079 = vadd.f32 %v6743, %v6954
    %v7080 = vadd.f32 %v6744, %v6959
    %v7081 = vadd.f32 %v6745, %v6964
    %v7082 = vadd.f32 %v6746, %v6969
    %v7083 = vadd.f32 %v6747, %v6974
    %v7084 = vadd.f32 %v6748, %v6979
    %v7085 = vadd.f32 %v6749, %v6984
    %v7086 = vadd.f32 %v6750, %v6989
    %v7087 = vadd.f32 %v6751, %v6994
    %v7088 = vadd.f32 %v6752, %v6999
    %v7089 = vadd.f32 %v6753, %v7004
    %v7090 = vadd.f32 %v6754, %v7009
    %v7091 = vadd.f32 %v6755, %v7014
    %v7092 = vadd.f32 %v6756, %v7019
    %v7093 = vadd.f32 %v6757, %v7024
    %v7094 = vadd.f32 %v6758, %v7029
    %v7095 = vadd.f32 %v6759, %v7034
    %v7096 = vadd.f32 %v6760, %v7039
    %v7097 = vadd.f32 %v6761, %v7044
    %v7098 = vadd.f32 %v6762, %v7049
    %7099 = vst.msk [vmem:[%s4] sm:$0xff] %vm5801, %v7051
    %7100 = vst.msk [vmem:[%s4 + $0x8] sm:$0xff] %vm5801, %v7052
    %7101 = vst.msk [vmem:[%s4 + $0x10] sm:$0xff] %vm5801, %v7053
    %7102 = vst.msk [vmem:[%s4 + $0x18] sm:$0xff] %vm5801, %v7054
    %7103 = vst.msk [vmem:[%s4 + $0x20] sm:$0xff] %vm5801, %v7055
    %7104 = vst.msk [vmem:[%s4 + $0x28] sm:$0xff] %vm5801, %v7056
    %7105 = vst.msk [vmem:[%s4 + $0x30] sm:$0xff] %vm5801, %v7057
    %7106 = vst.msk [vmem:[%s4 + $0x38] sm:$0xff] %vm5801, %v7058
    %7107 = vst.msk [vmem:[%s4 + $0x40] sm:$0xff] %vm5801, %v7059
    %7108 = vst.msk [vmem:[%s4 + $0x48] sm:$0xff] %vm5801, %v7060
    %7109 = vst.msk [vmem:[%s4 + $0x50] sm:$0xff] %vm5801, %v7061
    %7110 = vst.msk [vmem:[%s4 + $0x58] sm:$0xff] %vm5801, %v7062
    %7111 = vst.msk [vmem:[%s4 + $0x60] sm:$0xff] %vm5801, %v7063
    %7112 = vst.msk [vmem:[%s4 + $0x68] sm:$0xff] %vm5801, %v7064
    %7113 = vst.msk [vmem:[%s4 + $0x70] sm:$0xff] %vm5801, %v7065
    %7114 = vst.msk [vmem:[%s4 + $0x78] sm:$0xff] %vm5801, %v7066
    %7115 = vst.msk [vmem:[%s4 + $0x80] sm:$0xff] %vm5801, %v7067
    %7116 = vst.msk [vmem:[%s4 + $0x88] sm:$0xff] %vm5801, %v7068
    %7117 = vst.msk [vmem:[%s4 + $0x90] sm:$0xff] %vm5801, %v7069
    %7118 = vst.msk [vmem:[%s4 + $0x98] sm:$0xff] %vm5801, %v7070
    %7119 = vst.msk [vmem:[%s4 + $0xa0] sm:$0xff] %vm5801, %v7071
    %7120 = vst.msk [vmem:[%s4 + $0xa8] sm:$0xff] %vm5801, %v7072
    %7121 = vst.msk [vmem:[%s4 + $0xb0] sm:$0xff] %vm5801, %v7073
    %7122 = vst.msk [vmem:[%s4 + $0xb8] sm:$0xff] %vm5801, %v7074
    %7123 = vst.msk [vmem:[%s4 + $0xc0] sm:$0xff] %vm5801, %v7075
    %7124 = vst.msk [vmem:[%s4 + $0xc8] sm:$0xff] %vm5801, %v7076
    %7125 = vst.msk [vmem:[%s4 + $0xd0] sm:$0xff] %vm5801, %v7077
    %7126 = vst.msk [vmem:[%s4 + $0xd8] sm:$0xff] %vm5801, %v7078
    %7127 = vst.msk [vmem:[%s4 + $0xe0] sm:$0xff] %vm5801, %v7079
    %7128 = vst.msk [vmem:[%s4 + $0xe8] sm:$0xff] %vm5801, %v7080
    %7129 = vst.msk [vmem:[%s4 + $0xf0] sm:$0xff] %vm5801, %v7081
    %7130 = vst.msk [vmem:[%s4 + $0xf8] sm:$0xff] %vm5801, %v7082
    %7131 = vst.msk [vmem:[%s4 + $0x100] sm:$0xff] %vm5801, %v7083
    %7132 = vst.msk [vmem:[%s4 + $0x108] sm:$0xff] %vm5801, %v7084
    %7133 = vst.msk [vmem:[%s4 + $0x110] sm:$0xff] %vm5801, %v7085
    %7134 = vst.msk [vmem:[%s4 + $0x118] sm:$0xff] %vm5801, %v7086
    %7135 = vst.msk [vmem:[%s4 + $0x120] sm:$0xff] %vm5801, %v7087
    %7136 = vst.msk [vmem:[%s4 + $0x128] sm:$0xff] %vm5801, %v7088
    %7137 = vst.msk [vmem:[%s4 + $0x130] sm:$0xff] %vm5801, %v7089
    %7138 = vst.msk [vmem:[%s4 + $0x138] sm:$0xff] %vm5801, %v7090
    %7139 = vst.msk [vmem:[%s4 + $0x140] sm:$0xff] %vm5801, %v7091
    %7140 = vst.msk [vmem:[%s4 + $0x148] sm:$0xff] %vm5801, %v7092
    %7141 = vst.msk [vmem:[%s4 + $0x150] sm:$0xff] %vm5801, %v7093
    %7142 = vst.msk [vmem:[%s4 + $0x158] sm:$0xff] %vm5801, %v7094
    %7143 = vst.msk [vmem:[%s4 + $0x160] sm:$0xff] %vm5801, %v7095
    %7144 = vst.msk [vmem:[%s4 + $0x168] sm:$0xff] %vm5801, %v7096
    %7145 = vst.msk [vmem:[%s4 + $0x170] sm:$0xff] %vm5801, %v7097
    %7146 = vst.msk [vmem:[%s4 + $0x178] sm:$0xff] %vm5801, %v7098
    // Predicated region
    $region22: #{tpu_custom_call.1} parent=1 // pred_check
      _
    $region23: #{tpu_custom_call.1} parent=1 // pred_check_branch
      %7148 = sbr.rel (0) target = $region25
    $region24: #{tpu_custom_call.1} parent=1 // pred_region
      _
    $region25: #{tpu_custom_call.1} parent=1 // pred_fallthru
      _
    // Predicated region
    $region26: #{tpu_custom_call.1} parent=1 // pred_check
      _
    $region27: #{tpu_custom_call.1} parent=1 // pred_check_branch
      %7150 = sbr.rel (0) target = $region29
    $region28: #{tpu_custom_call.1} parent=1 // pred_region
      _
    $region29: #{tpu_custom_call.1} parent=1 // pred_fallthru
      _
    %7151 = vsyncpa [#allocation3], 1

</llo_original>
